<compile_context>
chip_gen: v5e
topology: v5e:2x2
jax: 0.10.0
libtpu: 0.0.40
codegen_flags: <defaults>
</compile_context>

<pallas_src>
import jax
import jax.numpy as jnp
import numpy as np
from jax.experimental import pallas as pl
from jax.experimental.pallas import tpu as pltpu


# ----------------------------- kernel ---------------------------------------

def encoder_kernel(x_ref, wgi_ref, bgi_ref, whh_ref, bhh_ref, wfc_ref, bfc_ref,
                   out_ref, s_out_ref, gi_ref):
    """Fused bidirectional-GRU encoder kernel (embedding Linear folded in).

    x_ref    : (T*B, D)       embedded-input source, seq-major flattened
    wgi_ref  : (2, D, 3H)     fused input-projection weights per direction
    bgi_ref  : (2, 1, 3H)     fused input-projection bias per direction
    whh_ref  : (2, 3, H, H)   recurrent weights, per direction / gate (r,z,n)
    bhh_ref  : (2, 3, 1, H)   recurrent bias, per direction / gate
    wfc_ref  : (2, H, DEC)    fc weights split into [fwd-half, bwd-half]
    bfc_ref  : (1, DEC)       fc bias
    out_ref  : (T, B, 2H)     enc_output, already direction-concatenated
    s_out_ref: (B, DEC)       s = tanh(fc(cat(h_fwd_final, h_bwd_final)))
    gi_ref   : (2, 3, T*B, H) VMEM scratch: precomputed input gates
    """
    T, B, H2 = out_ref.shape
    H = H2 // 2

    # --- batched input projection: both directions, all timesteps at once ---
    # One (T*B, D) @ (D, 3H) MXU push per direction, then a single per-gate
    # lane split into aligned scratch (off the serial critical path).
    x = x_ref[...]                                                   # (T*B, D)
    for d in range(2):
        gi = jnp.dot(x, wgi_ref[d],
                     preferred_element_type=jnp.float32) + bgi_ref[d]
        gi_ref[d, 0, :, :] = gi[:, 0:H]
        gi_ref[d, 1, :, :] = gi[:, H:2 * H]
        gi_ref[d, 2, :, :] = gi[:, 2 * H:3 * H]

    # Hoist recurrent weights/biases out of the time loop.
    w = [[whh_ref[d, g] for g in range(3)] for d in range(2)]
    b = [[bhh_ref[d, g] for g in range(3)] for d in range(2)]

    def cell(h, d, row):
        # `row` is a Python int -> static-offset sublane loads.
        gr = gi_ref[d, 0, pl.ds(row, B), :]
        gz = gi_ref[d, 1, pl.ds(row, B), :]
        gn = gi_ref[d, 2, pl.ds(row, B), :]
        # Recurrent projection: the only matmuls on the serial critical path.
        ghr = jnp.dot(h, w[d][0], preferred_element_type=jnp.float32) + b[d][0]
        ghz = jnp.dot(h, w[d][1], preferred_element_type=jnp.float32) + b[d][1]
        ghn = jnp.dot(h, w[d][2], preferred_element_type=jnp.float32) + b[d][2]
        r = jax.nn.sigmoid(gr + ghr)
        z = jax.nn.sigmoid(gz + ghz)
        n = jnp.tanh(gn + r * ghn)
        return n + z * (h - n)                    # == (1-z)*n + z*h

    h_f = jnp.zeros((B, H), jnp.float32)
    h_b = jnp.zeros((B, H), jnp.float32)

    # Interleave the two independent direction chains: at every step the fwd
    # and bwd cells are issued back-to-back, doubling MXU/EUP ILP on the
    # latency-bound recurrence (the two chains share no data dependency).
    # Python unroll keeps every gi load and output store at a static offset.
    for s in range(T):
        tb = T - 1 - s
        h_f = cell(h_f, 0, s * B)
        h_b = cell(h_b, 1, tb * B)
        out_ref[s, :, pl.ds(0, H)] = h_f          # fwd half of concat layout
        out_ref[tb, :, pl.ds(H, H)] = h_b         # bwd half of concat layout

    # Fused fc + tanh on the final hidden states (no wrapper-side concat:
    # wfc is pre-split so cat(h_f, h_b) @ w_fc == h_f @ wfc[0] + h_b @ wfc[1]).
    s_out_ref[...] = jnp.tanh(
        jnp.dot(h_f, wfc_ref[0], preferred_element_type=jnp.float32)
        + jnp.dot(h_b, wfc_ref[1], preferred_element_type=jnp.float32)
        + bfc_ref[...])


# ----------------------------- param prep (once, outside jit) ----------------

def prepare_encoder_params(params):
    """Fold the embedding Linear into the GRU input projection and lay out the
    weights for the kernel.  Runs ONCE at parameter-load time, not per call.

    gi = (src @ w_emb + b_emb) @ w_ih + b_ih
       = src @ (w_emb @ w_ih) + (b_emb @ w_ih + b_ih)
    # TODO(synk): valid because nn.Dropout is identity in eval mode; training-
    # mode dropout masking (which would break this fusion) is not implemented.
    """
    H = params["w_hh"].shape[1]
    DEC = params["w_fc"].shape[1]

    w_gi = jnp.einsum("de,zeg->zdg", params["w_emb"], params["w_ih"])     # (2,D,3H)
    b_gi = (jnp.einsum("oe,zeg->zog", params["b_emb"], params["w_ih"])
            + params["b_ih"])                                             # (2,1,3H)
    # Per-gate (r,z,n) lane-aligned recurrent weights.
    w_hh = params["w_hh"].reshape(2, H, 3, H).transpose(0, 2, 1, 3)       # (2,3,H,H)
    b_hh = params["b_hh"].reshape(2, 1, 3, H).transpose(0, 2, 1, 3)       # (2,3,1,H)
    # fc split into the half applied to h_fwd and the half applied to h_bwd.
    w_fc = params["w_fc"].reshape(2, H, DEC)                              # (2,H,DEC)
    b_fc = params["b_fc"]                                                 # (1,DEC)
    return {"w_gi": w_gi, "b_gi": b_gi, "w_hh": w_hh, "b_hh": b_hh,
            "w_fc": w_fc, "b_fc": b_fc}


# ----------------------------- forward wrapper -------------------------------

def encoder_forward(src, p):
    T, B, D = src.shape
    H = p["w_hh"].shape[2]
    DEC = p["w_fc"].shape[2]
    x2d = src.reshape(T * B, D)

    enc_output, s = pl.pallas_call(
        encoder_kernel,
        out_shape=(jax.ShapeDtypeStruct((T, B, 2 * H), jnp.float32),
                   jax.ShapeDtypeStruct((B, DEC), jnp.float32)),
        grid_spec=pltpu.PrefetchScalarGridSpec(
            num_scalar_prefetch=0,
            grid=(1,),
            in_specs=[
                pl.BlockSpec((T * B, D), lambda i: (0, 0)),
                pl.BlockSpec((2, D, 3 * H), lambda i: (0, 0, 0)),
                pl.BlockSpec((2, 1, 3 * H), lambda i: (0, 0, 0)),
                pl.BlockSpec((2, 3, H, H), lambda i: (0, 0, 0, 0)),
                pl.BlockSpec((2, 3, 1, H), lambda i: (0, 0, 0, 0)),
                pl.BlockSpec((2, H, DEC), lambda i: (0, 0, 0)),
                pl.BlockSpec((1, DEC), lambda i: (0, 0)),
            ],
            out_specs=[
                pl.BlockSpec((T, B, 2 * H), lambda i: (0, 0, 0)),
                pl.BlockSpec((B, DEC), lambda i: (0, 0)),
            ],
            scratch_shapes=[pltpu.VMEM((2, 3, T * B, H), jnp.float32)],
        ),
        compiler_params=pltpu.CompilerParams(
            dimension_semantics=("arbitrary",)),
    )(x2d, p["w_gi"], p["b_gi"], p["w_hh"], p["b_hh"], p["w_fc"], p["b_fc"])
    return enc_output, s


# ----------------------------- pure-JAX reference ----------------------------

def ref_encoder(src, params):
    T, B, D = src.shape
    emb = src @ params["w_emb"] + params["b_emb"][0]

    def gru_dir(xs, wih, whh, bih, bhh):
        H = whh.shape[0]

        def step(h, x):
            gi = x @ wih + bih
            gh = h @ whh + bhh
            r = jax.nn.sigmoid(gi[:, :H] + gh[:, :H])
            z = jax.nn.sigmoid(gi[:, H:2 * H] + gh[:, H:2 * H])
            n = jnp.tanh(gi[:, 2 * H:] + r * gh[:, 2 * H:])
            h_new = (1.0 - z) * n + z * h
            return h_new, h_new

        h0 = jnp.zeros((B, H), jnp.float32)
        hT, outs = jax.lax.scan(step, h0, xs)
        return outs, hT

    of, hf = gru_dir(emb, params["w_ih"][0], params["w_hh"][0],
                     params["b_ih"][0, 0], params["b_hh"][0, 0])
    ob_rev, hb = gru_dir(emb[::-1], params["w_ih"][1], params["w_hh"][1],
                         params["b_ih"][1, 0], params["b_hh"][1, 0])
    ob = ob_rev[::-1]
    enc_out = jnp.concatenate([of, ob], axis=-1)
    s = jnp.tanh(jnp.concatenate([hf, hb], axis=-1) @ params["w_fc"]
                 + params["b_fc"][0])
    return enc_out, s


# ----------------------------- main ------------------------------------------

if __name__ == "__main__":
    # Small, TPU-friendly shapes: sublane-aligned batch, 32-wide features.
    T, B = 8, 8                    # src_len, batch_size
    D = 32                         # d_model (input feature dim)
    E = 32                         # emb_dim
    H = 32                         # enc_hid_dim
    DEC = 32                       # dec_hid_dim

    key = jax.random.PRNGKey(0)
    ks = jax.random.split(key, 9)
    scale = 0.1
    params = {
        "w_emb": scale * jax.random.normal(ks[0], (D, E), jnp.float32),
        "b_emb": scale * jax.random.normal(ks[1], (1, E), jnp.float32),
        # GRU weights, pre-transposed, stacked [forward, backward]; gate order (r,z,n).
        "w_ih": scale * jax.random.normal(ks[2], (2, E, 3 * H), jnp.float32),
        "w_hh": scale * jax.random.normal(ks[3], (2, H, 3 * H), jnp.float32),
        "b_ih": scale * jax.random.normal(ks[4], (2, 1, 3 * H), jnp.float32),
        "b_hh": scale * jax.random.normal(ks[5], (2, 1, 3 * H), jnp.float32),
        "w_fc": scale * jax.random.normal(ks[6], (2 * H, DEC), jnp.float32),
        "b_fc": scale * jax.random.normal(ks[7], (1, DEC), jnp.float32),
    }
    src = jax.random.normal(ks[8], (T, B, D), jnp.float32)

    # Weight fusion / layout prep happens once, outside the jitted call path.
    prepped = prepare_encoder_params(params)

    fwd = jax.jit(encoder_forward)
    enc_output, s = jax.block_until_ready(fwd(src, prepped))

    enc_ref, s_expected = ref_encoder(src, params)
    assert enc_output.shape == (T, B, 2 * H) and s.shape == (B, DEC)
    assert np.allclose(np.asarray(enc_output), np.asarray(enc_ref),
                       atol=1e-4, rtol=1e-4)
    assert np.allclose(np.asarray(s), np.asarray(s_expected),
                       atol=1e-4, rtol=1e-4)

    print("KERNEL_OK")
</pallas_src>

<mosaic_0001>
module attributes {stable_mosaic.version = 11 : i64} {
  func.func @encoder_kernel(%arg0: i32, %arg1: memref<64x32xf32, #tpu.memory_space<vmem>>, %arg2: memref<2x32x96xf32, #tpu.memory_space<vmem>>, %arg3: memref<2x1x96xf32, #tpu.memory_space<vmem>>, %arg4: memref<2x3x32x32xf32, #tpu.memory_space<vmem>>, %arg5: memref<2x3x1x32xf32, #tpu.memory_space<vmem>>, %arg6: memref<2x32x32xf32, #tpu.memory_space<vmem>>, %arg7: memref<1x32xf32, #tpu.memory_space<vmem>>, %arg8: memref<8x8x64xf32, #tpu.memory_space<vmem>>, %arg9: memref<8x32xf32, #tpu.memory_space<vmem>>, %arg10: memref<2x3x64x32xf32, #tpu.memory_space<vmem>>) attributes {dimension_semantics = [#tpu.dimension_semantics<arbitrary>], iteration_bounds = array<i64: 1>, scalar_prefetch = 0 : i64, scratch_operands = 1 : i64, tpu.core_type = #tpu.core_type<tc>, window_params = [{pipeline_mode = #tpu.pipeline_mode<synchronous>, transform_indices = @transform_0, window_bounds = array<i64: 64, 32>}, {pipeline_mode = #tpu.pipeline_mode<synchronous>, transform_indices = @transform_1, window_bounds = array<i64: 2, 32, 96>}, {pipeline_mode = #tpu.pipeline_mode<synchronous>, transform_indices = @transform_2, window_bounds = array<i64: 2, 1, 96>}, {pipeline_mode = #tpu.pipeline_mode<synchronous>, transform_indices = @transform_3, window_bounds = array<i64: 2, 3, 32, 32>}, {pipeline_mode = #tpu.pipeline_mode<synchronous>, transform_indices = @transform_4, window_bounds = array<i64: 2, 3, 1, 32>}, {pipeline_mode = #tpu.pipeline_mode<synchronous>, transform_indices = @transform_5, window_bounds = array<i64: 2, 32, 32>}, {pipeline_mode = #tpu.pipeline_mode<synchronous>, transform_indices = @transform_6, window_bounds = array<i64: 1, 32>}, {pipeline_mode = #tpu.pipeline_mode<synchronous>, transform_indices = @transform_7, window_bounds = array<i64: 8, 8, 64>}, {pipeline_mode = #tpu.pipeline_mode<synchronous>, transform_indices = @transform_8, window_bounds = array<i64: 8, 32>}]} {
    %c0 = arith.constant 0 : index
    %c0_0 = arith.constant 0 : index
    %0 = vector.load %arg1[%c0, %c0_0] : memref<64x32xf32, #tpu.memory_space<vmem>>, vector<64x32xf32>
    %c0_1 = arith.constant 0 : index
    %c0_2 = arith.constant 0 : index
    %c0_3 = arith.constant 0 : index
    %1 = vector.load %arg2[%c0_1, %c0_2, %c0_3] : memref<2x32x96xf32, #tpu.memory_space<vmem>>, vector<1x32x96xf32>
    %2 = vector.shape_cast %1 : vector<1x32x96xf32> to vector<32x96xf32>
    %cst = arith.constant dense<0.000000e+00> : vector<64x96xf32>
    %3 = tpu.matmul %0, %2, %cst {dimension_numbers = #tpu.dot_dimension_numbers<[1], [0], [0], [1], [0, 0, 1, 1], [], []>} : vector<64x32xf32>, vector<32x96xf32>, vector<64x96xf32> -> vector<64x96xf32>
    %c0_4 = arith.constant 0 : index
    %c0_5 = arith.constant 0 : index
    %c0_6 = arith.constant 0 : index
    %4 = vector.load %arg3[%c0_4, %c0_5, %c0_6] : memref<2x1x96xf32, #tpu.memory_space<vmem>>, vector<1x1x96xf32>
    %5 = vector.shape_cast %4 : vector<1x1x96xf32> to vector<1x96xf32>
    %6 = vector.broadcast %5 : vector<1x96xf32> to vector<64x96xf32>
    %7 = arith.addf %3, %6 : vector<64x96xf32>
    %8 = vector.extract_strided_slice %7 {offsets = [0, 0], sizes = [64, 32], strides = [1, 1]} : vector<64x96xf32> to vector<64x32xf32>
    %c0_7 = arith.constant 0 : index
    %c0_8 = arith.constant 0 : index
    %c0_9 = arith.constant 0 : index
    %c0_10 = arith.constant 0 : index
    %9 = vector.load %arg10[%c0_7, %c0_8, %c0_9, %c0_10] : memref<2x3x64x32xf32, #tpu.memory_space<vmem>>, vector<1x1x64x32xf32>
    %10 = vector.shape_cast %9 : vector<1x1x64x32xf32> to vector<64x32xf32>
    %11 = vector.shape_cast %8 : vector<64x32xf32> to vector<1x1x64x32xf32>
    tpu.vector_store %arg10[%c0_7, %c0_8, %c0_9, %c0_10], %11 {strides = array<i32>} : memref<2x3x64x32xf32, #tpu.memory_space<vmem>>, vector<1x1x64x32xf32>,
    %12 = vector.extract_strided_slice %7 {offsets = [0, 32], sizes = [64, 32], strides = [1, 1]} : vector<64x96xf32> to vector<64x32xf32>
    %c0_11 = arith.constant 0 : index
    %c1 = arith.constant 1 : index
    %c0_12 = arith.constant 0 : index
    %c0_13 = arith.constant 0 : index
    %13 = vector.load %arg10[%c0_11, %c1, %c0_12, %c0_13] : memref<2x3x64x32xf32, #tpu.memory_space<vmem>>, vector<1x1x64x32xf32>
    %14 = vector.shape_cast %13 : vector<1x1x64x32xf32> to vector<64x32xf32>
    %15 = vector.shape_cast %12 : vector<64x32xf32> to vector<1x1x64x32xf32>
    tpu.vector_store %arg10[%c0_11, %c1, %c0_12, %c0_13], %15 {strides = array<i32>} : memref<2x3x64x32xf32, #tpu.memory_space<vmem>>, vector<1x1x64x32xf32>,
    %16 = vector.extract_strided_slice %7 {offsets = [0, 64], sizes = [64, 32], strides = [1, 1]} : vector<64x96xf32> to vector<64x32xf32>
    %c0_14 = arith.constant 0 : index
    %c2 = arith.constant 2 : index
    %c0_15 = arith.constant 0 : index
    %c0_16 = arith.constant 0 : index
    %17 = vector.load %arg10[%c0_14, %c2, %c0_15, %c0_16] : memref<2x3x64x32xf32, #tpu.memory_space<vmem>>, vector<1x1x64x32xf32>
    %18 = vector.shape_cast %17 : vector<1x1x64x32xf32> to vector<64x32xf32>
    %19 = vector.shape_cast %16 : vector<64x32xf32> to vector<1x1x64x32xf32>
    tpu.vector_store %arg10[%c0_14, %c2, %c0_15, %c0_16], %19 {strides = array<i32>} : memref<2x3x64x32xf32, #tpu.memory_space<vmem>>, vector<1x1x64x32xf32>,
    %c1_17 = arith.constant 1 : index
    %c0_18 = arith.constant 0 : index
    %c0_19 = arith.constant 0 : index
    %20 = vector.load %arg2[%c1_17, %c0_18, %c0_19] : memref<2x32x96xf32, #tpu.memory_space<vmem>>, vector<1x32x96xf32>
    %21 = vector.shape_cast %20 : vector<1x32x96xf32> to vector<32x96xf32>
    %cst_20 = arith.constant dense<0.000000e+00> : vector<64x96xf32>
    %22 = tpu.matmul %0, %21, %cst_20 {dimension_numbers = #tpu.dot_dimension_numbers<[1], [0], [0], [1], [0, 0, 1, 1], [], []>} : vector<64x32xf32>, vector<32x96xf32>, vector<64x96xf32> -> vector<64x96xf32>
    %c1_21 = arith.constant 1 : index
    %c0_22 = arith.constant 0 : index
    %c0_23 = arith.constant 0 : index
    %23 = vector.load %arg3[%c1_21, %c0_22, %c0_23] : memref<2x1x96xf32, #tpu.memory_space<vmem>>, vector<1x1x96xf32>
    %24 = vector.shape_cast %23 : vector<1x1x96xf32> to vector<1x96xf32>
    %25 = vector.broadcast %24 : vector<1x96xf32> to vector<64x96xf32>
    %26 = arith.addf %22, %25 : vector<64x96xf32>
    %27 = vector.extract_strided_slice %26 {offsets = [0, 0], sizes = [64, 32], strides = [1, 1]} : vector<64x96xf32> to vector<64x32xf32>
    %c1_24 = arith.constant 1 : index
    %c0_25 = arith.constant 0 : index
    %c0_26 = arith.constant 0 : index
    %c0_27 = arith.constant 0 : index
    %28 = vector.load %arg10[%c1_24, %c0_25, %c0_26, %c0_27] : memref<2x3x64x32xf32, #tpu.memory_space<vmem>>, vector<1x1x64x32xf32>
    %29 = vector.shape_cast %28 : vector<1x1x64x32xf32> to vector<64x32xf32>
    %30 = vector.shape_cast %27 : vector<64x32xf32> to vector<1x1x64x32xf32>
    tpu.vector_store %arg10[%c1_24, %c0_25, %c0_26, %c0_27], %30 {strides = array<i32>} : memref<2x3x64x32xf32, #tpu.memory_space<vmem>>, vector<1x1x64x32xf32>,
    %31 = vector.extract_strided_slice %26 {offsets = [0, 32], sizes = [64, 32], strides = [1, 1]} : vector<64x96xf32> to vector<64x32xf32>
    %c1_28 = arith.constant 1 : index
    %c1_29 = arith.constant 1 : index
    %c0_30 = arith.constant 0 : index
    %c0_31 = arith.constant 0 : index
    %32 = vector.load %arg10[%c1_28, %c1_29, %c0_30, %c0_31] : memref<2x3x64x32xf32, #tpu.memory_space<vmem>>, vector<1x1x64x32xf32>
    %33 = vector.shape_cast %32 : vector<1x1x64x32xf32> to vector<64x32xf32>
    %34 = vector.shape_cast %31 : vector<64x32xf32> to vector<1x1x64x32xf32>
    tpu.vector_store %arg10[%c1_28, %c1_29, %c0_30, %c0_31], %34 {strides = array<i32>} : memref<2x3x64x32xf32, #tpu.memory_space<vmem>>, vector<1x1x64x32xf32>,
    %35 = vector.extract_strided_slice %26 {offsets = [0, 64], sizes = [64, 32], strides = [1, 1]} : vector<64x96xf32> to vector<64x32xf32>
    %c1_32 = arith.constant 1 : index
    %c2_33 = arith.constant 2 : index
    %c0_34 = arith.constant 0 : index
    %c0_35 = arith.constant 0 : index
    %36 = vector.load %arg10[%c1_32, %c2_33, %c0_34, %c0_35] : memref<2x3x64x32xf32, #tpu.memory_space<vmem>>, vector<1x1x64x32xf32>
    %37 = vector.shape_cast %36 : vector<1x1x64x32xf32> to vector<64x32xf32>
    %38 = vector.shape_cast %35 : vector<64x32xf32> to vector<1x1x64x32xf32>
    tpu.vector_store %arg10[%c1_32, %c2_33, %c0_34, %c0_35], %38 {strides = array<i32>} : memref<2x3x64x32xf32, #tpu.memory_space<vmem>>, vector<1x1x64x32xf32>,
    %c0_36 = arith.constant 0 : index
    %c0_37 = arith.constant 0 : index
    %c0_38 = arith.constant 0 : index
    %c0_39 = arith.constant 0 : index
    %39 = vector.load %arg4[%c0_36, %c0_37, %c0_38, %c0_39] : memref<2x3x32x32xf32, #tpu.memory_space<vmem>>, vector<1x1x32x32xf32>
    %40 = vector.shape_cast %39 : vector<1x1x32x32xf32> to vector<32x32xf32>
    %c0_40 = arith.constant 0 : index
    %c1_41 = arith.constant 1 : index
    %c0_42 = arith.constant 0 : index
    %c0_43 = arith.constant 0 : index
    %41 = vector.load %arg4[%c0_40, %c1_41, %c0_42, %c0_43] : memref<2x3x32x32xf32, #tpu.memory_space<vmem>>, vector<1x1x32x32xf32>
    %42 = vector.shape_cast %41 : vector<1x1x32x32xf32> to vector<32x32xf32>
    %c0_44 = arith.constant 0 : index
    %c2_45 = arith.constant 2 : index
    %c0_46 = arith.constant 0 : index
    %c0_47 = arith.constant 0 : index
    %43 = vector.load %arg4[%c0_44, %c2_45, %c0_46, %c0_47] : memref<2x3x32x32xf32, #tpu.memory_space<vmem>>, vector<1x1x32x32xf32>
    %44 = vector.shape_cast %43 : vector<1x1x32x32xf32> to vector<32x32xf32>
    %c1_48 = arith.constant 1 : index
    %c0_49 = arith.constant 0 : index
    %c0_50 = arith.constant 0 : index
    %c0_51 = arith.constant 0 : index
    %45 = vector.load %arg4[%c1_48, %c0_49, %c0_50, %c0_51] : memref<2x3x32x32xf32, #tpu.memory_space<vmem>>, vector<1x1x32x32xf32>
    %46 = vector.shape_cast %45 : vector<1x1x32x32xf32> to vector<32x32xf32>
    %c1_52 = arith.constant 1 : index
    %c1_53 = arith.constant 1 : index
    %c0_54 = arith.constant 0 : index
    %c0_55 = arith.constant 0 : index
    %47 = vector.load %arg4[%c1_52, %c1_53, %c0_54, %c0_55] : memref<2x3x32x32xf32, #tpu.memory_space<vmem>>, vector<1x1x32x32xf32>
    %48 = vector.shape_cast %47 : vector<1x1x32x32xf32> to vector<32x32xf32>
    %c1_56 = arith.constant 1 : index
    %c2_57 = arith.constant 2 : index
    %c0_58 = arith.constant 0 : index
    %c0_59 = arith.constant 0 : index
    %49 = vector.load %arg4[%c1_56, %c2_57, %c0_58, %c0_59] : memref<2x3x32x32xf32, #tpu.memory_space<vmem>>, vector<1x1x32x32xf32>
    %50 = vector.shape_cast %49 : vector<1x1x32x32xf32> to vector<32x32xf32>
    %c0_60 = arith.constant 0 : index
    %c0_61 = arith.constant 0 : index
    %c0_62 = arith.constant 0 : index
    %c0_63 = arith.constant 0 : index
    %51 = vector.load %arg5[%c0_60, %c0_61, %c0_62, %c0_63] : memref<2x3x1x32xf32, #tpu.memory_space<vmem>>, vector<1x1x1x32xf32>
    %52 = vector.shape_cast %51 : vector<1x1x1x32xf32> to vector<1x32xf32>
    %c0_64 = arith.constant 0 : index
    %c1_65 = arith.constant 1 : index
    %c0_66 = arith.constant 0 : index
    %c0_67 = arith.constant 0 : index
    %53 = vector.load %arg5[%c0_64, %c1_65, %c0_66, %c0_67] : memref<2x3x1x32xf32, #tpu.memory_space<vmem>>, vector<1x1x1x32xf32>
    %54 = vector.shape_cast %53 : vector<1x1x1x32xf32> to vector<1x32xf32>
    %c0_68 = arith.constant 0 : index
    %c2_69 = arith.constant 2 : index
    %c0_70 = arith.constant 0 : index
    %c0_71 = arith.constant 0 : index
    %55 = vector.load %arg5[%c0_68, %c2_69, %c0_70, %c0_71] : memref<2x3x1x32xf32, #tpu.memory_space<vmem>>, vector<1x1x1x32xf32>
    %56 = vector.shape_cast %55 : vector<1x1x1x32xf32> to vector<1x32xf32>
    %c1_72 = arith.constant 1 : index
    %c0_73 = arith.constant 0 : index
    %c0_74 = arith.constant 0 : index
    %c0_75 = arith.constant 0 : index
    %57 = vector.load %arg5[%c1_72, %c0_73, %c0_74, %c0_75] : memref<2x3x1x32xf32, #tpu.memory_space<vmem>>, vector<1x1x1x32xf32>
    %58 = vector.shape_cast %57 : vector<1x1x1x32xf32> to vector<1x32xf32>
    %c1_76 = arith.constant 1 : index
    %c1_77 = arith.constant 1 : index
    %c0_78 = arith.constant 0 : index
    %c0_79 = arith.constant 0 : index
    %59 = vector.load %arg5[%c1_76, %c1_77, %c0_78, %c0_79] : memref<2x3x1x32xf32, #tpu.memory_space<vmem>>, vector<1x1x1x32xf32>
    %60 = vector.shape_cast %59 : vector<1x1x1x32xf32> to vector<1x32xf32>
    %c1_80 = arith.constant 1 : index
    %c2_81 = arith.constant 2 : index
    %c0_82 = arith.constant 0 : index
    %c0_83 = arith.constant 0 : index
    %61 = vector.load %arg5[%c1_80, %c2_81, %c0_82, %c0_83] : memref<2x3x1x32xf32, #tpu.memory_space<vmem>>, vector<1x1x1x32xf32>
    %62 = vector.shape_cast %61 : vector<1x1x1x32xf32> to vector<1x32xf32>
    %cst_84 = arith.constant 0.000000e+00 : f32
    %63 = vector.broadcast %cst_84 : f32 to vector<8x32xf32>
    %cst_85 = arith.constant 0.000000e+00 : f32
    %64 = vector.broadcast %cst_85 : f32 to vector<8x32xf32>
    %c0_86 = arith.constant 0 : index
    %c0_87 = arith.constant 0 : index
    %c0_88 = arith.constant 0 : index
    %c0_89 = arith.constant 0 : index
    %65 = vector.load %arg10[%c0_86, %c0_87, %c0_88, %c0_89] : memref<2x3x64x32xf32, #tpu.memory_space<vmem>>, vector<1x1x8x32xf32>
    %66 = vector.shape_cast %65 : vector<1x1x8x32xf32> to vector<8x32xf32>
    %c0_90 = arith.constant 0 : index
    %c1_91 = arith.constant 1 : index
    %c0_92 = arith.constant 0 : index
    %c0_93 = arith.constant 0 : index
    %67 = vector.load %arg10[%c0_90, %c1_91, %c0_92, %c0_93] : memref<2x3x64x32xf32, #tpu.memory_space<vmem>>, vector<1x1x8x32xf32>
    %68 = vector.shape_cast %67 : vector<1x1x8x32xf32> to vector<8x32xf32>
    %c0_94 = arith.constant 0 : index
    %c2_95 = arith.constant 2 : index
    %c0_96 = arith.constant 0 : index
    %c0_97 = arith.constant 0 : index
    %69 = vector.load %arg10[%c0_94, %c2_95, %c0_96, %c0_97] : memref<2x3x64x32xf32, #tpu.memory_space<vmem>>, vector<1x1x8x32xf32>
    %70 = vector.shape_cast %69 : vector<1x1x8x32xf32> to vector<8x32xf32>
    %cst_98 = arith.constant dense<0.000000e+00> : vector<8x32xf32>
    %71 = tpu.matmul %63, %40, %cst_98 {dimension_numbers = #tpu.dot_dimension_numbers<[1], [0], [0], [1], [0, 0, 1, 1], [], []>} : vector<8x32xf32>, vector<32x32xf32>, vector<8x32xf32> -> vector<8x32xf32>
    %72 = vector.broadcast %52 : vector<1x32xf32> to vector<8x32xf32>
    %73 = arith.addf %71, %72 : vector<8x32xf32>
    %cst_99 = arith.constant dense<0.000000e+00> : vector<8x32xf32>
    %74 = tpu.matmul %63, %42, %cst_99 {dimension_numbers = #tpu.dot_dimension_numbers<[1], [0], [0], [1], [0, 0, 1, 1], [], []>} : vector<8x32xf32>, vector<32x32xf32>, vector<8x32xf32> -> vector<8x32xf32>
    %75 = vector.broadcast %54 : vector<1x32xf32> to vector<8x32xf32>
    %76 = arith.addf %74, %75 : vector<8x32xf32>
    %cst_100 = arith.constant dense<0.000000e+00> : vector<8x32xf32>
    %77 = tpu.matmul %63, %44, %cst_100 {dimension_numbers = #tpu.dot_dimension_numbers<[1], [0], [0], [1], [0, 0, 1, 1], [], []>} : vector<8x32xf32>, vector<32x32xf32>, vector<8x32xf32> -> vector<8x32xf32>
    %78 = vector.broadcast %56 : vector<1x32xf32> to vector<8x32xf32>
    %79 = arith.addf %77, %78 : vector<8x32xf32>
    %80 = arith.addf %66, %73 : vector<8x32xf32>
    %81 = arith.negf %80 : vector<8x32xf32>
    %82 = math.exp %81 : vector<8x32xf32>
    %cst_101 = arith.constant 1.000000e+00 : f32
    %83 = vector.broadcast %cst_101 : f32 to vector<8x32xf32>
    %84 = arith.addf %83, %82 : vector<8x32xf32>
    %85 = arith.divf %83, %84 : vector<8x32xf32>
    %86 = arith.addf %68, %76 : vector<8x32xf32>
    %87 = arith.negf %86 : vector<8x32xf32>
    %88 = math.exp %87 : vector<8x32xf32>
    %cst_102 = arith.constant 1.000000e+00 : f32
    %89 = vector.broadcast %cst_102 : f32 to vector<8x32xf32>
    %90 = arith.addf %89, %88 : vector<8x32xf32>
    %91 = arith.divf %89, %90 : vector<8x32xf32>
    %92 = arith.mulf %85, %79 : vector<8x32xf32>
    %93 = arith.addf %70, %92 : vector<8x32xf32>
    %94 = math.tanh %93 : vector<8x32xf32>
    %95 = arith.subf %63, %94 : vector<8x32xf32>
    %96 = arith.mulf %91, %95 : vector<8x32xf32>
    %97 = arith.addf %94, %96 : vector<8x32xf32>
    %c1_103 = arith.constant 1 : index
    %c0_104 = arith.constant 0 : index
    %c56 = arith.constant 56 : index
    %c0_105 = arith.constant 0 : index
    %98 = vector.load %arg10[%c1_103, %c0_104, %c56, %c0_105] : memref<2x3x64x32xf32, #tpu.memory_space<vmem>>, vector<1x1x8x32xf32>
    %99 = vector.shape_cast %98 : vector<1x1x8x32xf32> to vector<8x32xf32>
    %c1_106 = arith.constant 1 : index
    %c1_107 = arith.constant 1 : index
    %c56_108 = arith.constant 56 : index
    %c0_109 = arith.constant 0 : index
    %100 = vector.load %arg10[%c1_106, %c1_107, %c56_108, %c0_109] : memref<2x3x64x32xf32, #tpu.memory_space<vmem>>, vector<1x1x8x32xf32>
    %101 = vector.shape_cast %100 : vector<1x1x8x32xf32> to vector<8x32xf32>
    %c1_110 = arith.constant 1 : index
    %c2_111 = arith.constant 2 : index
    %c56_112 = arith.constant 56 : index
    %c0_113 = arith.constant 0 : index
    %102 = vector.load %arg10[%c1_110, %c2_111, %c56_112, %c0_113] : memref<2x3x64x32xf32, #tpu.memory_space<vmem>>, vector<1x1x8x32xf32>
    %103 = vector.shape_cast %102 : vector<1x1x8x32xf32> to vector<8x32xf32>
    %cst_114 = arith.constant dense<0.000000e+00> : vector<8x32xf32>
    %104 = tpu.matmul %64, %46, %cst_114 {dimension_numbers = #tpu.dot_dimension_numbers<[1], [0], [0], [1], [0, 0, 1, 1], [], []>} : vector<8x32xf32>, vector<32x32xf32>, vector<8x32xf32> -> vector<8x32xf32>
    %105 = vector.broadcast %58 : vector<1x32xf32> to vector<8x32xf32>
    %106 = arith.addf %104, %105 : vector<8x32xf32>
    %cst_115 = arith.constant dense<0.000000e+00> : vector<8x32xf32>
    %107 = tpu.matmul %64, %48, %cst_115 {dimension_numbers = #tpu.dot_dimension_numbers<[1], [0], [0], [1], [0, 0, 1, 1], [], []>} : vector<8x32xf32>, vector<32x32xf32>, vector<8x32xf32> -> vector<8x32xf32>
    %108 = vector.broadcast %60 : vector<1x32xf32> to vector<8x32xf32>
    %109 = arith.addf %107, %108 : vector<8x32xf32>
    %cst_116 = arith.constant dense<0.000000e+00> : vector<8x32xf32>
    %110 = tpu.matmul %64, %50, %cst_116 {dimension_numbers = #tpu.dot_dimension_numbers<[1], [0], [0], [1], [0, 0, 1, 1], [], []>} : vector<8x32xf32>, vector<32x32xf32>, vector<8x32xf32> -> vector<8x32xf32>
    %111 = vector.broadcast %62 : vector<1x32xf32> to vector<8x32xf32>
    %112 = arith.addf %110, %111 : vector<8x32xf32>
    %113 = arith.addf %99, %106 : vector<8x32xf32>
    %114 = arith.negf %113 : vector<8x32xf32>
    %115 = math.exp %114 : vector<8x32xf32>
    %cst_117 = arith.constant 1.000000e+00 : f32
    %116 = vector.broadcast %cst_117 : f32 to vector<8x32xf32>
    %117 = arith.addf %116, %115 : vector<8x32xf32>
    %118 = arith.divf %116, %117 : vector<8x32xf32>
    %119 = arith.addf %101, %109 : vector<8x32xf32>
    %120 = arith.negf %119 : vector<8x32xf32>
    %121 = math.exp %120 : vector<8x32xf32>
    %cst_118 = arith.constant 1.000000e+00 : f32
    %122 = vector.broadcast %cst_118 : f32 to vector<8x32xf32>
    %123 = arith.addf %122, %121 : vector<8x32xf32>
    %124 = arith.divf %122, %123 : vector<8x32xf32>
    %125 = arith.mulf %118, %112 : vector<8x32xf32>
    %126 = arith.addf %103, %125 : vector<8x32xf32>
    %127 = math.tanh %126 : vector<8x32xf32>
    %128 = arith.subf %64, %127 : vector<8x32xf32>
    %129 = arith.mulf %124, %128 : vector<8x32xf32>
    %130 = arith.addf %127, %129 : vector<8x32xf32>
    %c0_119 = arith.constant 0 : index
    %c0_120 = arith.constant 0 : index
    %c0_121 = arith.constant 0 : index
    %131 = vector.load %arg8[%c0_119, %c0_120, %c0_121] : memref<8x8x64xf32, #tpu.memory_space<vmem>>, vector<1x8x32xf32>
    %132 = vector.shape_cast %131 : vector<1x8x32xf32> to vector<8x32xf32>
    %133 = vector.shape_cast %97 : vector<8x32xf32> to vector<1x8x32xf32>
    tpu.vector_store %arg8[%c0_119, %c0_120, %c0_121], %133 {strides = array<i32>} : memref<8x8x64xf32, #tpu.memory_space<vmem>>, vector<1x8x32xf32>,
    %c7 = arith.constant 7 : index
    %c0_122 = arith.constant 0 : index
    %c32 = arith.constant 32 : index
    %134 = vector.load %arg8[%c7, %c0_122, %c32] : memref<8x8x64xf32, #tpu.memory_space<vmem>>, vector<1x8x32xf32>
    %135 = vector.shape_cast %134 : vector<1x8x32xf32> to vector<8x32xf32>
    %136 = vector.shape_cast %130 : vector<8x32xf32> to vector<1x8x32xf32>
    tpu.vector_store %arg8[%c7, %c0_122, %c32], %136 {strides = array<i32>} : memref<8x8x64xf32, #tpu.memory_space<vmem>>, vector<1x8x32xf32>,
    %c0_123 = arith.constant 0 : index
    %c0_124 = arith.constant 0 : index
    %c8 = arith.constant 8 : index
    %c0_125 = arith.constant 0 : index
    %137 = vector.load %arg10[%c0_123, %c0_124, %c8, %c0_125] : memref<2x3x64x32xf32, #tpu.memory_space<vmem>>, vector<1x1x8x32xf32>
    %138 = vector.shape_cast %137 : vector<1x1x8x32xf32> to vector<8x32xf32>
    %c0_126 = arith.constant 0 : index
    %c1_127 = arith.constant 1 : index
    %c8_128 = arith.constant 8 : index
    %c0_129 = arith.constant 0 : index
    %139 = vector.load %arg10[%c0_126, %c1_127, %c8_128, %c0_129] : memref<2x3x64x32xf32, #tpu.memory_space<vmem>>, vector<1x1x8x32xf32>
    %140 = vector.shape_cast %139 : vector<1x1x8x32xf32> to vector<8x32xf32>
    %c0_130 = arith.constant 0 : index
    %c2_131 = arith.constant 2 : index
    %c8_132 = arith.constant 8 : index
    %c0_133 = arith.constant 0 : index
    %141 = vector.load %arg10[%c0_130, %c2_131, %c8_132, %c0_133] : memref<2x3x64x32xf32, #tpu.memory_space<vmem>>, vector<1x1x8x32xf32>
    %142 = vector.shape_cast %141 : vector<1x1x8x32xf32> to vector<8x32xf32>
    %cst_134 = arith.constant dense<0.000000e+00> : vector<8x32xf32>
    %143 = tpu.matmul %97, %40, %cst_134 {dimension_numbers = #tpu.dot_dimension_numbers<[1], [0], [0], [1], [0, 0, 1, 1], [], []>} : vector<8x32xf32>, vector<32x32xf32>, vector<8x32xf32> -> vector<8x32xf32>
    %144 = vector.broadcast %52 : vector<1x32xf32> to vector<8x32xf32>
    %145 = arith.addf %143, %144 : vector<8x32xf32>
    %cst_135 = arith.constant dense<0.000000e+00> : vector<8x32xf32>
    %146 = tpu.matmul %97, %42, %cst_135 {dimension_numbers = #tpu.dot_dimension_numbers<[1], [0], [0], [1], [0, 0, 1, 1], [], []>} : vector<8x32xf32>, vector<32x32xf32>, vector<8x32xf32> -> vector<8x32xf32>
    %147 = vector.broadcast %54 : vector<1x32xf32> to vector<8x32xf32>
    %148 = arith.addf %146, %147 : vector<8x32xf32>
    %cst_136 = arith.constant dense<0.000000e+00> : vector<8x32xf32>
    %149 = tpu.matmul %97, %44, %cst_136 {dimension_numbers = #tpu.dot_dimension_numbers<[1], [0], [0], [1], [0, 0, 1, 1], [], []>} : vector<8x32xf32>, vector<32x32xf32>, vector<8x32xf32> -> vector<8x32xf32>
    %150 = vector.broadcast %56 : vector<1x32xf32> to vector<8x32xf32>
    %151 = arith.addf %149, %150 : vector<8x32xf32>
    %152 = arith.addf %138, %145 : vector<8x32xf32>
    %153 = arith.negf %152 : vector<8x32xf32>
    %154 = math.exp %153 : vector<8x32xf32>
    %cst_137 = arith.constant 1.000000e+00 : f32
    %155 = vector.broadcast %cst_137 : f32 to vector<8x32xf32>
    %156 = arith.addf %155, %154 : vector<8x32xf32>
    %157 = arith.divf %155, %156 : vector<8x32xf32>
    %158 = arith.addf %140, %148 : vector<8x32xf32>
    %159 = arith.negf %158 : vector<8x32xf32>
    %160 = math.exp %159 : vector<8x32xf32>
    %cst_138 = arith.constant 1.000000e+00 : f32
    %161 = vector.broadcast %cst_138 : f32 to vector<8x32xf32>
    %162 = arith.addf %161, %160 : vector<8x32xf32>
    %163 = arith.divf %161, %162 : vector<8x32xf32>
    %164 = arith.mulf %157, %151 : vector<8x32xf32>
    %165 = arith.addf %142, %164 : vector<8x32xf32>
    %166 = math.tanh %165 : vector<8x32xf32>
    %167 = arith.subf %97, %166 : vector<8x32xf32>
    %168 = arith.mulf %163, %167 : vector<8x32xf32>
    %169 = arith.addf %166, %168 : vector<8x32xf32>
    %c1_139 = arith.constant 1 : index
    %c0_140 = arith.constant 0 : index
    %c48 = arith.constant 48 : index
    %c0_141 = arith.constant 0 : index
    %170 = vector.load %arg10[%c1_139, %c0_140, %c48, %c0_141] : memref<2x3x64x32xf32, #tpu.memory_space<vmem>>, vector<1x1x8x32xf32>
    %171 = vector.shape_cast %170 : vector<1x1x8x32xf32> to vector<8x32xf32>
    %c1_142 = arith.constant 1 : index
    %c1_143 = arith.constant 1 : index
    %c48_144 = arith.constant 48 : index
    %c0_145 = arith.constant 0 : index
    %172 = vector.load %arg10[%c1_142, %c1_143, %c48_144, %c0_145] : memref<2x3x64x32xf32, #tpu.memory_space<vmem>>, vector<1x1x8x32xf32>
    %173 = vector.shape_cast %172 : vector<1x1x8x32xf32> to vector<8x32xf32>
    %c1_146 = arith.constant 1 : index
    %c2_147 = arith.constant 2 : index
    %c48_148 = arith.constant 48 : index
    %c0_149 = arith.constant 0 : index
    %174 = vector.load %arg10[%c1_146, %c2_147, %c48_148, %c0_149] : memref<2x3x64x32xf32, #tpu.memory_space<vmem>>, vector<1x1x8x32xf32>
    %175 = vector.shape_cast %174 : vector<1x1x8x32xf32> to vector<8x32xf32>
    %cst_150 = arith.constant dense<0.000000e+00> : vector<8x32xf32>
    %176 = tpu.matmul %130, %46, %cst_150 {dimension_numbers = #tpu.dot_dimension_numbers<[1], [0], [0], [1], [0, 0, 1, 1], [], []>} : vector<8x32xf32>, vector<32x32xf32>, vector<8x32xf32> -> vector<8x32xf32>
    %177 = vector.broadcast %58 : vector<1x32xf32> to vector<8x32xf32>
    %178 = arith.addf %176, %177 : vector<8x32xf32>
    %cst_151 = arith.constant dense<0.000000e+00> : vector<8x32xf32>
    %179 = tpu.matmul %130, %48, %cst_151 {dimension_numbers = #tpu.dot_dimension_numbers<[1], [0], [0], [1], [0, 0, 1, 1], [], []>} : vector<8x32xf32>, vector<32x32xf32>, vector<8x32xf32> -> vector<8x32xf32>
    %180 = vector.broadcast %60 : vector<1x32xf32> to vector<8x32xf32>
    %181 = arith.addf %179, %180 : vector<8x32xf32>
    %cst_152 = arith.constant dense<0.000000e+00> : vector<8x32xf32>
    %182 = tpu.matmul %130, %50, %cst_152 {dimension_numbers = #tpu.dot_dimension_numbers<[1], [0], [0], [1], [0, 0, 1, 1], [], []>} : vector<8x32xf32>, vector<32x32xf32>, vector<8x32xf32> -> vector<8x32xf32>
    %183 = vector.broadcast %62 : vector<1x32xf32> to vector<8x32xf32>
    %184 = arith.addf %182, %183 : vector<8x32xf32>
    %185 = arith.addf %171, %178 : vector<8x32xf32>
    %186 = arith.negf %185 : vector<8x32xf32>
    %187 = math.exp %186 : vector<8x32xf32>
    %cst_153 = arith.constant 1.000000e+00 : f32
    %188 = vector.broadcast %cst_153 : f32 to vector<8x32xf32>
    %189 = arith.addf %188, %187 : vector<8x32xf32>
    %190 = arith.divf %188, %189 : vector<8x32xf32>
    %191 = arith.addf %173, %181 : vector<8x32xf32>
    %192 = arith.negf %191 : vector<8x32xf32>
    %193 = math.exp %192 : vector<8x32xf32>
    %cst_154 = arith.constant 1.000000e+00 : f32
    %194 = vector.broadcast %cst_154 : f32 to vector<8x32xf32>
    %195 = arith.addf %194, %193 : vector<8x32xf32>
    %196 = arith.divf %194, %195 : vector<8x32xf32>
    %197 = arith.mulf %190, %184 : vector<8x32xf32>
    %198 = arith.addf %175, %197 : vector<8x32xf32>
    %199 = math.tanh %198 : vector<8x32xf32>
    %200 = arith.subf %130, %199 : vector<8x32xf32>
    %201 = arith.mulf %196, %200 : vector<8x32xf32>
    %202 = arith.addf %199, %201 : vector<8x32xf32>
    %c1_155 = arith.constant 1 : index
    %c0_156 = arith.constant 0 : index
    %c0_157 = arith.constant 0 : index
    %203 = vector.load %arg8[%c1_155, %c0_156, %c0_157] : memref<8x8x64xf32, #tpu.memory_space<vmem>>, vector<1x8x32xf32>
    %204 = vector.shape_cast %203 : vector<1x8x32xf32> to vector<8x32xf32>
    %205 = vector.shape_cast %169 : vector<8x32xf32> to vector<1x8x32xf32>
    tpu.vector_store %arg8[%c1_155, %c0_156, %c0_157], %205 {strides = array<i32>} : memref<8x8x64xf32, #tpu.memory_space<vmem>>, vector<1x8x32xf32>,
    %c6 = arith.constant 6 : index
    %c0_158 = arith.constant 0 : index
    %c32_159 = arith.constant 32 : index
    %206 = vector.load %arg8[%c6, %c0_158, %c32_159] : memref<8x8x64xf32, #tpu.memory_space<vmem>>, vector<1x8x32xf32>
    %207 = vector.shape_cast %206 : vector<1x8x32xf32> to vector<8x32xf32>
    %208 = vector.shape_cast %202 : vector<8x32xf32> to vector<1x8x32xf32>
    tpu.vector_store %arg8[%c6, %c0_158, %c32_159], %208 {strides = array<i32>} : memref<8x8x64xf32, #tpu.memory_space<vmem>>, vector<1x8x32xf32>,
    %c0_160 = arith.constant 0 : index
    %c0_161 = arith.constant 0 : index
    %c16 = arith.constant 16 : index
    %c0_162 = arith.constant 0 : index
    %209 = vector.load %arg10[%c0_160, %c0_161, %c16, %c0_162] : memref<2x3x64x32xf32, #tpu.memory_space<vmem>>, vector<1x1x8x32xf32>
    %210 = vector.shape_cast %209 : vector<1x1x8x32xf32> to vector<8x32xf32>
    %c0_163 = arith.constant 0 : index
    %c1_164 = arith.constant 1 : index
    %c16_165 = arith.constant 16 : index
    %c0_166 = arith.constant 0 : index
    %211 = vector.load %arg10[%c0_163, %c1_164, %c16_165, %c0_166] : memref<2x3x64x32xf32, #tpu.memory_space<vmem>>, vector<1x1x8x32xf32>
    %212 = vector.shape_cast %211 : vector<1x1x8x32xf32> to vector<8x32xf32>
    %c0_167 = arith.constant 0 : index
    %c2_168 = arith.constant 2 : index
    %c16_169 = arith.constant 16 : index
    %c0_170 = arith.constant 0 : index
    %213 = vector.load %arg10[%c0_167, %c2_168, %c16_169, %c0_170] : memref<2x3x64x32xf32, #tpu.memory_space<vmem>>, vector<1x1x8x32xf32>
    %214 = vector.shape_cast %213 : vector<1x1x8x32xf32> to vector<8x32xf32>
    %cst_171 = arith.constant dense<0.000000e+00> : vector<8x32xf32>
    %215 = tpu.matmul %169, %40, %cst_171 {dimension_numbers = #tpu.dot_dimension_numbers<[1], [0], [0], [1], [0, 0, 1, 1], [], []>} : vector<8x32xf32>, vector<32x32xf32>, vector<8x32xf32> -> vector<8x32xf32>
    %216 = vector.broadcast %52 : vector<1x32xf32> to vector<8x32xf32>
    %217 = arith.addf %215, %216 : vector<8x32xf32>
    %cst_172 = arith.constant dense<0.000000e+00> : vector<8x32xf32>
    %218 = tpu.matmul %169, %42, %cst_172 {dimension_numbers = #tpu.dot_dimension_numbers<[1], [0], [0], [1], [0, 0, 1, 1], [], []>} : vector<8x32xf32>, vector<32x32xf32>, vector<8x32xf32> -> vector<8x32xf32>
    %219 = vector.broadcast %54 : vector<1x32xf32> to vector<8x32xf32>
    %220 = arith.addf %218, %219 : vector<8x32xf32>
    %cst_173 = arith.constant dense<0.000000e+00> : vector<8x32xf32>
    %221 = tpu.matmul %169, %44, %cst_173 {dimension_numbers = #tpu.dot_dimension_numbers<[1], [0], [0], [1], [0, 0, 1, 1], [], []>} : vector<8x32xf32>, vector<32x32xf32>, vector<8x32xf32> -> vector<8x32xf32>
    %222 = vector.broadcast %56 : vector<1x32xf32> to vector<8x32xf32>
    %223 = arith.addf %221, %222 : vector<8x32xf32>
    %224 = arith.addf %210, %217 : vector<8x32xf32>
    %225 = arith.negf %224 : vector<8x32xf32>
    %226 = math.exp %225 : vector<8x32xf32>
    %cst_174 = arith.constant 1.000000e+00 : f32
    %227 = vector.broadcast %cst_174 : f32 to vector<8x32xf32>
    %228 = arith.addf %227, %226 : vector<8x32xf32>
    %229 = arith.divf %227, %228 : vector<8x32xf32>
    %230 = arith.addf %212, %220 : vector<8x32xf32>
    %231 = arith.negf %230 : vector<8x32xf32>
    %232 = math.exp %231 : vector<8x32xf32>
    %cst_175 = arith.constant 1.000000e+00 : f32
    %233 = vector.broadcast %cst_175 : f32 to vector<8x32xf32>
    %234 = arith.addf %233, %232 : vector<8x32xf32>
    %235 = arith.divf %233, %234 : vector<8x32xf32>
    %236 = arith.mulf %229, %223 : vector<8x32xf32>
    %237 = arith.addf %214, %236 : vector<8x32xf32>
    %238 = math.tanh %237 : vector<8x32xf32>
    %239 = arith.subf %169, %238 : vector<8x32xf32>
    %240 = arith.mulf %235, %239 : vector<8x32xf32>
    %241 = arith.addf %238, %240 : vector<8x32xf32>
    %c1_176 = arith.constant 1 : index
    %c0_177 = arith.constant 0 : index
    %c40 = arith.constant 40 : index
    %c0_178 = arith.constant 0 : index
    %242 = vector.load %arg10[%c1_176, %c0_177, %c40, %c0_178] : memref<2x3x64x32xf32, #tpu.memory_space<vmem>>, vector<1x1x8x32xf32>
    %243 = vector.shape_cast %242 : vector<1x1x8x32xf32> to vector<8x32xf32>
    %c1_179 = arith.constant 1 : index
    %c1_180 = arith.constant 1 : index
    %c40_181 = arith.constant 40 : index
    %c0_182 = arith.constant 0 : index
    %244 = vector.load %arg10[%c1_179, %c1_180, %c40_181, %c0_182] : memref<2x3x64x32xf32, #tpu.memory_space<vmem>>, vector<1x1x8x32xf32>
    %245 = vector.shape_cast %244 : vector<1x1x8x32xf32> to vector<8x32xf32>
    %c1_183 = arith.constant 1 : index
    %c2_184 = arith.constant 2 : index
    %c40_185 = arith.constant 40 : index
    %c0_186 = arith.constant 0 : index
    %246 = vector.load %arg10[%c1_183, %c2_184, %c40_185, %c0_186] : memref<2x3x64x32xf32, #tpu.memory_space<vmem>>, vector<1x1x8x32xf32>
    %247 = vector.shape_cast %246 : vector<1x1x8x32xf32> to vector<8x32xf32>
    %cst_187 = arith.constant dense<0.000000e+00> : vector<8x32xf32>
    %248 = tpu.matmul %202, %46, %cst_187 {dimension_numbers = #tpu.dot_dimension_numbers<[1], [0], [0], [1], [0, 0, 1, 1], [], []>} : vector<8x32xf32>, vector<32x32xf32>, vector<8x32xf32> -> vector<8x32xf32>
    %249 = vector.broadcast %58 : vector<1x32xf32> to vector<8x32xf32>
    %250 = arith.addf %248, %249 : vector<8x32xf32>
    %cst_188 = arith.constant dense<0.000000e+00> : vector<8x32xf32>
    %251 = tpu.matmul %202, %48, %cst_188 {dimension_numbers = #tpu.dot_dimension_numbers<[1], [0], [0], [1], [0, 0, 1, 1], [], []>} : vector<8x32xf32>, vector<32x32xf32>, vector<8x32xf32> -> vector<8x32xf32>
    %252 = vector.broadcast %60 : vector<1x32xf32> to vector<8x32xf32>
    %253 = arith.addf %251, %252 : vector<8x32xf32>
    %cst_189 = arith.constant dense<0.000000e+00> : vector<8x32xf32>
    %254 = tpu.matmul %202, %50, %cst_189 {dimension_numbers = #tpu.dot_dimension_numbers<[1], [0], [0], [1], [0, 0, 1, 1], [], []>} : vector<8x32xf32>, vector<32x32xf32>, vector<8x32xf32> -> vector<8x32xf32>
    %255 = vector.broadcast %62 : vector<1x32xf32> to vector<8x32xf32>
    %256 = arith.addf %254, %255 : vector<8x32xf32>
    %257 = arith.addf %243, %250 : vector<8x32xf32>
    %258 = arith.negf %257 : vector<8x32xf32>
    %259 = math.exp %258 : vector<8x32xf32>
    %cst_190 = arith.constant 1.000000e+00 : f32
    %260 = vector.broadcast %cst_190 : f32 to vector<8x32xf32>
    %261 = arith.addf %260, %259 : vector<8x32xf32>
    %262 = arith.divf %260, %261 : vector<8x32xf32>
    %263 = arith.addf %245, %253 : vector<8x32xf32>
    %264 = arith.negf %263 : vector<8x32xf32>
    %265 = math.exp %264 : vector<8x32xf32>
    %cst_191 = arith.constant 1.000000e+00 : f32
    %266 = vector.broadcast %cst_191 : f32 to vector<8x32xf32>
    %267 = arith.addf %266, %265 : vector<8x32xf32>
    %268 = arith.divf %266, %267 : vector<8x32xf32>
    %269 = arith.mulf %262, %256 : vector<8x32xf32>
    %270 = arith.addf %247, %269 : vector<8x32xf32>
    %271 = math.tanh %270 : vector<8x32xf32>
    %272 = arith.subf %202, %271 : vector<8x32xf32>
    %273 = arith.mulf %268, %272 : vector<8x32xf32>
    %274 = arith.addf %271, %273 : vector<8x32xf32>
    %c2_192 = arith.constant 2 : index
    %c0_193 = arith.constant 0 : index
    %c0_194 = arith.constant 0 : index
    %275 = vector.load %arg8[%c2_192, %c0_193, %c0_194] : memref<8x8x64xf32, #tpu.memory_space<vmem>>, vector<1x8x32xf32>
    %276 = vector.shape_cast %275 : vector<1x8x32xf32> to vector<8x32xf32>
    %277 = vector.shape_cast %241 : vector<8x32xf32> to vector<1x8x32xf32>
    tpu.vector_store %arg8[%c2_192, %c0_193, %c0_194], %277 {strides = array<i32>} : memref<8x8x64xf32, #tpu.memory_space<vmem>>, vector<1x8x32xf32>,
    %c5 = arith.constant 5 : index
    %c0_195 = arith.constant 0 : index
    %c32_196 = arith.constant 32 : index
    %278 = vector.load %arg8[%c5, %c0_195, %c32_196] : memref<8x8x64xf32, #tpu.memory_space<vmem>>, vector<1x8x32xf32>
    %279 = vector.shape_cast %278 : vector<1x8x32xf32> to vector<8x32xf32>
    %280 = vector.shape_cast %274 : vector<8x32xf32> to vector<1x8x32xf32>
    tpu.vector_store %arg8[%c5, %c0_195, %c32_196], %280 {strides = array<i32>} : memref<8x8x64xf32, #tpu.memory_space<vmem>>, vector<1x8x32xf32>,
    %c0_197 = arith.constant 0 : index
    %c0_198 = arith.constant 0 : index
    %c24 = arith.constant 24 : index
    %c0_199 = arith.constant 0 : index
    %281 = vector.load %arg10[%c0_197, %c0_198, %c24, %c0_199] : memref<2x3x64x32xf32, #tpu.memory_space<vmem>>, vector<1x1x8x32xf32>
    %282 = vector.shape_cast %281 : vector<1x1x8x32xf32> to vector<8x32xf32>
    %c0_200 = arith.constant 0 : index
    %c1_201 = arith.constant 1 : index
    %c24_202 = arith.constant 24 : index
    %c0_203 = arith.constant 0 : index
    %283 = vector.load %arg10[%c0_200, %c1_201, %c24_202, %c0_203] : memref<2x3x64x32xf32, #tpu.memory_space<vmem>>, vector<1x1x8x32xf32>
    %284 = vector.shape_cast %283 : vector<1x1x8x32xf32> to vector<8x32xf32>
    %c0_204 = arith.constant 0 : index
    %c2_205 = arith.constant 2 : index
    %c24_206 = arith.constant 24 : index
    %c0_207 = arith.constant 0 : index
    %285 = vector.load %arg10[%c0_204, %c2_205, %c24_206, %c0_207] : memref<2x3x64x32xf32, #tpu.memory_space<vmem>>, vector<1x1x8x32xf32>
    %286 = vector.shape_cast %285 : vector<1x1x8x32xf32> to vector<8x32xf32>
    %cst_208 = arith.constant dense<0.000000e+00> : vector<8x32xf32>
    %287 = tpu.matmul %241, %40, %cst_208 {dimension_numbers = #tpu.dot_dimension_numbers<[1], [0], [0], [1], [0, 0, 1, 1], [], []>} : vector<8x32xf32>, vector<32x32xf32>, vector<8x32xf32> -> vector<8x32xf32>
    %288 = vector.broadcast %52 : vector<1x32xf32> to vector<8x32xf32>
    %289 = arith.addf %287, %288 : vector<8x32xf32>
    %cst_209 = arith.constant dense<0.000000e+00> : vector<8x32xf32>
    %290 = tpu.matmul %241, %42, %cst_209 {dimension_numbers = #tpu.dot_dimension_numbers<[1], [0], [0], [1], [0, 0, 1, 1], [], []>} : vector<8x32xf32>, vector<32x32xf32>, vector<8x32xf32> -> vector<8x32xf32>
    %291 = vector.broadcast %54 : vector<1x32xf32> to vector<8x32xf32>
    %292 = arith.addf %290, %291 : vector<8x32xf32>
    %cst_210 = arith.constant dense<0.000000e+00> : vector<8x32xf32>
    %293 = tpu.matmul %241, %44, %cst_210 {dimension_numbers = #tpu.dot_dimension_numbers<[1], [0], [0], [1], [0, 0, 1, 1], [], []>} : vector<8x32xf32>, vector<32x32xf32>, vector<8x32xf32> -> vector<8x32xf32>
    %294 = vector.broadcast %56 : vector<1x32xf32> to vector<8x32xf32>
    %295 = arith.addf %293, %294 : vector<8x32xf32>
    %296 = arith.addf %282, %289 : vector<8x32xf32>
    %297 = arith.negf %296 : vector<8x32xf32>
    %298 = math.exp %297 : vector<8x32xf32>
    %cst_211 = arith.constant 1.000000e+00 : f32
    %299 = vector.broadcast %cst_211 : f32 to vector<8x32xf32>
    %300 = arith.addf %299, %298 : vector<8x32xf32>
    %301 = arith.divf %299, %300 : vector<8x32xf32>
    %302 = arith.addf %284, %292 : vector<8x32xf32>
    %303 = arith.negf %302 : vector<8x32xf32>
    %304 = math.exp %303 : vector<8x32xf32>
    %cst_212 = arith.constant 1.000000e+00 : f32
    %305 = vector.broadcast %cst_212 : f32 to vector<8x32xf32>
    %306 = arith.addf %305, %304 : vector<8x32xf32>
    %307 = arith.divf %305, %306 : vector<8x32xf32>
    %308 = arith.mulf %301, %295 : vector<8x32xf32>
    %309 = arith.addf %286, %308 : vector<8x32xf32>
    %310 = math.tanh %309 : vector<8x32xf32>
    %311 = arith.subf %241, %310 : vector<8x32xf32>
    %312 = arith.mulf %307, %311 : vector<8x32xf32>
    %313 = arith.addf %310, %312 : vector<8x32xf32>
    %c1_213 = arith.constant 1 : index
    %c0_214 = arith.constant 0 : index
    %c32_215 = arith.constant 32 : index
    %c0_216 = arith.constant 0 : index
    %314 = vector.load %arg10[%c1_213, %c0_214, %c32_215, %c0_216] : memref<2x3x64x32xf32, #tpu.memory_space<vmem>>, vector<1x1x8x32xf32>
    %315 = vector.shape_cast %314 : vector<1x1x8x32xf32> to vector<8x32xf32>
    %c1_217 = arith.constant 1 : index
    %c1_218 = arith.constant 1 : index
    %c32_219 = arith.constant 32 : index
    %c0_220 = arith.constant 0 : index
    %316 = vector.load %arg10[%c1_217, %c1_218, %c32_219, %c0_220] : memref<2x3x64x32xf32, #tpu.memory_space<vmem>>, vector<1x1x8x32xf32>
    %317 = vector.shape_cast %316 : vector<1x1x8x32xf32> to vector<8x32xf32>
    %c1_221 = arith.constant 1 : index
    %c2_222 = arith.constant 2 : index
    %c32_223 = arith.constant 32 : index
    %c0_224 = arith.constant 0 : index
    %318 = vector.load %arg10[%c1_221, %c2_222, %c32_223, %c0_224] : memref<2x3x64x32xf32, #tpu.memory_space<vmem>>, vector<1x1x8x32xf32>
    %319 = vector.shape_cast %318 : vector<1x1x8x32xf32> to vector<8x32xf32>
    %cst_225 = arith.constant dense<0.000000e+00> : vector<8x32xf32>
    %320 = tpu.matmul %274, %46, %cst_225 {dimension_numbers = #tpu.dot_dimension_numbers<[1], [0], [0], [1], [0, 0, 1, 1], [], []>} : vector<8x32xf32>, vector<32x32xf32>, vector<8x32xf32> -> vector<8x32xf32>
    %321 = vector.broadcast %58 : vector<1x32xf32> to vector<8x32xf32>
    %322 = arith.addf %320, %321 : vector<8x32xf32>
    %cst_226 = arith.constant dense<0.000000e+00> : vector<8x32xf32>
    %323 = tpu.matmul %274, %48, %cst_226 {dimension_numbers = #tpu.dot_dimension_numbers<[1], [0], [0], [1], [0, 0, 1, 1], [], []>} : vector<8x32xf32>, vector<32x32xf32>, vector<8x32xf32> -> vector<8x32xf32>
    %324 = vector.broadcast %60 : vector<1x32xf32> to vector<8x32xf32>
    %325 = arith.addf %323, %324 : vector<8x32xf32>
    %cst_227 = arith.constant dense<0.000000e+00> : vector<8x32xf32>
    %326 = tpu.matmul %274, %50, %cst_227 {dimension_numbers = #tpu.dot_dimension_numbers<[1], [0], [0], [1], [0, 0, 1, 1], [], []>} : vector<8x32xf32>, vector<32x32xf32>, vector<8x32xf32> -> vector<8x32xf32>
    %327 = vector.broadcast %62 : vector<1x32xf32> to vector<8x32xf32>
    %328 = arith.addf %326, %327 : vector<8x32xf32>
    %329 = arith.addf %315, %322 : vector<8x32xf32>
    %330 = arith.negf %329 : vector<8x32xf32>
    %331 = math.exp %330 : vector<8x32xf32>
    %cst_228 = arith.constant 1.000000e+00 : f32
    %332 = vector.broadcast %cst_228 : f32 to vector<8x32xf32>
    %333 = arith.addf %332, %331 : vector<8x32xf32>
    %334 = arith.divf %332, %333 : vector<8x32xf32>
    %335 = arith.addf %317, %325 : vector<8x32xf32>
    %336 = arith.negf %335 : vector<8x32xf32>
    %337 = math.exp %336 : vector<8x32xf32>
    %cst_229 = arith.constant 1.000000e+00 : f32
    %338 = vector.broadcast %cst_229 : f32 to vector<8x32xf32>
    %339 = arith.addf %338, %337 : vector<8x32xf32>
    %340 = arith.divf %338, %339 : vector<8x32xf32>
    %341 = arith.mulf %334, %328 : vector<8x32xf32>
    %342 = arith.addf %319, %341 : vector<8x32xf32>
    %343 = math.tanh %342 : vector<8x32xf32>
    %344 = arith.subf %274, %343 : vector<8x32xf32>
    %345 = arith.mulf %340, %344 : vector<8x32xf32>
    %346 = arith.addf %343, %345 : vector<8x32xf32>
    %c3 = arith.constant 3 : index
    %c0_230 = arith.constant 0 : index
    %c0_231 = arith.constant 0 : index
    %347 = vector.load %arg8[%c3, %c0_230, %c0_231] : memref<8x8x64xf32, #tpu.memory_space<vmem>>, vector<1x8x32xf32>
    %348 = vector.shape_cast %347 : vector<1x8x32xf32> to vector<8x32xf32>
    %349 = vector.shape_cast %313 : vector<8x32xf32> to vector<1x8x32xf32>
    tpu.vector_store %arg8[%c3, %c0_230, %c0_231], %349 {strides = array<i32>} : memref<8x8x64xf32, #tpu.memory_space<vmem>>, vector<1x8x32xf32>,
    %c4 = arith.constant 4 : index
    %c0_232 = arith.constant 0 : index
    %c32_233 = arith.constant 32 : index
    %350 = vector.load %arg8[%c4, %c0_232, %c32_233] : memref<8x8x64xf32, #tpu.memory_space<vmem>>, vector<1x8x32xf32>
    %351 = vector.shape_cast %350 : vector<1x8x32xf32> to vector<8x32xf32>
    %352 = vector.shape_cast %346 : vector<8x32xf32> to vector<1x8x32xf32>
    tpu.vector_store %arg8[%c4, %c0_232, %c32_233], %352 {strides = array<i32>} : memref<8x8x64xf32, #tpu.memory_space<vmem>>, vector<1x8x32xf32>,
    %c0_234 = arith.constant 0 : index
    %c0_235 = arith.constant 0 : index
    %c32_236 = arith.constant 32 : index
    %c0_237 = arith.constant 0 : index
    %353 = vector.load %arg10[%c0_234, %c0_235, %c32_236, %c0_237] : memref<2x3x64x32xf32, #tpu.memory_space<vmem>>, vector<1x1x8x32xf32>
    %354 = vector.shape_cast %353 : vector<1x1x8x32xf32> to vector<8x32xf32>
    %c0_238 = arith.constant 0 : index
    %c1_239 = arith.constant 1 : index
    %c32_240 = arith.constant 32 : index
    %c0_241 = arith.constant 0 : index
    %355 = vector.load %arg10[%c0_238, %c1_239, %c32_240, %c0_241] : memref<2x3x64x32xf32, #tpu.memory_space<vmem>>, vector<1x1x8x32xf32>
    %356 = vector.shape_cast %355 : vector<1x1x8x32xf32> to vector<8x32xf32>
    %c0_242 = arith.constant 0 : index
    %c2_243 = arith.constant 2 : index
    %c32_244 = arith.constant 32 : index
    %c0_245 = arith.constant 0 : index
    %357 = vector.load %arg10[%c0_242, %c2_243, %c32_244, %c0_245] : memref<2x3x64x32xf32, #tpu.memory_space<vmem>>, vector<1x1x8x32xf32>
    %358 = vector.shape_cast %357 : vector<1x1x8x32xf32> to vector<8x32xf32>
    %cst_246 = arith.constant dense<0.000000e+00> : vector<8x32xf32>
    %359 = tpu.matmul %313, %40, %cst_246 {dimension_numbers = #tpu.dot_dimension_numbers<[1], [0], [0], [1], [0, 0, 1, 1], [], []>} : vector<8x32xf32>, vector<32x32xf32>, vector<8x32xf32> -> vector<8x32xf32>
    %360 = vector.broadcast %52 : vector<1x32xf32> to vector<8x32xf32>
    %361 = arith.addf %359, %360 : vector<8x32xf32>
    %cst_247 = arith.constant dense<0.000000e+00> : vector<8x32xf32>
    %362 = tpu.matmul %313, %42, %cst_247 {dimension_numbers = #tpu.dot_dimension_numbers<[1], [0], [0], [1], [0, 0, 1, 1], [], []>} : vector<8x32xf32>, vector<32x32xf32>, vector<8x32xf32> -> vector<8x32xf32>
    %363 = vector.broadcast %54 : vector<1x32xf32> to vector<8x32xf32>
    %364 = arith.addf %362, %363 : vector<8x32xf32>
    %cst_248 = arith.constant dense<0.000000e+00> : vector<8x32xf32>
    %365 = tpu.matmul %313, %44, %cst_248 {dimension_numbers = #tpu.dot_dimension_numbers<[1], [0], [0], [1], [0, 0, 1, 1], [], []>} : vector<8x32xf32>, vector<32x32xf32>, vector<8x32xf32> -> vector<8x32xf32>
    %366 = vector.broadcast %56 : vector<1x32xf32> to vector<8x32xf32>
    %367 = arith.addf %365, %366 : vector<8x32xf32>
    %368 = arith.addf %354, %361 : vector<8x32xf32>
    %369 = arith.negf %368 : vector<8x32xf32>
    %370 = math.exp %369 : vector<8x32xf32>
    %cst_249 = arith.constant 1.000000e+00 : f32
    %371 = vector.broadcast %cst_249 : f32 to vector<8x32xf32>
    %372 = arith.addf %371, %370 : vector<8x32xf32>
    %373 = arith.divf %371, %372 : vector<8x32xf32>
    %374 = arith.addf %356, %364 : vector<8x32xf32>
    %375 = arith.negf %374 : vector<8x32xf32>
    %376 = math.exp %375 : vector<8x32xf32>
    %cst_250 = arith.constant 1.000000e+00 : f32
    %377 = vector.broadcast %cst_250 : f32 to vector<8x32xf32>
    %378 = arith.addf %377, %376 : vector<8x32xf32>
    %379 = arith.divf %377, %378 : vector<8x32xf32>
    %380 = arith.mulf %373, %367 : vector<8x32xf32>
    %381 = arith.addf %358, %380 : vector<8x32xf32>
    %382 = math.tanh %381 : vector<8x32xf32>
    %383 = arith.subf %313, %382 : vector<8x32xf32>
    %384 = arith.mulf %379, %383 : vector<8x32xf32>
    %385 = arith.addf %382, %384 : vector<8x32xf32>
    %c1_251 = arith.constant 1 : index
    %c0_252 = arith.constant 0 : index
    %c24_253 = arith.constant 24 : index
    %c0_254 = arith.constant 0 : index
    %386 = vector.load %arg10[%c1_251, %c0_252, %c24_253, %c0_254] : memref<2x3x64x32xf32, #tpu.memory_space<vmem>>, vector<1x1x8x32xf32>
    %387 = vector.shape_cast %386 : vector<1x1x8x32xf32> to vector<8x32xf32>
    %c1_255 = arith.constant 1 : index
    %c1_256 = arith.constant 1 : index
    %c24_257 = arith.constant 24 : index
    %c0_258 = arith.constant 0 : index
    %388 = vector.load %arg10[%c1_255, %c1_256, %c24_257, %c0_258] : memref<2x3x64x32xf32, #tpu.memory_space<vmem>>, vector<1x1x8x32xf32>
    %389 = vector.shape_cast %388 : vector<1x1x8x32xf32> to vector<8x32xf32>
    %c1_259 = arith.constant 1 : index
    %c2_260 = arith.constant 2 : index
    %c24_261 = arith.constant 24 : index
    %c0_262 = arith.constant 0 : index
    %390 = vector.load %arg10[%c1_259, %c2_260, %c24_261, %c0_262] : memref<2x3x64x32xf32, #tpu.memory_space<vmem>>, vector<1x1x8x32xf32>
    %391 = vector.shape_cast %390 : vector<1x1x8x32xf32> to vector<8x32xf32>
    %cst_263 = arith.constant dense<0.000000e+00> : vector<8x32xf32>
    %392 = tpu.matmul %346, %46, %cst_263 {dimension_numbers = #tpu.dot_dimension_numbers<[1], [0], [0], [1], [0, 0, 1, 1], [], []>} : vector<8x32xf32>, vector<32x32xf32>, vector<8x32xf32> -> vector<8x32xf32>
    %393 = vector.broadcast %58 : vector<1x32xf32> to vector<8x32xf32>
    %394 = arith.addf %392, %393 : vector<8x32xf32>
    %cst_264 = arith.constant dense<0.000000e+00> : vector<8x32xf32>
    %395 = tpu.matmul %346, %48, %cst_264 {dimension_numbers = #tpu.dot_dimension_numbers<[1], [0], [0], [1], [0, 0, 1, 1], [], []>} : vector<8x32xf32>, vector<32x32xf32>, vector<8x32xf32> -> vector<8x32xf32>
    %396 = vector.broadcast %60 : vector<1x32xf32> to vector<8x32xf32>
    %397 = arith.addf %395, %396 : vector<8x32xf32>
    %cst_265 = arith.constant dense<0.000000e+00> : vector<8x32xf32>
    %398 = tpu.matmul %346, %50, %cst_265 {dimension_numbers = #tpu.dot_dimension_numbers<[1], [0], [0], [1], [0, 0, 1, 1], [], []>} : vector<8x32xf32>, vector<32x32xf32>, vector<8x32xf32> -> vector<8x32xf32>
    %399 = vector.broadcast %62 : vector<1x32xf32> to vector<8x32xf32>
    %400 = arith.addf %398, %399 : vector<8x32xf32>
    %401 = arith.addf %387, %394 : vector<8x32xf32>
    %402 = arith.negf %401 : vector<8x32xf32>
    %403 = math.exp %402 : vector<8x32xf32>
    %cst_266 = arith.constant 1.000000e+00 : f32
    %404 = vector.broadcast %cst_266 : f32 to vector<8x32xf32>
    %405 = arith.addf %404, %403 : vector<8x32xf32>
    %406 = arith.divf %404, %405 : vector<8x32xf32>
    %407 = arith.addf %389, %397 : vector<8x32xf32>
    %408 = arith.negf %407 : vector<8x32xf32>
    %409 = math.exp %408 : vector<8x32xf32>
    %cst_267 = arith.constant 1.000000e+00 : f32
    %410 = vector.broadcast %cst_267 : f32 to vector<8x32xf32>
    %411 = arith.addf %410, %409 : vector<8x32xf32>
    %412 = arith.divf %410, %411 : vector<8x32xf32>
    %413 = arith.mulf %406, %400 : vector<8x32xf32>
    %414 = arith.addf %391, %413 : vector<8x32xf32>
    %415 = math.tanh %414 : vector<8x32xf32>
    %416 = arith.subf %346, %415 : vector<8x32xf32>
    %417 = arith.mulf %412, %416 : vector<8x32xf32>
    %418 = arith.addf %415, %417 : vector<8x32xf32>
    %c4_268 = arith.constant 4 : index
    %c0_269 = arith.constant 0 : index
    %c0_270 = arith.constant 0 : index
    %419 = vector.load %arg8[%c4_268, %c0_269, %c0_270] : memref<8x8x64xf32, #tpu.memory_space<vmem>>, vector<1x8x32xf32>
    %420 = vector.shape_cast %419 : vector<1x8x32xf32> to vector<8x32xf32>
    %421 = vector.shape_cast %385 : vector<8x32xf32> to vector<1x8x32xf32>
    tpu.vector_store %arg8[%c4_268, %c0_269, %c0_270], %421 {strides = array<i32>} : memref<8x8x64xf32, #tpu.memory_space<vmem>>, vector<1x8x32xf32>,
    %c3_271 = arith.constant 3 : index
    %c0_272 = arith.constant 0 : index
    %c32_273 = arith.constant 32 : index
    %422 = vector.load %arg8[%c3_271, %c0_272, %c32_273] : memref<8x8x64xf32, #tpu.memory_space<vmem>>, vector<1x8x32xf32>
    %423 = vector.shape_cast %422 : vector<1x8x32xf32> to vector<8x32xf32>
    %424 = vector.shape_cast %418 : vector<8x32xf32> to vector<1x8x32xf32>
    tpu.vector_store %arg8[%c3_271, %c0_272, %c32_273], %424 {strides = array<i32>} : memref<8x8x64xf32, #tpu.memory_space<vmem>>, vector<1x8x32xf32>,
    %c0_274 = arith.constant 0 : index
    %c0_275 = arith.constant 0 : index
    %c40_276 = arith.constant 40 : index
    %c0_277 = arith.constant 0 : index
    %425 = vector.load %arg10[%c0_274, %c0_275, %c40_276, %c0_277] : memref<2x3x64x32xf32, #tpu.memory_space<vmem>>, vector<1x1x8x32xf32>
    %426 = vector.shape_cast %425 : vector<1x1x8x32xf32> to vector<8x32xf32>
    %c0_278 = arith.constant 0 : index
    %c1_279 = arith.constant 1 : index
    %c40_280 = arith.constant 40 : index
    %c0_281 = arith.constant 0 : index
    %427 = vector.load %arg10[%c0_278, %c1_279, %c40_280, %c0_281] : memref<2x3x64x32xf32, #tpu.memory_space<vmem>>, vector<1x1x8x32xf32>
    %428 = vector.shape_cast %427 : vector<1x1x8x32xf32> to vector<8x32xf32>
    %c0_282 = arith.constant 0 : index
    %c2_283 = arith.constant 2 : index
    %c40_284 = arith.constant 40 : index
    %c0_285 = arith.constant 0 : index
    %429 = vector.load %arg10[%c0_282, %c2_283, %c40_284, %c0_285] : memref<2x3x64x32xf32, #tpu.memory_space<vmem>>, vector<1x1x8x32xf32>
    %430 = vector.shape_cast %429 : vector<1x1x8x32xf32> to vector<8x32xf32>
    %cst_286 = arith.constant dense<0.000000e+00> : vector<8x32xf32>
    %431 = tpu.matmul %385, %40, %cst_286 {dimension_numbers = #tpu.dot_dimension_numbers<[1], [0], [0], [1], [0, 0, 1, 1], [], []>} : vector<8x32xf32>, vector<32x32xf32>, vector<8x32xf32> -> vector<8x32xf32>
    %432 = vector.broadcast %52 : vector<1x32xf32> to vector<8x32xf32>
    %433 = arith.addf %431, %432 : vector<8x32xf32>
    %cst_287 = arith.constant dense<0.000000e+00> : vector<8x32xf32>
    %434 = tpu.matmul %385, %42, %cst_287 {dimension_numbers = #tpu.dot_dimension_numbers<[1], [0], [0], [1], [0, 0, 1, 1], [], []>} : vector<8x32xf32>, vector<32x32xf32>, vector<8x32xf32> -> vector<8x32xf32>
    %435 = vector.broadcast %54 : vector<1x32xf32> to vector<8x32xf32>
    %436 = arith.addf %434, %435 : vector<8x32xf32>
    %cst_288 = arith.constant dense<0.000000e+00> : vector<8x32xf32>
    %437 = tpu.matmul %385, %44, %cst_288 {dimension_numbers = #tpu.dot_dimension_numbers<[1], [0], [0], [1], [0, 0, 1, 1], [], []>} : vector<8x32xf32>, vector<32x32xf32>, vector<8x32xf32> -> vector<8x32xf32>
    %438 = vector.broadcast %56 : vector<1x32xf32> to vector<8x32xf32>
    %439 = arith.addf %437, %438 : vector<8x32xf32>
    %440 = arith.addf %426, %433 : vector<8x32xf32>
    %441 = arith.negf %440 : vector<8x32xf32>
    %442 = math.exp %441 : vector<8x32xf32>
    %cst_289 = arith.constant 1.000000e+00 : f32
    %443 = vector.broadcast %cst_289 : f32 to vector<8x32xf32>
    %444 = arith.addf %443, %442 : vector<8x32xf32>
    %445 = arith.divf %443, %444 : vector<8x32xf32>
    %446 = arith.addf %428, %436 : vector<8x32xf32>
    %447 = arith.negf %446 : vector<8x32xf32>
    %448 = math.exp %447 : vector<8x32xf32>
    %cst_290 = arith.constant 1.000000e+00 : f32
    %449 = vector.broadcast %cst_290 : f32 to vector<8x32xf32>
    %450 = arith.addf %449, %448 : vector<8x32xf32>
    %451 = arith.divf %449, %450 : vector<8x32xf32>
    %452 = arith.mulf %445, %439 : vector<8x32xf32>
    %453 = arith.addf %430, %452 : vector<8x32xf32>
    %454 = math.tanh %453 : vector<8x32xf32>
    %455 = arith.subf %385, %454 : vector<8x32xf32>
    %456 = arith.mulf %451, %455 : vector<8x32xf32>
    %457 = arith.addf %454, %456 : vector<8x32xf32>
    %c1_291 = arith.constant 1 : index
    %c0_292 = arith.constant 0 : index
    %c16_293 = arith.constant 16 : index
    %c0_294 = arith.constant 0 : index
    %458 = vector.load %arg10[%c1_291, %c0_292, %c16_293, %c0_294] : memref<2x3x64x32xf32, #tpu.memory_space<vmem>>, vector<1x1x8x32xf32>
    %459 = vector.shape_cast %458 : vector<1x1x8x32xf32> to vector<8x32xf32>
    %c1_295 = arith.constant 1 : index
    %c1_296 = arith.constant 1 : index
    %c16_297 = arith.constant 16 : index
    %c0_298 = arith.constant 0 : index
    %460 = vector.load %arg10[%c1_295, %c1_296, %c16_297, %c0_298] : memref<2x3x64x32xf32, #tpu.memory_space<vmem>>, vector<1x1x8x32xf32>
    %461 = vector.shape_cast %460 : vector<1x1x8x32xf32> to vector<8x32xf32>
    %c1_299 = arith.constant 1 : index
    %c2_300 = arith.constant 2 : index
    %c16_301 = arith.constant 16 : index
    %c0_302 = arith.constant 0 : index
    %462 = vector.load %arg10[%c1_299, %c2_300, %c16_301, %c0_302] : memref<2x3x64x32xf32, #tpu.memory_space<vmem>>, vector<1x1x8x32xf32>
    %463 = vector.shape_cast %462 : vector<1x1x8x32xf32> to vector<8x32xf32>
    %cst_303 = arith.constant dense<0.000000e+00> : vector<8x32xf32>
    %464 = tpu.matmul %418, %46, %cst_303 {dimension_numbers = #tpu.dot_dimension_numbers<[1], [0], [0], [1], [0, 0, 1, 1], [], []>} : vector<8x32xf32>, vector<32x32xf32>, vector<8x32xf32> -> vector<8x32xf32>
    %465 = vector.broadcast %58 : vector<1x32xf32> to vector<8x32xf32>
    %466 = arith.addf %464, %465 : vector<8x32xf32>
    %cst_304 = arith.constant dense<0.000000e+00> : vector<8x32xf32>
    %467 = tpu.matmul %418, %48, %cst_304 {dimension_numbers = #tpu.dot_dimension_numbers<[1], [0], [0], [1], [0, 0, 1, 1], [], []>} : vector<8x32xf32>, vector<32x32xf32>, vector<8x32xf32> -> vector<8x32xf32>
    %468 = vector.broadcast %60 : vector<1x32xf32> to vector<8x32xf32>
    %469 = arith.addf %467, %468 : vector<8x32xf32>
    %cst_305 = arith.constant dense<0.000000e+00> : vector<8x32xf32>
    %470 = tpu.matmul %418, %50, %cst_305 {dimension_numbers = #tpu.dot_dimension_numbers<[1], [0], [0], [1], [0, 0, 1, 1], [], []>} : vector<8x32xf32>, vector<32x32xf32>, vector<8x32xf32> -> vector<8x32xf32>
    %471 = vector.broadcast %62 : vector<1x32xf32> to vector<8x32xf32>
    %472 = arith.addf %470, %471 : vector<8x32xf32>
    %473 = arith.addf %459, %466 : vector<8x32xf32>
    %474 = arith.negf %473 : vector<8x32xf32>
    %475 = math.exp %474 : vector<8x32xf32>
    %cst_306 = arith.constant 1.000000e+00 : f32
    %476 = vector.broadcast %cst_306 : f32 to vector<8x32xf32>
    %477 = arith.addf %476, %475 : vector<8x32xf32>
    %478 = arith.divf %476, %477 : vector<8x32xf32>
    %479 = arith.addf %461, %469 : vector<8x32xf32>
    %480 = arith.negf %479 : vector<8x32xf32>
    %481 = math.exp %480 : vector<8x32xf32>
    %cst_307 = arith.constant 1.000000e+00 : f32
    %482 = vector.broadcast %cst_307 : f32 to vector<8x32xf32>
    %483 = arith.addf %482, %481 : vector<8x32xf32>
    %484 = arith.divf %482, %483 : vector<8x32xf32>
    %485 = arith.mulf %478, %472 : vector<8x32xf32>
    %486 = arith.addf %463, %485 : vector<8x32xf32>
    %487 = math.tanh %486 : vector<8x32xf32>
    %488 = arith.subf %418, %487 : vector<8x32xf32>
    %489 = arith.mulf %484, %488 : vector<8x32xf32>
    %490 = arith.addf %487, %489 : vector<8x32xf32>
    %c5_308 = arith.constant 5 : index
    %c0_309 = arith.constant 0 : index
    %c0_310 = arith.constant 0 : index
    %491 = vector.load %arg8[%c5_308, %c0_309, %c0_310] : memref<8x8x64xf32, #tpu.memory_space<vmem>>, vector<1x8x32xf32>
    %492 = vector.shape_cast %491 : vector<1x8x32xf32> to vector<8x32xf32>
    %493 = vector.shape_cast %457 : vector<8x32xf32> to vector<1x8x32xf32>
    tpu.vector_store %arg8[%c5_308, %c0_309, %c0_310], %493 {strides = array<i32>} : memref<8x8x64xf32, #tpu.memory_space<vmem>>, vector<1x8x32xf32>,
    %c2_311 = arith.constant 2 : index
    %c0_312 = arith.constant 0 : index
    %c32_313 = arith.constant 32 : index
    %494 = vector.load %arg8[%c2_311, %c0_312, %c32_313] : memref<8x8x64xf32, #tpu.memory_space<vmem>>, vector<1x8x32xf32>
    %495 = vector.shape_cast %494 : vector<1x8x32xf32> to vector<8x32xf32>
    %496 = vector.shape_cast %490 : vector<8x32xf32> to vector<1x8x32xf32>
    tpu.vector_store %arg8[%c2_311, %c0_312, %c32_313], %496 {strides = array<i32>} : memref<8x8x64xf32, #tpu.memory_space<vmem>>, vector<1x8x32xf32>,
    %c0_314 = arith.constant 0 : index
    %c0_315 = arith.constant 0 : index
    %c48_316 = arith.constant 48 : index
    %c0_317 = arith.constant 0 : index
    %497 = vector.load %arg10[%c0_314, %c0_315, %c48_316, %c0_317] : memref<2x3x64x32xf32, #tpu.memory_space<vmem>>, vector<1x1x8x32xf32>
    %498 = vector.shape_cast %497 : vector<1x1x8x32xf32> to vector<8x32xf32>
    %c0_318 = arith.constant 0 : index
    %c1_319 = arith.constant 1 : index
    %c48_320 = arith.constant 48 : index
    %c0_321 = arith.constant 0 : index
    %499 = vector.load %arg10[%c0_318, %c1_319, %c48_320, %c0_321] : memref<2x3x64x32xf32, #tpu.memory_space<vmem>>, vector<1x1x8x32xf32>
    %500 = vector.shape_cast %499 : vector<1x1x8x32xf32> to vector<8x32xf32>
    %c0_322 = arith.constant 0 : index
    %c2_323 = arith.constant 2 : index
    %c48_324 = arith.constant 48 : index
    %c0_325 = arith.constant 0 : index
    %501 = vector.load %arg10[%c0_322, %c2_323, %c48_324, %c0_325] : memref<2x3x64x32xf32, #tpu.memory_space<vmem>>, vector<1x1x8x32xf32>
    %502 = vector.shape_cast %501 : vector<1x1x8x32xf32> to vector<8x32xf32>
    %cst_326 = arith.constant dense<0.000000e+00> : vector<8x32xf32>
    %503 = tpu.matmul %457, %40, %cst_326 {dimension_numbers = #tpu.dot_dimension_numbers<[1], [0], [0], [1], [0, 0, 1, 1], [], []>} : vector<8x32xf32>, vector<32x32xf32>, vector<8x32xf32> -> vector<8x32xf32>
    %504 = vector.broadcast %52 : vector<1x32xf32> to vector<8x32xf32>
    %505 = arith.addf %503, %504 : vector<8x32xf32>
    %cst_327 = arith.constant dense<0.000000e+00> : vector<8x32xf32>
    %506 = tpu.matmul %457, %42, %cst_327 {dimension_numbers = #tpu.dot_dimension_numbers<[1], [0], [0], [1], [0, 0, 1, 1], [], []>} : vector<8x32xf32>, vector<32x32xf32>, vector<8x32xf32> -> vector<8x32xf32>
    %507 = vector.broadcast %54 : vector<1x32xf32> to vector<8x32xf32>
    %508 = arith.addf %506, %507 : vector<8x32xf32>
    %cst_328 = arith.constant dense<0.000000e+00> : vector<8x32xf32>
    %509 = tpu.matmul %457, %44, %cst_328 {dimension_numbers = #tpu.dot_dimension_numbers<[1], [0], [0], [1], [0, 0, 1, 1], [], []>} : vector<8x32xf32>, vector<32x32xf32>, vector<8x32xf32> -> vector<8x32xf32>
    %510 = vector.broadcast %56 : vector<1x32xf32> to vector<8x32xf32>
    %511 = arith.addf %509, %510 : vector<8x32xf32>
    %512 = arith.addf %498, %505 : vector<8x32xf32>
    %513 = arith.negf %512 : vector<8x32xf32>
    %514 = math.exp %513 : vector<8x32xf32>
    %cst_329 = arith.constant 1.000000e+00 : f32
    %515 = vector.broadcast %cst_329 : f32 to vector<8x32xf32>
    %516 = arith.addf %515, %514 : vector<8x32xf32>
    %517 = arith.divf %515, %516 : vector<8x32xf32>
    %518 = arith.addf %500, %508 : vector<8x32xf32>
    %519 = arith.negf %518 : vector<8x32xf32>
    %520 = math.exp %519 : vector<8x32xf32>
    %cst_330 = arith.constant 1.000000e+00 : f32
    %521 = vector.broadcast %cst_330 : f32 to vector<8x32xf32>
    %522 = arith.addf %521, %520 : vector<8x32xf32>
    %523 = arith.divf %521, %522 : vector<8x32xf32>
    %524 = arith.mulf %517, %511 : vector<8x32xf32>
    %525 = arith.addf %502, %524 : vector<8x32xf32>
    %526 = math.tanh %525 : vector<8x32xf32>
    %527 = arith.subf %457, %526 : vector<8x32xf32>
    %528 = arith.mulf %523, %527 : vector<8x32xf32>
    %529 = arith.addf %526, %528 : vector<8x32xf32>
    %c1_331 = arith.constant 1 : index
    %c0_332 = arith.constant 0 : index
    %c8_333 = arith.constant 8 : index
    %c0_334 = arith.constant 0 : index
    %530 = vector.load %arg10[%c1_331, %c0_332, %c8_333, %c0_334] : memref<2x3x64x32xf32, #tpu.memory_space<vmem>>, vector<1x1x8x32xf32>
    %531 = vector.shape_cast %530 : vector<1x1x8x32xf32> to vector<8x32xf32>
    %c1_335 = arith.constant 1 : index
    %c1_336 = arith.constant 1 : index
    %c8_337 = arith.constant 8 : index
    %c0_338 = arith.constant 0 : index
    %532 = vector.load %arg10[%c1_335, %c1_336, %c8_337, %c0_338] : memref<2x3x64x32xf32, #tpu.memory_space<vmem>>, vector<1x1x8x32xf32>
    %533 = vector.shape_cast %532 : vector<1x1x8x32xf32> to vector<8x32xf32>
    %c1_339 = arith.constant 1 : index
    %c2_340 = arith.constant 2 : index
    %c8_341 = arith.constant 8 : index
    %c0_342 = arith.constant 0 : index
    %534 = vector.load %arg10[%c1_339, %c2_340, %c8_341, %c0_342] : memref<2x3x64x32xf32, #tpu.memory_space<vmem>>, vector<1x1x8x32xf32>
    %535 = vector.shape_cast %534 : vector<1x1x8x32xf32> to vector<8x32xf32>
    %cst_343 = arith.constant dense<0.000000e+00> : vector<8x32xf32>
    %536 = tpu.matmul %490, %46, %cst_343 {dimension_numbers = #tpu.dot_dimension_numbers<[1], [0], [0], [1], [0, 0, 1, 1], [], []>} : vector<8x32xf32>, vector<32x32xf32>, vector<8x32xf32> -> vector<8x32xf32>
    %537 = vector.broadcast %58 : vector<1x32xf32> to vector<8x32xf32>
    %538 = arith.addf %536, %537 : vector<8x32xf32>
    %cst_344 = arith.constant dense<0.000000e+00> : vector<8x32xf32>
    %539 = tpu.matmul %490, %48, %cst_344 {dimension_numbers = #tpu.dot_dimension_numbers<[1], [0], [0], [1], [0, 0, 1, 1], [], []>} : vector<8x32xf32>, vector<32x32xf32>, vector<8x32xf32> -> vector<8x32xf32>
    %540 = vector.broadcast %60 : vector<1x32xf32> to vector<8x32xf32>
    %541 = arith.addf %539, %540 : vector<8x32xf32>
    %cst_345 = arith.constant dense<0.000000e+00> : vector<8x32xf32>
    %542 = tpu.matmul %490, %50, %cst_345 {dimension_numbers = #tpu.dot_dimension_numbers<[1], [0], [0], [1], [0, 0, 1, 1], [], []>} : vector<8x32xf32>, vector<32x32xf32>, vector<8x32xf32> -> vector<8x32xf32>
    %543 = vector.broadcast %62 : vector<1x32xf32> to vector<8x32xf32>
    %544 = arith.addf %542, %543 : vector<8x32xf32>
    %545 = arith.addf %531, %538 : vector<8x32xf32>
    %546 = arith.negf %545 : vector<8x32xf32>
    %547 = math.exp %546 : vector<8x32xf32>
    %cst_346 = arith.constant 1.000000e+00 : f32
    %548 = vector.broadcast %cst_346 : f32 to vector<8x32xf32>
    %549 = arith.addf %548, %547 : vector<8x32xf32>
    %550 = arith.divf %548, %549 : vector<8x32xf32>
    %551 = arith.addf %533, %541 : vector<8x32xf32>
    %552 = arith.negf %551 : vector<8x32xf32>
    %553 = math.exp %552 : vector<8x32xf32>
    %cst_347 = arith.constant 1.000000e+00 : f32
    %554 = vector.broadcast %cst_347 : f32 to vector<8x32xf32>
    %555 = arith.addf %554, %553 : vector<8x32xf32>
    %556 = arith.divf %554, %555 : vector<8x32xf32>
    %557 = arith.mulf %550, %544 : vector<8x32xf32>
    %558 = arith.addf %535, %557 : vector<8x32xf32>
    %559 = math.tanh %558 : vector<8x32xf32>
    %560 = arith.subf %490, %559 : vector<8x32xf32>
    %561 = arith.mulf %556, %560 : vector<8x32xf32>
    %562 = arith.addf %559, %561 : vector<8x32xf32>
    %c6_348 = arith.constant 6 : index
    %c0_349 = arith.constant 0 : index
    %c0_350 = arith.constant 0 : index
    %563 = vector.load %arg8[%c6_348, %c0_349, %c0_350] : memref<8x8x64xf32, #tpu.memory_space<vmem>>, vector<1x8x32xf32>
    %564 = vector.shape_cast %563 : vector<1x8x32xf32> to vector<8x32xf32>
    %565 = vector.shape_cast %529 : vector<8x32xf32> to vector<1x8x32xf32>
    tpu.vector_store %arg8[%c6_348, %c0_349, %c0_350], %565 {strides = array<i32>} : memref<8x8x64xf32, #tpu.memory_space<vmem>>, vector<1x8x32xf32>,
    %c1_351 = arith.constant 1 : index
    %c0_352 = arith.constant 0 : index
    %c32_353 = arith.constant 32 : index
    %566 = vector.load %arg8[%c1_351, %c0_352, %c32_353] : memref<8x8x64xf32, #tpu.memory_space<vmem>>, vector<1x8x32xf32>
    %567 = vector.shape_cast %566 : vector<1x8x32xf32> to vector<8x32xf32>
    %568 = vector.shape_cast %562 : vector<8x32xf32> to vector<1x8x32xf32>
    tpu.vector_store %arg8[%c1_351, %c0_352, %c32_353], %568 {strides = array<i32>} : memref<8x8x64xf32, #tpu.memory_space<vmem>>, vector<1x8x32xf32>,
    %c0_354 = arith.constant 0 : index
    %c0_355 = arith.constant 0 : index
    %c56_356 = arith.constant 56 : index
    %c0_357 = arith.constant 0 : index
    %569 = vector.load %arg10[%c0_354, %c0_355, %c56_356, %c0_357] : memref<2x3x64x32xf32, #tpu.memory_space<vmem>>, vector<1x1x8x32xf32>
    %570 = vector.shape_cast %569 : vector<1x1x8x32xf32> to vector<8x32xf32>
    %c0_358 = arith.constant 0 : index
    %c1_359 = arith.constant 1 : index
    %c56_360 = arith.constant 56 : index
    %c0_361 = arith.constant 0 : index
    %571 = vector.load %arg10[%c0_358, %c1_359, %c56_360, %c0_361] : memref<2x3x64x32xf32, #tpu.memory_space<vmem>>, vector<1x1x8x32xf32>
    %572 = vector.shape_cast %571 : vector<1x1x8x32xf32> to vector<8x32xf32>
    %c0_362 = arith.constant 0 : index
    %c2_363 = arith.constant 2 : index
    %c56_364 = arith.constant 56 : index
    %c0_365 = arith.constant 0 : index
    %573 = vector.load %arg10[%c0_362, %c2_363, %c56_364, %c0_365] : memref<2x3x64x32xf32, #tpu.memory_space<vmem>>, vector<1x1x8x32xf32>
    %574 = vector.shape_cast %573 : vector<1x1x8x32xf32> to vector<8x32xf32>
    %cst_366 = arith.constant dense<0.000000e+00> : vector<8x32xf32>
    %575 = tpu.matmul %529, %40, %cst_366 {dimension_numbers = #tpu.dot_dimension_numbers<[1], [0], [0], [1], [0, 0, 1, 1], [], []>} : vector<8x32xf32>, vector<32x32xf32>, vector<8x32xf32> -> vector<8x32xf32>
    %576 = vector.broadcast %52 : vector<1x32xf32> to vector<8x32xf32>
    %577 = arith.addf %575, %576 : vector<8x32xf32>
    %cst_367 = arith.constant dense<0.000000e+00> : vector<8x32xf32>
    %578 = tpu.matmul %529, %42, %cst_367 {dimension_numbers = #tpu.dot_dimension_numbers<[1], [0], [0], [1], [0, 0, 1, 1], [], []>} : vector<8x32xf32>, vector<32x32xf32>, vector<8x32xf32> -> vector<8x32xf32>
    %579 = vector.broadcast %54 : vector<1x32xf32> to vector<8x32xf32>
    %580 = arith.addf %578, %579 : vector<8x32xf32>
    %cst_368 = arith.constant dense<0.000000e+00> : vector<8x32xf32>
    %581 = tpu.matmul %529, %44, %cst_368 {dimension_numbers = #tpu.dot_dimension_numbers<[1], [0], [0], [1], [0, 0, 1, 1], [], []>} : vector<8x32xf32>, vector<32x32xf32>, vector<8x32xf32> -> vector<8x32xf32>
    %582 = vector.broadcast %56 : vector<1x32xf32> to vector<8x32xf32>
    %583 = arith.addf %581, %582 : vector<8x32xf32>
    %584 = arith.addf %570, %577 : vector<8x32xf32>
    %585 = arith.negf %584 : vector<8x32xf32>
    %586 = math.exp %585 : vector<8x32xf32>
    %cst_369 = arith.constant 1.000000e+00 : f32
    %587 = vector.broadcast %cst_369 : f32 to vector<8x32xf32>
    %588 = arith.addf %587, %586 : vector<8x32xf32>
    %589 = arith.divf %587, %588 : vector<8x32xf32>
    %590 = arith.addf %572, %580 : vector<8x32xf32>
    %591 = arith.negf %590 : vector<8x32xf32>
    %592 = math.exp %591 : vector<8x32xf32>
    %cst_370 = arith.constant 1.000000e+00 : f32
    %593 = vector.broadcast %cst_370 : f32 to vector<8x32xf32>
    %594 = arith.addf %593, %592 : vector<8x32xf32>
    %595 = arith.divf %593, %594 : vector<8x32xf32>
    %596 = arith.mulf %589, %583 : vector<8x32xf32>
    %597 = arith.addf %574, %596 : vector<8x32xf32>
    %598 = math.tanh %597 : vector<8x32xf32>
    %599 = arith.subf %529, %598 : vector<8x32xf32>
    %600 = arith.mulf %595, %599 : vector<8x32xf32>
    %601 = arith.addf %598, %600 : vector<8x32xf32>
    %c1_371 = arith.constant 1 : index
    %c0_372 = arith.constant 0 : index
    %c0_373 = arith.constant 0 : index
    %c0_374 = arith.constant 0 : index
    %602 = vector.load %arg10[%c1_371, %c0_372, %c0_373, %c0_374] : memref<2x3x64x32xf32, #tpu.memory_space<vmem>>, vector<1x1x8x32xf32>
    %603 = vector.shape_cast %602 : vector<1x1x8x32xf32> to vector<8x32xf32>
    %c1_375 = arith.constant 1 : index
    %c1_376 = arith.constant 1 : index
    %c0_377 = arith.constant 0 : index
    %c0_378 = arith.constant 0 : index
    %604 = vector.load %arg10[%c1_375, %c1_376, %c0_377, %c0_378] : memref<2x3x64x32xf32, #tpu.memory_space<vmem>>, vector<1x1x8x32xf32>
    %605 = vector.shape_cast %604 : vector<1x1x8x32xf32> to vector<8x32xf32>
    %c1_379 = arith.constant 1 : index
    %c2_380 = arith.constant 2 : index
    %c0_381 = arith.constant 0 : index
    %c0_382 = arith.constant 0 : index
    %606 = vector.load %arg10[%c1_379, %c2_380, %c0_381, %c0_382] : memref<2x3x64x32xf32, #tpu.memory_space<vmem>>, vector<1x1x8x32xf32>
    %607 = vector.shape_cast %606 : vector<1x1x8x32xf32> to vector<8x32xf32>
    %cst_383 = arith.constant dense<0.000000e+00> : vector<8x32xf32>
    %608 = tpu.matmul %562, %46, %cst_383 {dimension_numbers = #tpu.dot_dimension_numbers<[1], [0], [0], [1], [0, 0, 1, 1], [], []>} : vector<8x32xf32>, vector<32x32xf32>, vector<8x32xf32> -> vector<8x32xf32>
    %609 = vector.broadcast %58 : vector<1x32xf32> to vector<8x32xf32>
    %610 = arith.addf %608, %609 : vector<8x32xf32>
    %cst_384 = arith.constant dense<0.000000e+00> : vector<8x32xf32>
    %611 = tpu.matmul %562, %48, %cst_384 {dimension_numbers = #tpu.dot_dimension_numbers<[1], [0], [0], [1], [0, 0, 1, 1], [], []>} : vector<8x32xf32>, vector<32x32xf32>, vector<8x32xf32> -> vector<8x32xf32>
    %612 = vector.broadcast %60 : vector<1x32xf32> to vector<8x32xf32>
    %613 = arith.addf %611, %612 : vector<8x32xf32>
    %cst_385 = arith.constant dense<0.000000e+00> : vector<8x32xf32>
    %614 = tpu.matmul %562, %50, %cst_385 {dimension_numbers = #tpu.dot_dimension_numbers<[1], [0], [0], [1], [0, 0, 1, 1], [], []>} : vector<8x32xf32>, vector<32x32xf32>, vector<8x32xf32> -> vector<8x32xf32>
    %615 = vector.broadcast %62 : vector<1x32xf32> to vector<8x32xf32>
    %616 = arith.addf %614, %615 : vector<8x32xf32>
    %617 = arith.addf %603, %610 : vector<8x32xf32>
    %618 = arith.negf %617 : vector<8x32xf32>
    %619 = math.exp %618 : vector<8x32xf32>
    %cst_386 = arith.constant 1.000000e+00 : f32
    %620 = vector.broadcast %cst_386 : f32 to vector<8x32xf32>
    %621 = arith.addf %620, %619 : vector<8x32xf32>
    %622 = arith.divf %620, %621 : vector<8x32xf32>
    %623 = arith.addf %605, %613 : vector<8x32xf32>
    %624 = arith.negf %623 : vector<8x32xf32>
    %625 = math.exp %624 : vector<8x32xf32>
    %cst_387 = arith.constant 1.000000e+00 : f32
    %626 = vector.broadcast %cst_387 : f32 to vector<8x32xf32>
    %627 = arith.addf %626, %625 : vector<8x32xf32>
    %628 = arith.divf %626, %627 : vector<8x32xf32>
    %629 = arith.mulf %622, %616 : vector<8x32xf32>
    %630 = arith.addf %607, %629 : vector<8x32xf32>
    %631 = math.tanh %630 : vector<8x32xf32>
    %632 = arith.subf %562, %631 : vector<8x32xf32>
    %633 = arith.mulf %628, %632 : vector<8x32xf32>
    %634 = arith.addf %631, %633 : vector<8x32xf32>
    %c7_388 = arith.constant 7 : index
    %c0_389 = arith.constant 0 : index
    %c0_390 = arith.constant 0 : index
    %635 = vector.load %arg8[%c7_388, %c0_389, %c0_390] : memref<8x8x64xf32, #tpu.memory_space<vmem>>, vector<1x8x32xf32>
    %636 = vector.shape_cast %635 : vector<1x8x32xf32> to vector<8x32xf32>
    %637 = vector.shape_cast %601 : vector<8x32xf32> to vector<1x8x32xf32>
    tpu.vector_store %arg8[%c7_388, %c0_389, %c0_390], %637 {strides = array<i32>} : memref<8x8x64xf32, #tpu.memory_space<vmem>>, vector<1x8x32xf32>,
    %c0_391 = arith.constant 0 : index
    %c0_392 = arith.constant 0 : index
    %c32_393 = arith.constant 32 : index
    %638 = vector.load %arg8[%c0_391, %c0_392, %c32_393] : memref<8x8x64xf32, #tpu.memory_space<vmem>>, vector<1x8x32xf32>
    %639 = vector.shape_cast %638 : vector<1x8x32xf32> to vector<8x32xf32>
    %640 = vector.shape_cast %634 : vector<8x32xf32> to vector<1x8x32xf32>
    tpu.vector_store %arg8[%c0_391, %c0_392, %c32_393], %640 {strides = array<i32>} : memref<8x8x64xf32, #tpu.memory_space<vmem>>, vector<1x8x32xf32>,
    %c0_394 = arith.constant 0 : index
    %c0_395 = arith.constant 0 : index
    %c0_396 = arith.constant 0 : index
    %641 = vector.load %arg6[%c0_394, %c0_395, %c0_396] : memref<2x32x32xf32, #tpu.memory_space<vmem>>, vector<1x32x32xf32>
    %642 = vector.shape_cast %641 : vector<1x32x32xf32> to vector<32x32xf32>
    %cst_397 = arith.constant dense<0.000000e+00> : vector<8x32xf32>
    %643 = tpu.matmul %601, %642, %cst_397 {dimension_numbers = #tpu.dot_dimension_numbers<[1], [0], [0], [1], [0, 0, 1, 1], [], []>} : vector<8x32xf32>, vector<32x32xf32>, vector<8x32xf32> -> vector<8x32xf32>
    %c1_398 = arith.constant 1 : index
    %c0_399 = arith.constant 0 : index
    %c0_400 = arith.constant 0 : index
    %644 = vector.load %arg6[%c1_398, %c0_399, %c0_400] : memref<2x32x32xf32, #tpu.memory_space<vmem>>, vector<1x32x32xf32>
    %645 = vector.shape_cast %644 : vector<1x32x32xf32> to vector<32x32xf32>
    %cst_401 = arith.constant dense<0.000000e+00> : vector<8x32xf32>
    %646 = tpu.matmul %634, %645, %cst_401 {dimension_numbers = #tpu.dot_dimension_numbers<[1], [0], [0], [1], [0, 0, 1, 1], [], []>} : vector<8x32xf32>, vector<32x32xf32>, vector<8x32xf32> -> vector<8x32xf32>
    %647 = arith.addf %643, %646 : vector<8x32xf32>
    %c0_402 = arith.constant 0 : index
    %c0_403 = arith.constant 0 : index
    %648 = vector.load %arg7[%c0_402, %c0_403] : memref<1x32xf32, #tpu.memory_space<vmem>>, vector<1x32xf32>
    %649 = vector.broadcast %648 : vector<1x32xf32> to vector<8x32xf32>
    %650 = arith.addf %647, %649 : vector<8x32xf32>
    %651 = math.tanh %650 : vector<8x32xf32>
    %c0_404 = arith.constant 0 : index
    %c0_405 = arith.constant 0 : index
    %652 = vector.load %arg9[%c0_404, %c0_405] : memref<8x32xf32, #tpu.memory_space<vmem>>, vector<8x32xf32>
    tpu.vector_store %arg9[%c0_404, %c0_405], %651 {strides = array<i32>} : memref<8x32xf32, #tpu.memory_space<vmem>>, vector<8x32xf32>,
    return
  }
  func.func @transform_0(%arg0: i32) -> (i32, i32) {
    %c0_i32 = arith.constant 0 : i32
    %c0_i32_0 = arith.constant 0 : i32
    %c0_i32_1 = arith.constant 0 : i32
    return %c0_i32, %c0_i32_0 : i32, i32
  }
  func.func @transform_1(%arg0: i32) -> (i32, i32, i32) {
    %c0_i32 = arith.constant 0 : i32
    %c0_i32_0 = arith.constant 0 : i32
    %c0_i32_1 = arith.constant 0 : i32
    %c0_i32_2 = arith.constant 0 : i32
    return %c0_i32, %c0_i32_0, %c0_i32_1 : i32, i32, i32
  }
  func.func @transform_2(%arg0: i32) -> (i32, i32, i32) {
    %c0_i32 = arith.constant 0 : i32
    %c0_i32_0 = arith.constant 0 : i32
    %c0_i32_1 = arith.constant 0 : i32
    %c0_i32_2 = arith.constant 0 : i32
    return %c0_i32, %c0_i32_0, %c0_i32_1 : i32, i32, i32
  }
  func.func @transform_3(%arg0: i32) -> (i32, i32, i32, i32) {
    %c0_i32 = arith.constant 0 : i32
    %c0_i32_0 = arith.constant 0 : i32
    %c0_i32_1 = arith.constant 0 : i32
    %c0_i32_2 = arith.constant 0 : i32
    %c0_i32_3 = arith.constant 0 : i32
    return %c0_i32, %c0_i32_0, %c0_i32_1, %c0_i32_2 : i32, i32, i32, i32
  }
  func.func @transform_4(%arg0: i32) -> (i32, i32, i32, i32) {
    %c0_i32 = arith.constant 0 : i32
    %c0_i32_0 = arith.constant 0 : i32
    %c0_i32_1 = arith.constant 0 : i32
    %c0_i32_2 = arith.constant 0 : i32
    %c0_i32_3 = arith.constant 0 : i32
    return %c0_i32, %c0_i32_0, %c0_i32_1, %c0_i32_2 : i32, i32, i32, i32
  }
  func.func @transform_5(%arg0: i32) -> (i32, i32, i32) {
    %c0_i32 = arith.constant 0 : i32
    %c0_i32_0 = arith.constant 0 : i32
    %c0_i32_1 = arith.constant 0 : i32
    %c0_i32_2 = arith.constant 0 : i32
    return %c0_i32, %c0_i32_0, %c0_i32_1 : i32, i32, i32
  }
  func.func @transform_6(%arg0: i32) -> (i32, i32) {
    %c0_i32 = arith.constant 0 : i32
    %c0_i32_0 = arith.constant 0 : i32
    %c0_i32_1 = arith.constant 0 : i32
    return %c0_i32, %c0_i32_0 : i32, i32
  }
  func.func @transform_7(%arg0: i32) -> (i32, i32, i32) {
    %c0_i32 = arith.constant 0 : i32
    %c0_i32_0 = arith.constant 0 : i32
    %c0_i32_1 = arith.constant 0 : i32
    %c0_i32_2 = arith.constant 0 : i32
    return %c0_i32, %c0_i32_0, %c0_i32_1 : i32, i32, i32
  }
  func.func @transform_8(%arg0: i32) -> (i32, i32) {
    %c0_i32 = arith.constant 0 : i32
    %c0_i32_0 = arith.constant 0 : i32
    %c0_i32_1 = arith.constant 0 : i32
    return %c0_i32, %c0_i32_0 : i32, i32
  }
}

</mosaic_0001>

<llo_original>
// kernel: encoder_forward.1
$region0: #{encoder_forward.1}
  #allocation0 [shape = 'u32[]', space=smem, size = 0x4, offset = 0x4, fixed_abs, tag = 'smem constant byte address 0x4 - core index']
  #allocation1 [shape = 'u32[72,128]{1,0:T(1,128)}', space=vmem, size = 0x9000, scoped, tag = 'internal scratch']
  #allocation2 [shape = 'f32[2,3,64,32]{3,2,1,0:T(8,128)}', space=vmem, size = 0x30000, scoped, tag = 'scratch operand']
  %s0 = inlined_call_operand.hbm [shape: f32[64,32], index: 0, kind: input, shape index: {}]
  %s1 = inlined_call_operand.hbm [shape: f32[2,32,96], index: 1, kind: input, shape index: {}]
  %s2 = inlined_call_operand.vmem [shape: f32[2,1,96], index: 2, kind: input, shape index: {}]
  %s3 = inlined_call_operand.hbm [shape: f32[2,3,32,32], index: 3, kind: input, shape index: {}]
  %s4 = inlined_call_operand.hbm [shape: f32[2,3,1,32], index: 4, kind: input, shape index: {}]
  %s5 = inlined_call_operand.hbm [shape: f32[2,32,32], index: 5, kind: input, shape index: {}]
  %s6 = inlined_call_operand.hbm [shape: f32[1,32], index: 6, kind: input, shape index: {}]
  %s7 = inlined_call_operand.hbm [shape: f32[8,8,64], index: 7, kind: output, shape index: {0}]
  %s8 = inlined_call_operand.hbm [shape: f32[8,32], index: 8, kind: output, shape index: {1}]
  %9 = xla_tuple %s7, %s8
  %s10 = sld [smem:[#allocation0]]
  $region70: #{encoder_forward.1} parent=0
    _
  %s12 = ssub.s32 1, %s10
  %s13 = scalar_select 0, %s12, %s10
  $region1: #{encoder_forward.1} parent=0
    #allocation3 [shape = 'u8[32768]{0}', space=vmem, size = 0x8000, scoped, tag = 'input window, operand 0, single buffered']
    #allocation4 [shape = 's32[1]{0}', space=sflag, size = 0x4, scoped, tag = 'scoped memory for encoder_forward.1']
    #allocation5 [shape = 's32[1]{0}', space=sflag, size = 0x4, scoped, tag = 'scoped memory for encoder_forward.1']
    #allocation6 [shape = 'u8[32768]{0}', space=vmem, size = 0x8000, scoped, tag = 'input window, operand 1, single buffered']
    #allocation7 [shape = 's32[1]{0}', space=sflag, size = 0x4, scoped, tag = 'scoped memory for encoder_forward.1']
    #allocation8 [shape = 'u8[98304]{0}', space=vmem, size = 0x18000, scoped, tag = 'input window, operand 3, single buffered']
    #allocation9 [shape = 'u8[3072]{0}', space=vmem, size = 0xc00, scoped, tag = 'input window, operand 4, single buffered']
    #allocation10 [shape = 's32[1]{0}', space=sflag, size = 0x4, scoped, tag = 'scoped memory for encoder_forward.1']
    #allocation11 [shape = 'u8[32768]{0}', space=vmem, size = 0x8000, scoped, tag = 'input window, operand 5, single buffered']
    #allocation12 [shape = 'u8[512]{0}', space=vmem, size = 0x400, scoped, tag = 'input window, operand 6, single buffered']
    #allocation13 [shape = 's32[1]{0}', space=sflag, size = 0x4, scoped, tag = 'scoped memory for encoder_forward.1']
    #allocation14 [shape = 'u8[32768]{0}', space=vmem, size = 0x8000, scoped, tag = 'output window, operand 0, single buffered']
    #allocation15 [shape = 'u8[4096]{0}', space=vmem, size = 0x1000, scoped, tag = 'output window, operand 1, single buffered']
    #allocation16 [shape = 's32[1]{0}', space=sflag, size = 0x4, scoped, tag = 'scoped memory for encoder_forward.1']
    %14 = vsyncpa [#allocation4], 0
    %15 = vsyncpa [#allocation7], 0
    %16 = vsyncpa [#allocation10], 0
    %17 = vsyncpa [#allocation13], 0
    %18 = vsyncpa [#allocation5], 0
    %19 = vsyncpa [#allocation16], 0
    // Predicated region
    $region2: #{encoder_forward.1} parent=1 // pred_check
      _
    $region3: #{encoder_forward.1} parent=1 // pred_check_branch
      %21 = sbr.rel (0) target = $region5
    $region4: #{encoder_forward.1} parent=1 // pred_region
      %23 = vsyncadd [#allocation4], 0
      %s24 = sshll.u32 %s0, 4
      %s25 = int_to_ptr.hbm [resolvable:$true] %s24
      %s26 = sshll.u32 [#allocation3], 4
      %s27 = int_to_ptr.vmem [resolvable:$true] %s26
      %32 = dma.hbm_to_vmem [thread:$0]  %s25, 1024, %s27, [#allocation4], 128, 128, 8
    $region5: #{encoder_forward.1} parent=1 // pred_fallthru
      _
    // Predicated region
    $region6: #{encoder_forward.1} parent=1 // pred_check
      _
    $region7: #{encoder_forward.1} parent=1 // pred_check_branch
      %34 = sbr.rel (0) target = $region9
    $region8: #{encoder_forward.1} parent=1 // pred_region
      %36 = vsyncadd [#allocation7], 0
      %s37 = sshll.u32 %s1, 4
      %s38 = int_to_ptr.hbm [resolvable:$true] %s37
      %s39 = sshll.u32 [#allocation6], 4
      %s40 = int_to_ptr.vmem [resolvable:$true] %s39
      %45 = dma.hbm_to_vmem [thread:$0]  %s38, 1024, %s40, [#allocation7], 128, 128, 8
    $region9: #{encoder_forward.1} parent=1 // pred_fallthru
      _
    // Predicated region
    $region10: #{encoder_forward.1} parent=1 // pred_check
      _
    $region11: #{encoder_forward.1} parent=1 // pred_check_branch
      %47 = sbr.rel (0) target = $region13
    $region12: #{encoder_forward.1} parent=1 // pred_region
      _
    $region13: #{encoder_forward.1} parent=1 // pred_fallthru
      _
    // Predicated region
    $region14: #{encoder_forward.1} parent=1 // pred_check
      _
    $region15: #{encoder_forward.1} parent=1 // pred_check_branch
      %49 = sbr.rel (0) target = $region17
    $region16: #{encoder_forward.1} parent=1 // pred_region
      %51 = vsyncadd [#allocation7], 0
      %s52 = sshll.u32 %s3, 4
      %s53 = int_to_ptr.hbm [resolvable:$true] %s52
      %s54 = sshll.u32 [#allocation8], 4
      %s55 = int_to_ptr.vmem [resolvable:$true] %s54
      %60 = dma.hbm_to_vmem [thread:$0]  %s53, 3072, %s55, [#allocation7], 128, 128, 8
    $region17: #{encoder_forward.1} parent=1 // pred_fallthru
      _
    // Predicated region
    $region18: #{encoder_forward.1} parent=1 // pred_check
      _
    $region19: #{encoder_forward.1} parent=1 // pred_check_branch
      %62 = sbr.rel (0) target = $region21
    $region20: #{encoder_forward.1} parent=1 // pred_region
      %64 = vsyncadd [#allocation10], 0
      %s65 = sshll.u32 %s4, 4
      %s66 = int_to_ptr.hbm [resolvable:$true] %s65
      %s67 = sshll.u32 [#allocation9], 4
      %s68 = int_to_ptr.vmem [resolvable:$true] %s67
      %73 = dma.hbm_to_vmem [thread:$0]  %s66, 96, %s68, [#allocation10], 16, 16, 1
    $region21: #{encoder_forward.1} parent=1 // pred_fallthru
      _
    // Predicated region
    $region22: #{encoder_forward.1} parent=1 // pred_check
      _
    $region23: #{encoder_forward.1} parent=1 // pred_check_branch
      %75 = sbr.rel (0) target = $region25
    $region24: #{encoder_forward.1} parent=1 // pred_region
      %77 = vsyncadd [#allocation10], 0
      %s78 = sshll.u32 %s5, 4
      %s79 = int_to_ptr.hbm [resolvable:$true] %s78
      %s80 = sshll.u32 [#allocation11], 4
      %s81 = int_to_ptr.vmem [resolvable:$true] %s80
      %86 = dma.hbm_to_vmem [thread:$0]  %s79, 1024, %s81, [#allocation10], 128, 128, 8
    $region25: #{encoder_forward.1} parent=1 // pred_fallthru
      _
    // Predicated region
    $region26: #{encoder_forward.1} parent=1 // pred_check
      _
    $region27: #{encoder_forward.1} parent=1 // pred_check_branch
      %88 = sbr.rel (0) target = $region29
    $region28: #{encoder_forward.1} parent=1 // pred_region
      %90 = vsyncadd [#allocation13], 0
      %s92 = sshll.u32 %s6, 4
      %s93 = int_to_ptr.hbm [resolvable:$true] %s92
      %s94 = sshll.u32 [#allocation12], 4
      %s95 = int_to_ptr.vmem [resolvable:$true] %s94
      %97 = dma.hbm_to_vmem [thread:$0]  %s93, 16, %s95, [#allocation13]
    $region29: #{encoder_forward.1} parent=1 // pred_fallthru
      _
    // Predicated region
    $region30: #{encoder_forward.1} parent=1 // pred_check
      _
    $region31: #{encoder_forward.1} parent=1 // pred_check_branch
      %99 = sbr.rel (0) target = $region33
    $region32: #{encoder_forward.1} parent=1 // pred_region
      %101 = dma.done [#allocation4], 1024
    $region33: #{encoder_forward.1} parent=1 // pred_fallthru
      _
    // Predicated region
    $region34: #{encoder_forward.1} parent=1 // pred_check
      _
    $region35: #{encoder_forward.1} parent=1 // pred_check_branch
      %103 = sbr.rel (0) target = $region37
    $region36: #{encoder_forward.1} parent=1 // pred_region
      %105 = dma.done [#allocation7], 1024
    $region37: #{encoder_forward.1} parent=1 // pred_fallthru
      _
    // Predicated region
    $region38: #{encoder_forward.1} parent=1 // pred_check
      _
    $region39: #{encoder_forward.1} parent=1 // pred_check_branch
      %107 = sbr.rel (0) target = $region41
    $region40: #{encoder_forward.1} parent=1 // pred_region
      %109 = dma.done [#allocation7], 3072
    $region41: #{encoder_forward.1} parent=1 // pred_fallthru
      _
    // Predicated region
    $region42: #{encoder_forward.1} parent=1 // pred_check
      _
    $region43: #{encoder_forward.1} parent=1 // pred_check_branch
      %111 = sbr.rel (0) target = $region45
    $region44: #{encoder_forward.1} parent=1 // pred_region
      %113 = dma.done [#allocation10], 96
    $region45: #{encoder_forward.1} parent=1 // pred_fallthru
      _
    // Predicated region
    $region46: #{encoder_forward.1} parent=1 // pred_check
      _
    $region47: #{encoder_forward.1} parent=1 // pred_check_branch
      %115 = sbr.rel (0) target = $region49
    $region48: #{encoder_forward.1} parent=1 // pred_region
      %117 = dma.done [#allocation10], 1024
    $region49: #{encoder_forward.1} parent=1 // pred_fallthru
      _
    // Predicated region
    $region50: #{encoder_forward.1} parent=1 // pred_check
      _
    $region51: #{encoder_forward.1} parent=1 // pred_check_branch
      %119 = sbr.rel (0) target = $region53
    $region52: #{encoder_forward.1} parent=1 // pred_region
      %121 = dma.done [#allocation13], 16
    $region53: #{encoder_forward.1} parent=1 // pred_fallthru
      _
    %v122 = vld [vmem:[#allocation3] sm:$0xff]
    %v123 = vld [vmem:[#allocation3 + $0x8] sm:$0xff]
    %v124 = vld [vmem:[#allocation3 + $0x10] sm:$0xff]
    %v125 = vld [vmem:[#allocation3 + $0x18] sm:$0xff]
    %v126 = vld [vmem:[#allocation3 + $0x20] sm:$0xff]
    %v127 = vld [vmem:[#allocation3 + $0x28] sm:$0xff]
    %v128 = vld [vmem:[#allocation3 + $0x30] sm:$0xff]
    %v129 = vld [vmem:[#allocation3 + $0x38] sm:$0xff]
    %v130 = vld [vmem:[#allocation6] sm:$0xff]
    %v131 = vld [vmem:[#allocation6 + $0x8] sm:$0xff]
    %v132 = vld [vmem:[#allocation6 + $0x10] sm:$0xff]
    %v133 = vld [vmem:[#allocation6 + $0x18] sm:$0xff]
    %v134 = vld [vmem:[%s2] sm:$0x1]
    %v136 = vperm.slane %v134, 0
    %vm138 = vcmask 261120
    %v140 = vsel %vm138, %v122, 0
    %v143 = vsel %vm138, %v123, 0
    %v146 = vsel %vm138, %v124, 0
    %v149 = vsel %vm138, %v125, 0
    %v152 = vsel %vm138, %v126, 0
    %v155 = vsel %vm138, %v127, 0
    %v158 = vsel %vm138, %v128, 0
    %v161 = vsel %vm138, %v129, 0
    %163 = vmatpush.msra.mxu0 0.0
    %164 = vmatpush.msra.mxu0 0.0
    %165 = vmatpush.msra.mxu0 0.0
    %166 = vmatpush.msra.mxu0 0.0
    %167 = vmatpush.msra.mxu0 0.0
    %168 = vmatpush.msra.mxu0 0.0
    %169 = vmatpush.msra.mxu0 0.0
    %170 = vmatpush.msra.mxu0 0.0
    %171 = vmatpush.msra.mxu0 0.0
    %172 = vmatpush.msra.mxu0 0.0
    %173 = vmatpush.msra.mxu0 0.0
    %174 = vmatpush.msra.mxu0 0.0
    %175 = vmatpush.msra.mxu0 %v133
    %176 = vmatpush.msra.mxu0 %v132
    %177 = vmatpush.msra.mxu0 %v131
    %178 = vmatpush.msra.mxu0 %v130
    %179 = vmatmul.f32.gmra.mxu0 %v140
    %v180 = vpop.f32.mrf.mxu0
    %v181 = vadd.f32 %v136, %v180
    %182 = vmatmul.f32.gmra.mxu0 %v143
    %v183 = vpop.f32.mrf.mxu0
    %v184 = vadd.f32 %v136, %v183
    %185 = vmatmul.f32.gmra.mxu0 %v146
    %v186 = vpop.f32.mrf.mxu0
    %v187 = vadd.f32 %v136, %v186
    %188 = vmatmul.f32.gmra.mxu0 %v149
    %v189 = vpop.f32.mrf.mxu0
    %v190 = vadd.f32 %v136, %v189
    %191 = vmatmul.f32.gmra.mxu0 %v152
    %v192 = vpop.f32.mrf.mxu0
    %v193 = vadd.f32 %v136, %v192
    %194 = vmatmul.f32.gmra.mxu0 %v155
    %v195 = vpop.f32.mrf.mxu0
    %v196 = vadd.f32 %v136, %v195
    %197 = vmatmul.f32.gmra.mxu0 %v158
    %v198 = vpop.f32.mrf.mxu0
    %v199 = vadd.f32 %v136, %v198
    %200 = vmatmul.f32.gmra.mxu0 %v161
    %v201 = vpop.f32.mrf.mxu0
    %v202 = vadd.f32 %v136, %v201
    %203 = vdwg.mxu0
    %204 = vst.msk [vmem:[#allocation2] sm:$0xff] %vm138, %v181
    %205 = vst.msk [vmem:[#allocation2 + $0x8] sm:$0xff] %vm138, %v184
    %206 = vst.msk [vmem:[#allocation2 + $0x10] sm:$0xff] %vm138, %v187
    %207 = vst.msk [vmem:[#allocation2 + $0x18] sm:$0xff] %vm138, %v190
    %208 = vst.msk [vmem:[#allocation2 + $0x20] sm:$0xff] %vm138, %v193
    %209 = vst.msk [vmem:[#allocation2 + $0x28] sm:$0xff] %vm138, %v196
    %210 = vst.msk [vmem:[#allocation2 + $0x30] sm:$0xff] %vm138, %v199
    %211 = vst.msk [vmem:[#allocation2 + $0x38] sm:$0xff] %vm138, %v202
    %220 = vrot.lane.b32.xlu0 %v181, 96
    %v221 = vpop.permute.xlu0 %220
    %222 = vrot.lane.b32.xlu0 %v184, 96
    %v223 = vpop.permute.xlu0 %222
    %224 = vrot.lane.b32.xlu0 %v187, 96
    %v225 = vpop.permute.xlu0 %224
    %226 = vrot.lane.b32.xlu0 %v190, 96
    %v227 = vpop.permute.xlu0 %226
    %228 = vrot.lane.b32.xlu0 %v193, 96
    %v229 = vpop.permute.xlu0 %228
    %230 = vrot.lane.b32.xlu0 %v196, 96
    %v231 = vpop.permute.xlu0 %230
    %232 = vrot.lane.b32.xlu0 %v199, 96
    %v233 = vpop.permute.xlu0 %232
    %234 = vrot.lane.b32.xlu0 %v202, 96
    %v235 = vpop.permute.xlu0 %234
    %s244 = scalar_lea.vmem [#allocation2], 64
    %245 = vst.msk [vmem:[%s244] sm:$0xff] %vm138, %v221
    %246 = vst.msk [vmem:[%s244 + $0x8] sm:$0xff] %vm138, %v223
    %247 = vst.msk [vmem:[%s244 + $0x10] sm:$0xff] %vm138, %v225
    %248 = vst.msk [vmem:[%s244 + $0x18] sm:$0xff] %vm138, %v227
    %249 = vst.msk [vmem:[%s244 + $0x20] sm:$0xff] %vm138, %v229
    %250 = vst.msk [vmem:[%s244 + $0x28] sm:$0xff] %vm138, %v231
    %251 = vst.msk [vmem:[%s244 + $0x30] sm:$0xff] %vm138, %v233
    %252 = vst.msk [vmem:[%s244 + $0x38] sm:$0xff] %vm138, %v235
    %253 = vrot.lane.b32.xlu0 %v181, 64
    %v254 = vpop.permute.xlu0 %253
    %255 = vrot.lane.b32.xlu0 %v184, 64
    %v256 = vpop.permute.xlu0 %255
    %257 = vrot.lane.b32.xlu0 %v187, 64
    %v258 = vpop.permute.xlu0 %257
    %259 = vrot.lane.b32.xlu0 %v190, 64
    %v260 = vpop.permute.xlu0 %259
    %261 = vrot.lane.b32.xlu0 %v193, 64
    %v262 = vpop.permute.xlu0 %261
    %263 = vrot.lane.b32.xlu0 %v196, 64
    %v264 = vpop.permute.xlu0 %263
    %265 = vrot.lane.b32.xlu0 %v199, 64
    %v266 = vpop.permute.xlu0 %265
    %267 = vrot.lane.b32.xlu0 %v202, 64
    %v268 = vpop.permute.xlu0 %267
    %s277 = scalar_lea.vmem [#allocation2], 128
    %278 = vst.msk [vmem:[%s277] sm:$0xff] %vm138, %v254
    %279 = vst.msk [vmem:[%s277 + $0x8] sm:$0xff] %vm138, %v256
    %280 = vst.msk [vmem:[%s277 + $0x10] sm:$0xff] %vm138, %v258
    %281 = vst.msk [vmem:[%s277 + $0x18] sm:$0xff] %vm138, %v260
    %282 = vst.msk [vmem:[%s277 + $0x20] sm:$0xff] %vm138, %v262
    %283 = vst.msk [vmem:[%s277 + $0x28] sm:$0xff] %vm138, %v264
    %284 = vst.msk [vmem:[%s277 + $0x30] sm:$0xff] %vm138, %v266
    %285 = vst.msk [vmem:[%s277 + $0x38] sm:$0xff] %vm138, %v268
    %s286 = scalar_lea.vmem [#allocation6], 32
    %v287 = vld [vmem:[%s286] sm:$0xff]
    %v288 = vld [vmem:[%s286 + $0x8] sm:$0xff]
    %v289 = vld [vmem:[%s286 + $0x10] sm:$0xff]
    %v290 = vld [vmem:[%s286 + $0x18] sm:$0xff]
    %s291 = scalar_lea.vmem %s2, 1
    %v292 = vld [vmem:[%s291] sm:$0x1]
    %v294 = vperm.slane %v292, 0
    %296 = vmatpush.msra.mxu0 0.0
    %297 = vmatpush.msra.mxu0 0.0
    %298 = vmatpush.msra.mxu0 0.0
    %299 = vmatpush.msra.mxu0 0.0
    %300 = vmatpush.msra.mxu0 0.0
    %301 = vmatpush.msra.mxu0 0.0
    %302 = vmatpush.msra.mxu0 0.0
    %303 = vmatpush.msra.mxu0 0.0
    %304 = vmatpush.msra.mxu0 0.0
    %305 = vmatpush.msra.mxu0 0.0
    %306 = vmatpush.msra.mxu0 0.0
    %307 = vmatpush.msra.mxu0 0.0
    %308 = vmatpush.msra.mxu0 %v290
    %309 = vmatpush.msra.mxu0 %v289
    %310 = vmatpush.msra.mxu0 %v288
    %311 = vmatpush.msra.mxu0 %v287
    %312 = vmatmul.f32.gmra.mxu0 %v140
    %v313 = vpop.f32.mrf.mxu0
    %v314 = vadd.f32 %v294, %v313
    %315 = vmatmul.f32.gmra.mxu0 %v143
    %v316 = vpop.f32.mrf.mxu0
    %v317 = vadd.f32 %v294, %v316
    %318 = vmatmul.f32.gmra.mxu0 %v146
    %v319 = vpop.f32.mrf.mxu0
    %v320 = vadd.f32 %v294, %v319
    %321 = vmatmul.f32.gmra.mxu0 %v149
    %v322 = vpop.f32.mrf.mxu0
    %v323 = vadd.f32 %v294, %v322
    %324 = vmatmul.f32.gmra.mxu0 %v152
    %v325 = vpop.f32.mrf.mxu0
    %v326 = vadd.f32 %v294, %v325
    %327 = vmatmul.f32.gmra.mxu0 %v155
    %v328 = vpop.f32.mrf.mxu0
    %v329 = vadd.f32 %v294, %v328
    %330 = vmatmul.f32.gmra.mxu0 %v158
    %v331 = vpop.f32.mrf.mxu0
    %v332 = vadd.f32 %v294, %v331
    %333 = vmatmul.f32.gmra.mxu0 %v161
    %v334 = vpop.f32.mrf.mxu0
    %v335 = vadd.f32 %v294, %v334
    %336 = vdwg.mxu0
    %s337 = scalar_lea.vmem [#allocation2], 192
    %338 = vst.msk [vmem:[%s337] sm:$0xff] %vm138, %v314
    %339 = vst.msk [vmem:[%s337 + $0x8] sm:$0xff] %vm138, %v317
    %340 = vst.msk [vmem:[%s337 + $0x10] sm:$0xff] %vm138, %v320
    %341 = vst.msk [vmem:[%s337 + $0x18] sm:$0xff] %vm138, %v323
    %342 = vst.msk [vmem:[%s337 + $0x20] sm:$0xff] %vm138, %v326
    %343 = vst.msk [vmem:[%s337 + $0x28] sm:$0xff] %vm138, %v329
    %344 = vst.msk [vmem:[%s337 + $0x30] sm:$0xff] %vm138, %v332
    %345 = vst.msk [vmem:[%s337 + $0x38] sm:$0xff] %vm138, %v335
    %354 = vrot.lane.b32.xlu0 %v314, 96
    %v355 = vpop.permute.xlu0 %354
    %356 = vrot.lane.b32.xlu0 %v317, 96
    %v357 = vpop.permute.xlu0 %356
    %358 = vrot.lane.b32.xlu0 %v320, 96
    %v359 = vpop.permute.xlu0 %358
    %360 = vrot.lane.b32.xlu0 %v323, 96
    %v361 = vpop.permute.xlu0 %360
    %362 = vrot.lane.b32.xlu0 %v326, 96
    %v363 = vpop.permute.xlu0 %362
    %364 = vrot.lane.b32.xlu0 %v329, 96
    %v365 = vpop.permute.xlu0 %364
    %366 = vrot.lane.b32.xlu0 %v332, 96
    %v367 = vpop.permute.xlu0 %366
    %368 = vrot.lane.b32.xlu0 %v335, 96
    %v369 = vpop.permute.xlu0 %368
    %s378 = scalar_lea.vmem [#allocation2], 256
    %379 = vst.msk [vmem:[%s378] sm:$0xff] %vm138, %v355
    %380 = vst.msk [vmem:[%s378 + $0x8] sm:$0xff] %vm138, %v357
    %381 = vst.msk [vmem:[%s378 + $0x10] sm:$0xff] %vm138, %v359
    %382 = vst.msk [vmem:[%s378 + $0x18] sm:$0xff] %vm138, %v361
    %383 = vst.msk [vmem:[%s378 + $0x20] sm:$0xff] %vm138, %v363
    %384 = vst.msk [vmem:[%s378 + $0x28] sm:$0xff] %vm138, %v365
    %385 = vst.msk [vmem:[%s378 + $0x30] sm:$0xff] %vm138, %v367
    %386 = vst.msk [vmem:[%s378 + $0x38] sm:$0xff] %vm138, %v369
    %387 = vrot.lane.b32.xlu0 %v314, 64
    %v388 = vpop.permute.xlu0 %387
    %389 = vrot.lane.b32.xlu0 %v317, 64
    %v390 = vpop.permute.xlu0 %389
    %391 = vrot.lane.b32.xlu0 %v320, 64
    %v392 = vpop.permute.xlu0 %391
    %393 = vrot.lane.b32.xlu0 %v323, 64
    %v394 = vpop.permute.xlu0 %393
    %395 = vrot.lane.b32.xlu0 %v326, 64
    %v396 = vpop.permute.xlu0 %395
    %397 = vrot.lane.b32.xlu0 %v329, 64
    %v398 = vpop.permute.xlu0 %397
    %399 = vrot.lane.b32.xlu0 %v332, 64
    %v400 = vpop.permute.xlu0 %399
    %401 = vrot.lane.b32.xlu0 %v335, 64
    %v402 = vpop.permute.xlu0 %401
    %s411 = scalar_lea.vmem [#allocation2], 320
    %412 = vst.msk [vmem:[%s411] sm:$0xff] %vm138, %v388
    %413 = vst.msk [vmem:[%s411 + $0x8] sm:$0xff] %vm138, %v390
    %414 = vst.msk [vmem:[%s411 + $0x10] sm:$0xff] %vm138, %v392
    %415 = vst.msk [vmem:[%s411 + $0x18] sm:$0xff] %vm138, %v394
    %416 = vst.msk [vmem:[%s411 + $0x20] sm:$0xff] %vm138, %v396
    %417 = vst.msk [vmem:[%s411 + $0x28] sm:$0xff] %vm138, %v398
    %418 = vst.msk [vmem:[%s411 + $0x30] sm:$0xff] %vm138, %v400
    %419 = vst.msk [vmem:[%s411 + $0x38] sm:$0xff] %vm138, %v402
    %v420 = vld [vmem:[#allocation8] sm:$0xff]
    %v421 = vld [vmem:[#allocation8 + $0x8] sm:$0xff]
    %v422 = vld [vmem:[#allocation8 + $0x10] sm:$0xff]
    %v423 = vld [vmem:[#allocation8 + $0x18] sm:$0xff]
    %s424 = scalar_lea.vmem [#allocation8], 32
    %v425 = vld [vmem:[%s424] sm:$0xff]
    %v426 = vld [vmem:[%s424 + $0x8] sm:$0xff]
    %v427 = vld [vmem:[%s424 + $0x10] sm:$0xff]
    %v428 = vld [vmem:[%s424 + $0x18] sm:$0xff]
    %s429 = scalar_lea.vmem [#allocation8], 64
    %v430 = vld [vmem:[%s429] sm:$0xff]
    %v431 = vld [vmem:[%s429 + $0x8] sm:$0xff]
    %v432 = vld [vmem:[%s429 + $0x10] sm:$0xff]
    %v433 = vld [vmem:[%s429 + $0x18] sm:$0xff]
    %s434 = scalar_lea.vmem [#allocation8], 96
    %v435 = vld [vmem:[%s434] sm:$0xff]
    %v436 = vld [vmem:[%s434 + $0x8] sm:$0xff]
    %v437 = vld [vmem:[%s434 + $0x10] sm:$0xff]
    %v438 = vld [vmem:[%s434 + $0x18] sm:$0xff]
    %s439 = scalar_lea.vmem [#allocation8], 128
    %v440 = vld [vmem:[%s439] sm:$0xff]
    %v441 = vld [vmem:[%s439 + $0x8] sm:$0xff]
    %v442 = vld [vmem:[%s439 + $0x10] sm:$0xff]
    %v443 = vld [vmem:[%s439 + $0x18] sm:$0xff]
    %s444 = scalar_lea.vmem [#allocation8], 160
    %v445 = vld [vmem:[%s444] sm:$0xff]
    %v446 = vld [vmem:[%s444 + $0x8] sm:$0xff]
    %v447 = vld [vmem:[%s444 + $0x10] sm:$0xff]
    %v448 = vld [vmem:[%s444 + $0x18] sm:$0xff]
    %v449 = vld [vmem:[#allocation9] sm:$0x1]
    %s450 = scalar_lea.vmem [#allocation9], 1
    %v451 = vld [vmem:[%s450] sm:$0x1]
    %s452 = scalar_lea.vmem [#allocation9], 2
    %v453 = vld [vmem:[%s452] sm:$0x1]
    %s454 = scalar_lea.vmem [#allocation9], 3
    %v455 = vld [vmem:[%s454] sm:$0x1]
    %s456 = scalar_lea.vmem [#allocation9], 4
    %v457 = vld [vmem:[%s456] sm:$0x1]
    %s458 = scalar_lea.vmem [#allocation9], 5
    %v459 = vld [vmem:[%s458] sm:$0x1]
    %v460 = vld [vmem:[#allocation2] sm:$0xff]
    %v461 = vld [vmem:[%s244] sm:$0xff]
    %v462 = vld [vmem:[%s277] sm:$0xff]
    %v464 = vperm.slane %v449, 0
    %v467 = vsel %vm138, 0.0, 0
    %469 = vmatpush.msra.mxu0 0.0
    %470 = vmatpush.msra.mxu0 0.0
    %471 = vmatpush.msra.mxu0 0.0
    %472 = vmatpush.msra.mxu0 0.0
    %473 = vmatpush.msra.mxu0 0.0
    %474 = vmatpush.msra.mxu0 0.0
    %475 = vmatpush.msra.mxu0 0.0
    %476 = vmatpush.msra.mxu0 0.0
    %477 = vmatpush.msra.mxu0 0.0
    %478 = vmatpush.msra.mxu0 0.0
    %479 = vmatpush.msra.mxu0 0.0
    %480 = vmatpush.msra.mxu0 0.0
    %481 = vmatpush.msra.mxu0 %v423
    %482 = vmatpush.msra.mxu0 %v422
    %483 = vmatpush.msra.mxu0 %v421
    %484 = vmatpush.msra.mxu0 %v420
    %485 = vmatmul.f32.gmra.mxu0 %v467
    %v486 = vpop.f32.mrf.mxu0
    %v487 = vadd.f32 %v464, %v486
    %488 = vdwg.mxu0
    %v490 = vperm.slane %v451, 0
    %492 = vmatpush.msra.mxu0 0.0
    %493 = vmatpush.msra.mxu0 0.0
    %494 = vmatpush.msra.mxu0 0.0
    %495 = vmatpush.msra.mxu0 0.0
    %496 = vmatpush.msra.mxu0 0.0
    %497 = vmatpush.msra.mxu0 0.0
    %498 = vmatpush.msra.mxu0 0.0
    %499 = vmatpush.msra.mxu0 0.0
    %500 = vmatpush.msra.mxu0 0.0
    %501 = vmatpush.msra.mxu0 0.0
    %502 = vmatpush.msra.mxu0 0.0
    %503 = vmatpush.msra.mxu0 0.0
    %504 = vmatpush.msra.mxu0 %v428
    %505 = vmatpush.msra.mxu0 %v427
    %506 = vmatpush.msra.mxu0 %v426
    %507 = vmatpush.msra.mxu0 %v425
    %508 = vmatmul.f32.gmra.mxu0 %v467
    %v509 = vpop.f32.mrf.mxu0
    %v510 = vadd.f32 %v490, %v509
    %511 = vdwg.mxu0
    %v513 = vperm.slane %v453, 0
    %515 = vmatpush.msra.mxu0 0.0
    %516 = vmatpush.msra.mxu0 0.0
    %517 = vmatpush.msra.mxu0 0.0
    %518 = vmatpush.msra.mxu0 0.0
    %519 = vmatpush.msra.mxu0 0.0
    %520 = vmatpush.msra.mxu0 0.0
    %521 = vmatpush.msra.mxu0 0.0
    %522 = vmatpush.msra.mxu0 0.0
    %523 = vmatpush.msra.mxu0 0.0
    %524 = vmatpush.msra.mxu0 0.0
    %525 = vmatpush.msra.mxu0 0.0
    %526 = vmatpush.msra.mxu0 0.0
    %527 = vmatpush.msra.mxu0 %v433
    %528 = vmatpush.msra.mxu0 %v432
    %529 = vmatpush.msra.mxu0 %v431
    %530 = vmatpush.msra.mxu0 %v430
    %531 = vmatmul.f32.gmra.mxu0 %v467
    %v532 = vpop.f32.mrf.mxu0
    %v533 = vadd.f32 %v513, %v532
    %534 = vdwg.mxu0
    %v535 = vadd.f32 %v460, %v487
    %v536 = vxor.u32 %v535, 2147483648
    %v537 = vmul.f32 %v536, 1.442695
    %v538 = vpow.pop %v537
    %v539 = vadd.f32 %v538, 1.0
    %v540 = vrcp.pop %v539
    %v541 = vmul.f32 %v539, %v540
    %v542 = vsub.f32 1.0, %v541
    %v543 = vmul.f32 %v540, %v542
    %v544 = vadd.f32 %v540, %v543
    %vm545 = vweird.f32 %v539
    %vm546 = vweird.f32 %v540
    %vm547 = vmor %vm545, %vm546
    %v548 = vsel %vm547, %v540, %v544
    %v549 = vand.u32 2147483647, %v539
    %vm550 = vcmp.eq.f32.partialorder %v549, 8.507059e+37
    %v551 = vand.u32 %v539, 2147483648
    %v552 = vor.u32 1.1754944e-38, %v551
    %v553 = vsel %vm550, %v552, %v548
    %v554 = vmul.f32 1.0, %v553
    %v555 = vadd.f32 %v461, %v510
    %v556 = vxor.u32 %v555, 2147483648
    %v557 = vmul.f32 %v556, 1.442695
    %v558 = vpow.pop %v557
    %v559 = vadd.f32 %v558, 1.0
    %v560 = vrcp.pop %v559
    %v561 = vmul.f32 %v559, %v560
    %v562 = vsub.f32 1.0, %v561
    %v563 = vmul.f32 %v560, %v562
    %v564 = vadd.f32 %v560, %v563
    %vm565 = vweird.f32 %v559
    %vm566 = vweird.f32 %v560
    %vm567 = vmor %vm565, %vm566
    %v568 = vsel %vm567, %v560, %v564
    %v569 = vand.u32 2147483647, %v559
    %vm570 = vcmp.eq.f32.partialorder %v569, 8.507059e+37
    %v571 = vand.u32 %v559, 2147483648
    %v572 = vor.u32 1.1754944e-38, %v571
    %v573 = vsel %vm570, %v572, %v568
    %v574 = vmul.f32 1.0, %v573
    %v575 = vmul.f32 %v554, %v533
    %v576 = vadd.f32 %v462, %v575
    %v577 = vtanh.pop %v576
    %v578 = vsub.f32 0.0, %v577
    %v579 = vmul.f32 %v574, %v578
    %v580 = vadd.f32 %v577, %v579
    %v581 = vld [vmem:[%s337 + $0x38] sm:$0xff]
    %v582 = vld [vmem:[%s378 + $0x38] sm:$0xff]
    %v583 = vld [vmem:[%s411 + $0x38] sm:$0xff]
    %v585 = vperm.slane %v455, 0
    %587 = vmatpush.msra.mxu0 0.0
    %588 = vmatpush.msra.mxu0 0.0
    %589 = vmatpush.msra.mxu0 0.0
    %590 = vmatpush.msra.mxu0 0.0
    %591 = vmatpush.msra.mxu0 0.0
    %592 = vmatpush.msra.mxu0 0.0
    %593 = vmatpush.msra.mxu0 0.0
    %594 = vmatpush.msra.mxu0 0.0
    %595 = vmatpush.msra.mxu0 0.0
    %596 = vmatpush.msra.mxu0 0.0
    %597 = vmatpush.msra.mxu0 0.0
    %598 = vmatpush.msra.mxu0 0.0
    %599 = vmatpush.msra.mxu0 %v438
    %600 = vmatpush.msra.mxu0 %v437
    %601 = vmatpush.msra.mxu0 %v436
    %602 = vmatpush.msra.mxu0 %v435
    %603 = vmatmul.f32.gmra.mxu0 %v467
    %v604 = vpop.f32.mrf.mxu0
    %v605 = vadd.f32 %v585, %v604
    %606 = vdwg.mxu0
    %v608 = vperm.slane %v457, 0
    %610 = vmatpush.msra.mxu0 0.0
    %611 = vmatpush.msra.mxu0 0.0
    %612 = vmatpush.msra.mxu0 0.0
    %613 = vmatpush.msra.mxu0 0.0
    %614 = vmatpush.msra.mxu0 0.0
    %615 = vmatpush.msra.mxu0 0.0
    %616 = vmatpush.msra.mxu0 0.0
    %617 = vmatpush.msra.mxu0 0.0
    %618 = vmatpush.msra.mxu0 0.0
    %619 = vmatpush.msra.mxu0 0.0
    %620 = vmatpush.msra.mxu0 0.0
    %621 = vmatpush.msra.mxu0 0.0
    %622 = vmatpush.msra.mxu0 %v443
    %623 = vmatpush.msra.mxu0 %v442
    %624 = vmatpush.msra.mxu0 %v441
    %625 = vmatpush.msra.mxu0 %v440
    %626 = vmatmul.f32.gmra.mxu0 %v467
    %v627 = vpop.f32.mrf.mxu0
    %v628 = vadd.f32 %v608, %v627
    %629 = vdwg.mxu0
    %v631 = vperm.slane %v459, 0
    %633 = vmatpush.msra.mxu0 0.0
    %634 = vmatpush.msra.mxu0 0.0
    %635 = vmatpush.msra.mxu0 0.0
    %636 = vmatpush.msra.mxu0 0.0
    %637 = vmatpush.msra.mxu0 0.0
    %638 = vmatpush.msra.mxu0 0.0
    %639 = vmatpush.msra.mxu0 0.0
    %640 = vmatpush.msra.mxu0 0.0
    %641 = vmatpush.msra.mxu0 0.0
    %642 = vmatpush.msra.mxu0 0.0
    %643 = vmatpush.msra.mxu0 0.0
    %644 = vmatpush.msra.mxu0 0.0
    %645 = vmatpush.msra.mxu0 %v448
    %646 = vmatpush.msra.mxu0 %v447
    %647 = vmatpush.msra.mxu0 %v446
    %648 = vmatpush.msra.mxu0 %v445
    %649 = vmatmul.f32.gmra.mxu0 %v467
    %v650 = vpop.f32.mrf.mxu0
    %v651 = vadd.f32 %v631, %v650
    %652 = vdwg.mxu0
    %v653 = vadd.f32 %v581, %v605
    %v654 = vxor.u32 %v653, 2147483648
    %v655 = vmul.f32 %v654, 1.442695
    %v656 = vpow.pop %v655
    %v657 = vadd.f32 %v656, 1.0
    %v658 = vrcp.pop %v657
    %v659 = vmul.f32 %v657, %v658
    %v660 = vsub.f32 1.0, %v659
    %v661 = vmul.f32 %v658, %v660
    %v662 = vadd.f32 %v658, %v661
    %vm663 = vweird.f32 %v657
    %vm664 = vweird.f32 %v658
    %vm665 = vmor %vm663, %vm664
    %v666 = vsel %vm665, %v658, %v662
    %v667 = vand.u32 2147483647, %v657
    %vm668 = vcmp.eq.f32.partialorder %v667, 8.507059e+37
    %v669 = vand.u32 %v657, 2147483648
    %v670 = vor.u32 1.1754944e-38, %v669
    %v671 = vsel %vm668, %v670, %v666
    %v672 = vmul.f32 1.0, %v671
    %v673 = vadd.f32 %v582, %v628
    %v674 = vxor.u32 %v673, 2147483648
    %v675 = vmul.f32 %v674, 1.442695
    %v676 = vpow.pop %v675
    %v677 = vadd.f32 %v676, 1.0
    %v678 = vrcp.pop %v677
    %v679 = vmul.f32 %v677, %v678
    %v680 = vsub.f32 1.0, %v679
    %v681 = vmul.f32 %v678, %v680
    %v682 = vadd.f32 %v678, %v681
    %vm683 = vweird.f32 %v677
    %vm684 = vweird.f32 %v678
    %vm685 = vmor %vm683, %vm684
    %v686 = vsel %vm685, %v678, %v682
    %v687 = vand.u32 2147483647, %v677
    %vm688 = vcmp.eq.f32.partialorder %v687, 8.507059e+37
    %v689 = vand.u32 %v677, 2147483648
    %v690 = vor.u32 1.1754944e-38, %v689
    %v691 = vsel %vm688, %v690, %v686
    %v692 = vmul.f32 1.0, %v691
    %v693 = vmul.f32 %v672, %v651
    %v694 = vadd.f32 %v583, %v693
    %v695 = vtanh.pop %v694
    %v696 = vsub.f32 0.0, %v695
    %v697 = vmul.f32 %v692, %v696
    %v698 = vadd.f32 %v695, %v697
    %699 = vst.msk [vmem:[#allocation14] sm:$0xff] %vm138, %v580
    %701 = vrot.lane.b32.xlu0 %v698, 32
    %v702 = vpop.permute.xlu0 %701
    %s704 = scalar_lea.vmem [#allocation14], 56
    %vm705 = vcmask 523520
    %706 = vst.msk [vmem:[%s704] sm:$0xff] %vm705, %v702
    %v707 = vld [vmem:[#allocation2 + $0x8] sm:$0xff]
    %v708 = vld [vmem:[%s244 + $0x8] sm:$0xff]
    %v709 = vld [vmem:[%s277 + $0x8] sm:$0xff]
    %v711 = vsel %vm138, %v580, 0
    %713 = vmatpush.msra.mxu0 0.0
    %714 = vmatpush.msra.mxu0 0.0
    %715 = vmatpush.msra.mxu0 0.0
    %716 = vmatpush.msra.mxu0 0.0
    %717 = vmatpush.msra.mxu0 0.0
    %718 = vmatpush.msra.mxu0 0.0
    %719 = vmatpush.msra.mxu0 0.0
    %720 = vmatpush.msra.mxu0 0.0
    %721 = vmatpush.msra.mxu0 0.0
    %722 = vmatpush.msra.mxu0 0.0
    %723 = vmatpush.msra.mxu0 0.0
    %724 = vmatpush.msra.mxu0 0.0
    %725 = vmatpush.msra.mxu0 %v423
    %726 = vmatpush.msra.mxu0 %v422
    %727 = vmatpush.msra.mxu0 %v421
    %728 = vmatpush.msra.mxu0 %v420
    %729 = vmatmul.f32.gmra.mxu0 %v711
    %v730 = vpop.f32.mrf.mxu0
    %v731 = vadd.f32 %v464, %v730
    %732 = vdwg.mxu0
    %733 = vmatpush.msra.mxu0 0.0
    %734 = vmatpush.msra.mxu0 0.0
    %735 = vmatpush.msra.mxu0 0.0
    %736 = vmatpush.msra.mxu0 0.0
    %737 = vmatpush.msra.mxu0 0.0
    %738 = vmatpush.msra.mxu0 0.0
    %739 = vmatpush.msra.mxu0 0.0
    %740 = vmatpush.msra.mxu0 0.0
    %741 = vmatpush.msra.mxu0 0.0
    %742 = vmatpush.msra.mxu0 0.0
    %743 = vmatpush.msra.mxu0 0.0
    %744 = vmatpush.msra.mxu0 0.0
    %745 = vmatpush.msra.mxu0 %v428
    %746 = vmatpush.msra.mxu0 %v427
    %747 = vmatpush.msra.mxu0 %v426
    %748 = vmatpush.msra.mxu0 %v425
    %749 = vmatmul.f32.gmra.mxu0 %v711
    %v750 = vpop.f32.mrf.mxu0
    %v751 = vadd.f32 %v490, %v750
    %752 = vdwg.mxu0
    %753 = vmatpush.msra.mxu0 0.0
    %754 = vmatpush.msra.mxu0 0.0
    %755 = vmatpush.msra.mxu0 0.0
    %756 = vmatpush.msra.mxu0 0.0
    %757 = vmatpush.msra.mxu0 0.0
    %758 = vmatpush.msra.mxu0 0.0
    %759 = vmatpush.msra.mxu0 0.0
    %760 = vmatpush.msra.mxu0 0.0
    %761 = vmatpush.msra.mxu0 0.0
    %762 = vmatpush.msra.mxu0 0.0
    %763 = vmatpush.msra.mxu0 0.0
    %764 = vmatpush.msra.mxu0 0.0
    %765 = vmatpush.msra.mxu0 %v433
    %766 = vmatpush.msra.mxu0 %v432
    %767 = vmatpush.msra.mxu0 %v431
    %768 = vmatpush.msra.mxu0 %v430
    %769 = vmatmul.f32.gmra.mxu0 %v711
    %v770 = vpop.f32.mrf.mxu0
    %v771 = vadd.f32 %v513, %v770
    %772 = vdwg.mxu0
    %v773 = vadd.f32 %v707, %v731
    %v774 = vxor.u32 %v773, 2147483648
    %v775 = vmul.f32 %v774, 1.442695
    %v776 = vpow.pop %v775
    %v777 = vadd.f32 %v776, 1.0
    %v778 = vrcp.pop %v777
    %v779 = vmul.f32 %v777, %v778
    %v780 = vsub.f32 1.0, %v779
    %v781 = vmul.f32 %v778, %v780
    %v782 = vadd.f32 %v778, %v781
    %vm783 = vweird.f32 %v777
    %vm784 = vweird.f32 %v778
    %vm785 = vmor %vm783, %vm784
    %v786 = vsel %vm785, %v778, %v782
    %v787 = vand.u32 2147483647, %v777
    %vm788 = vcmp.eq.f32.partialorder %v787, 8.507059e+37
    %v789 = vand.u32 %v777, 2147483648
    %v790 = vor.u32 1.1754944e-38, %v789
    %v791 = vsel %vm788, %v790, %v786
    %v792 = vmul.f32 1.0, %v791
    %v793 = vadd.f32 %v708, %v751
    %v794 = vxor.u32 %v793, 2147483648
    %v795 = vmul.f32 %v794, 1.442695
    %v796 = vpow.pop %v795
    %v797 = vadd.f32 %v796, 1.0
    %v798 = vrcp.pop %v797
    %v799 = vmul.f32 %v797, %v798
    %v800 = vsub.f32 1.0, %v799
    %v801 = vmul.f32 %v798, %v800
    %v802 = vadd.f32 %v798, %v801
    %vm803 = vweird.f32 %v797
    %vm804 = vweird.f32 %v798
    %vm805 = vmor %vm803, %vm804
    %v806 = vsel %vm805, %v798, %v802
    %v807 = vand.u32 2147483647, %v797
    %vm808 = vcmp.eq.f32.partialorder %v807, 8.507059e+37
    %v809 = vand.u32 %v797, 2147483648
    %v810 = vor.u32 1.1754944e-38, %v809
    %v811 = vsel %vm808, %v810, %v806
    %v812 = vmul.f32 1.0, %v811
    %v813 = vmul.f32 %v792, %v771
    %v814 = vadd.f32 %v709, %v813
    %v815 = vtanh.pop %v814
    %v816 = vsub.f32 %v580, %v815
    %v817 = vmul.f32 %v812, %v816
    %v818 = vadd.f32 %v815, %v817
    %v819 = vld [vmem:[%s337 + $0x30] sm:$0xff]
    %v820 = vld [vmem:[%s378 + $0x30] sm:$0xff]
    %v821 = vld [vmem:[%s411 + $0x30] sm:$0xff]
    %v822 = vsel %vm138, %v698, 0
    %824 = vmatpush.msra.mxu0 0.0
    %825 = vmatpush.msra.mxu0 0.0
    %826 = vmatpush.msra.mxu0 0.0
    %827 = vmatpush.msra.mxu0 0.0
    %828 = vmatpush.msra.mxu0 0.0
    %829 = vmatpush.msra.mxu0 0.0
    %830 = vmatpush.msra.mxu0 0.0
    %831 = vmatpush.msra.mxu0 0.0
    %832 = vmatpush.msra.mxu0 0.0
    %833 = vmatpush.msra.mxu0 0.0
    %834 = vmatpush.msra.mxu0 0.0
    %835 = vmatpush.msra.mxu0 0.0
    %836 = vmatpush.msra.mxu0 %v438
    %837 = vmatpush.msra.mxu0 %v437
    %838 = vmatpush.msra.mxu0 %v436
    %839 = vmatpush.msra.mxu0 %v435
    %840 = vmatmul.f32.gmra.mxu0 %v822
    %v841 = vpop.f32.mrf.mxu0
    %v842 = vadd.f32 %v585, %v841
    %843 = vdwg.mxu0
    %844 = vmatpush.msra.mxu0 0.0
    %845 = vmatpush.msra.mxu0 0.0
    %846 = vmatpush.msra.mxu0 0.0
    %847 = vmatpush.msra.mxu0 0.0
    %848 = vmatpush.msra.mxu0 0.0
    %849 = vmatpush.msra.mxu0 0.0
    %850 = vmatpush.msra.mxu0 0.0
    %851 = vmatpush.msra.mxu0 0.0
    %852 = vmatpush.msra.mxu0 0.0
    %853 = vmatpush.msra.mxu0 0.0
    %854 = vmatpush.msra.mxu0 0.0
    %855 = vmatpush.msra.mxu0 0.0
    %856 = vmatpush.msra.mxu0 %v443
    %857 = vmatpush.msra.mxu0 %v442
    %858 = vmatpush.msra.mxu0 %v441
    %859 = vmatpush.msra.mxu0 %v440
    %860 = vmatmul.f32.gmra.mxu0 %v822
    %v861 = vpop.f32.mrf.mxu0
    %v862 = vadd.f32 %v608, %v861
    %863 = vdwg.mxu0
    %864 = vmatpush.msra.mxu0 0.0
    %865 = vmatpush.msra.mxu0 0.0
    %866 = vmatpush.msra.mxu0 0.0
    %867 = vmatpush.msra.mxu0 0.0
    %868 = vmatpush.msra.mxu0 0.0
    %869 = vmatpush.msra.mxu0 0.0
    %870 = vmatpush.msra.mxu0 0.0
    %871 = vmatpush.msra.mxu0 0.0
    %872 = vmatpush.msra.mxu0 0.0
    %873 = vmatpush.msra.mxu0 0.0
    %874 = vmatpush.msra.mxu0 0.0
    %875 = vmatpush.msra.mxu0 0.0
    %876 = vmatpush.msra.mxu0 %v448
    %877 = vmatpush.msra.mxu0 %v447
    %878 = vmatpush.msra.mxu0 %v446
    %879 = vmatpush.msra.mxu0 %v445
    %880 = vmatmul.f32.gmra.mxu0 %v822
    %v881 = vpop.f32.mrf.mxu0
    %v882 = vadd.f32 %v631, %v881
    %883 = vdwg.mxu0
    %v884 = vadd.f32 %v819, %v842
    %v885 = vxor.u32 %v884, 2147483648
    %v886 = vmul.f32 %v885, 1.442695
    %v887 = vpow.pop %v886
    %v888 = vadd.f32 %v887, 1.0
    %v889 = vrcp.pop %v888
    %v890 = vmul.f32 %v888, %v889
    %v891 = vsub.f32 1.0, %v890
    %v892 = vmul.f32 %v889, %v891
    %v893 = vadd.f32 %v889, %v892
    %vm894 = vweird.f32 %v888
    %vm895 = vweird.f32 %v889
    %vm896 = vmor %vm894, %vm895
    %v897 = vsel %vm896, %v889, %v893
    %v898 = vand.u32 2147483647, %v888
    %vm899 = vcmp.eq.f32.partialorder %v898, 8.507059e+37
    %v900 = vand.u32 %v888, 2147483648
    %v901 = vor.u32 1.1754944e-38, %v900
    %v902 = vsel %vm899, %v901, %v897
    %v903 = vmul.f32 1.0, %v902
    %v904 = vadd.f32 %v820, %v862
    %v905 = vxor.u32 %v904, 2147483648
    %v906 = vmul.f32 %v905, 1.442695
    %v907 = vpow.pop %v906
    %v908 = vadd.f32 %v907, 1.0
    %v909 = vrcp.pop %v908
    %v910 = vmul.f32 %v908, %v909
    %v911 = vsub.f32 1.0, %v910
    %v912 = vmul.f32 %v909, %v911
    %v913 = vadd.f32 %v909, %v912
    %vm914 = vweird.f32 %v908
    %vm915 = vweird.f32 %v909
    %vm916 = vmor %vm914, %vm915
    %v917 = vsel %vm916, %v909, %v913
    %v918 = vand.u32 2147483647, %v908
    %vm919 = vcmp.eq.f32.partialorder %v918, 8.507059e+37
    %v920 = vand.u32 %v908, 2147483648
    %v921 = vor.u32 1.1754944e-38, %v920
    %v922 = vsel %vm919, %v921, %v917
    %v923 = vmul.f32 1.0, %v922
    %v924 = vmul.f32 %v903, %v882
    %v925 = vadd.f32 %v821, %v924
    %v926 = vtanh.pop %v925
    %v927 = vsub.f32 %v698, %v926
    %v928 = vmul.f32 %v923, %v927
    %v929 = vadd.f32 %v926, %v928
    %s930 = scalar_lea.vmem [#allocation14], 8
    %931 = vst.msk [vmem:[%s930] sm:$0xff] %vm138, %v818
    %933 = vrot.lane.b32.xlu0 %v929, 32
    %v934 = vpop.permute.xlu0 %933
    %s936 = scalar_lea.vmem [#allocation14], 48
    %937 = vst.msk [vmem:[%s936] sm:$0xff] %vm705, %v934
    %v938 = vld [vmem:[#allocation2 + $0x10] sm:$0xff]
    %v939 = vld [vmem:[%s244 + $0x10] sm:$0xff]
    %v940 = vld [vmem:[%s277 + $0x10] sm:$0xff]
    %v942 = vsel %vm138, %v818, 0
    %944 = vmatpush.msra.mxu0 0.0
    %945 = vmatpush.msra.mxu0 0.0
    %946 = vmatpush.msra.mxu0 0.0
    %947 = vmatpush.msra.mxu0 0.0
    %948 = vmatpush.msra.mxu0 0.0
    %949 = vmatpush.msra.mxu0 0.0
    %950 = vmatpush.msra.mxu0 0.0
    %951 = vmatpush.msra.mxu0 0.0
    %952 = vmatpush.msra.mxu0 0.0
    %953 = vmatpush.msra.mxu0 0.0
    %954 = vmatpush.msra.mxu0 0.0
    %955 = vmatpush.msra.mxu0 0.0
    %956 = vmatpush.msra.mxu0 %v423
    %957 = vmatpush.msra.mxu0 %v422
    %958 = vmatpush.msra.mxu0 %v421
    %959 = vmatpush.msra.mxu0 %v420
    %960 = vmatmul.f32.gmra.mxu0 %v942
    %v961 = vpop.f32.mrf.mxu0
    %v962 = vadd.f32 %v464, %v961
    %963 = vdwg.mxu0
    %964 = vmatpush.msra.mxu0 0.0
    %965 = vmatpush.msra.mxu0 0.0
    %966 = vmatpush.msra.mxu0 0.0
    %967 = vmatpush.msra.mxu0 0.0
    %968 = vmatpush.msra.mxu0 0.0
    %969 = vmatpush.msra.mxu0 0.0
    %970 = vmatpush.msra.mxu0 0.0
    %971 = vmatpush.msra.mxu0 0.0
    %972 = vmatpush.msra.mxu0 0.0
    %973 = vmatpush.msra.mxu0 0.0
    %974 = vmatpush.msra.mxu0 0.0
    %975 = vmatpush.msra.mxu0 0.0
    %976 = vmatpush.msra.mxu0 %v428
    %977 = vmatpush.msra.mxu0 %v427
    %978 = vmatpush.msra.mxu0 %v426
    %979 = vmatpush.msra.mxu0 %v425
    %980 = vmatmul.f32.gmra.mxu0 %v942
    %v981 = vpop.f32.mrf.mxu0
    %v982 = vadd.f32 %v490, %v981
    %983 = vdwg.mxu0
    %984 = vmatpush.msra.mxu0 0.0
    %985 = vmatpush.msra.mxu0 0.0
    %986 = vmatpush.msra.mxu0 0.0
    %987 = vmatpush.msra.mxu0 0.0
    %988 = vmatpush.msra.mxu0 0.0
    %989 = vmatpush.msra.mxu0 0.0
    %990 = vmatpush.msra.mxu0 0.0
    %991 = vmatpush.msra.mxu0 0.0
    %992 = vmatpush.msra.mxu0 0.0
    %993 = vmatpush.msra.mxu0 0.0
    %994 = vmatpush.msra.mxu0 0.0
    %995 = vmatpush.msra.mxu0 0.0
    %996 = vmatpush.msra.mxu0 %v433
    %997 = vmatpush.msra.mxu0 %v432
    %998 = vmatpush.msra.mxu0 %v431
    %999 = vmatpush.msra.mxu0 %v430
    %1000 = vmatmul.f32.gmra.mxu0 %v942
    %v1001 = vpop.f32.mrf.mxu0
    %v1002 = vadd.f32 %v513, %v1001
    %1003 = vdwg.mxu0
    %v1004 = vadd.f32 %v938, %v962
    %v1005 = vxor.u32 %v1004, 2147483648
    %v1006 = vmul.f32 %v1005, 1.442695
    %v1007 = vpow.pop %v1006
    %v1008 = vadd.f32 %v1007, 1.0
    %v1009 = vrcp.pop %v1008
    %v1010 = vmul.f32 %v1008, %v1009
    %v1011 = vsub.f32 1.0, %v1010
    %v1012 = vmul.f32 %v1009, %v1011
    %v1013 = vadd.f32 %v1009, %v1012
    %vm1014 = vweird.f32 %v1008
    %vm1015 = vweird.f32 %v1009
    %vm1016 = vmor %vm1014, %vm1015
    %v1017 = vsel %vm1016, %v1009, %v1013
    %v1018 = vand.u32 2147483647, %v1008
    %vm1019 = vcmp.eq.f32.partialorder %v1018, 8.507059e+37
    %v1020 = vand.u32 %v1008, 2147483648
    %v1021 = vor.u32 1.1754944e-38, %v1020
    %v1022 = vsel %vm1019, %v1021, %v1017
    %v1023 = vmul.f32 1.0, %v1022
    %v1024 = vadd.f32 %v939, %v982
    %v1025 = vxor.u32 %v1024, 2147483648
    %v1026 = vmul.f32 %v1025, 1.442695
    %v1027 = vpow.pop %v1026
    %v1028 = vadd.f32 %v1027, 1.0
    %v1029 = vrcp.pop %v1028
    %v1030 = vmul.f32 %v1028, %v1029
    %v1031 = vsub.f32 1.0, %v1030
    %v1032 = vmul.f32 %v1029, %v1031
    %v1033 = vadd.f32 %v1029, %v1032
    %vm1034 = vweird.f32 %v1028
    %vm1035 = vweird.f32 %v1029
    %vm1036 = vmor %vm1034, %vm1035
    %v1037 = vsel %vm1036, %v1029, %v1033
    %v1038 = vand.u32 2147483647, %v1028
    %vm1039 = vcmp.eq.f32.partialorder %v1038, 8.507059e+37
    %v1040 = vand.u32 %v1028, 2147483648
    %v1041 = vor.u32 1.1754944e-38, %v1040
    %v1042 = vsel %vm1039, %v1041, %v1037
    %v1043 = vmul.f32 1.0, %v1042
    %v1044 = vmul.f32 %v1023, %v1002
    %v1045 = vadd.f32 %v940, %v1044
    %v1046 = vtanh.pop %v1045
    %v1047 = vsub.f32 %v818, %v1046
    %v1048 = vmul.f32 %v1043, %v1047
    %v1049 = vadd.f32 %v1046, %v1048
    %v1050 = vld [vmem:[%s337 + $0x28] sm:$0xff]
    %v1051 = vld [vmem:[%s378 + $0x28] sm:$0xff]
    %v1052 = vld [vmem:[%s411 + $0x28] sm:$0xff]
    %v1053 = vsel %vm138, %v929, 0
    %1055 = vmatpush.msra.mxu0 0.0
    %1056 = vmatpush.msra.mxu0 0.0
    %1057 = vmatpush.msra.mxu0 0.0
    %1058 = vmatpush.msra.mxu0 0.0
    %1059 = vmatpush.msra.mxu0 0.0
    %1060 = vmatpush.msra.mxu0 0.0
    %1061 = vmatpush.msra.mxu0 0.0
    %1062 = vmatpush.msra.mxu0 0.0
    %1063 = vmatpush.msra.mxu0 0.0
    %1064 = vmatpush.msra.mxu0 0.0
    %1065 = vmatpush.msra.mxu0 0.0
    %1066 = vmatpush.msra.mxu0 0.0
    %1067 = vmatpush.msra.mxu0 %v438
    %1068 = vmatpush.msra.mxu0 %v437
    %1069 = vmatpush.msra.mxu0 %v436
    %1070 = vmatpush.msra.mxu0 %v435
    %1071 = vmatmul.f32.gmra.mxu0 %v1053
    %v1072 = vpop.f32.mrf.mxu0
    %v1073 = vadd.f32 %v585, %v1072
    %1074 = vdwg.mxu0
    %1075 = vmatpush.msra.mxu0 0.0
    %1076 = vmatpush.msra.mxu0 0.0
    %1077 = vmatpush.msra.mxu0 0.0
    %1078 = vmatpush.msra.mxu0 0.0
    %1079 = vmatpush.msra.mxu0 0.0
    %1080 = vmatpush.msra.mxu0 0.0
    %1081 = vmatpush.msra.mxu0 0.0
    %1082 = vmatpush.msra.mxu0 0.0
    %1083 = vmatpush.msra.mxu0 0.0
    %1084 = vmatpush.msra.mxu0 0.0
    %1085 = vmatpush.msra.mxu0 0.0
    %1086 = vmatpush.msra.mxu0 0.0
    %1087 = vmatpush.msra.mxu0 %v443
    %1088 = vmatpush.msra.mxu0 %v442
    %1089 = vmatpush.msra.mxu0 %v441
    %1090 = vmatpush.msra.mxu0 %v440
    %1091 = vmatmul.f32.gmra.mxu0 %v1053
    %v1092 = vpop.f32.mrf.mxu0
    %v1093 = vadd.f32 %v608, %v1092
    %1094 = vdwg.mxu0
    %1095 = vmatpush.msra.mxu0 0.0
    %1096 = vmatpush.msra.mxu0 0.0
    %1097 = vmatpush.msra.mxu0 0.0
    %1098 = vmatpush.msra.mxu0 0.0
    %1099 = vmatpush.msra.mxu0 0.0
    %1100 = vmatpush.msra.mxu0 0.0
    %1101 = vmatpush.msra.mxu0 0.0
    %1102 = vmatpush.msra.mxu0 0.0
    %1103 = vmatpush.msra.mxu0 0.0
    %1104 = vmatpush.msra.mxu0 0.0
    %1105 = vmatpush.msra.mxu0 0.0
    %1106 = vmatpush.msra.mxu0 0.0
    %1107 = vmatpush.msra.mxu0 %v448
    %1108 = vmatpush.msra.mxu0 %v447
    %1109 = vmatpush.msra.mxu0 %v446
    %1110 = vmatpush.msra.mxu0 %v445
    %1111 = vmatmul.f32.gmra.mxu0 %v1053
    %v1112 = vpop.f32.mrf.mxu0
    %v1113 = vadd.f32 %v631, %v1112
    %1114 = vdwg.mxu0
    %v1115 = vadd.f32 %v1050, %v1073
    %v1116 = vxor.u32 %v1115, 2147483648
    %v1117 = vmul.f32 %v1116, 1.442695
    %v1118 = vpow.pop %v1117
    %v1119 = vadd.f32 %v1118, 1.0
    %v1120 = vrcp.pop %v1119
    %v1121 = vmul.f32 %v1119, %v1120
    %v1122 = vsub.f32 1.0, %v1121
    %v1123 = vmul.f32 %v1120, %v1122
    %v1124 = vadd.f32 %v1120, %v1123
    %vm1125 = vweird.f32 %v1119
    %vm1126 = vweird.f32 %v1120
    %vm1127 = vmor %vm1125, %vm1126
    %v1128 = vsel %vm1127, %v1120, %v1124
    %v1129 = vand.u32 2147483647, %v1119
    %vm1130 = vcmp.eq.f32.partialorder %v1129, 8.507059e+37
    %v1131 = vand.u32 %v1119, 2147483648
    %v1132 = vor.u32 1.1754944e-38, %v1131
    %v1133 = vsel %vm1130, %v1132, %v1128
    %v1134 = vmul.f32 1.0, %v1133
    %v1135 = vadd.f32 %v1051, %v1093
    %v1136 = vxor.u32 %v1135, 2147483648
    %v1137 = vmul.f32 %v1136, 1.442695
    %v1138 = vpow.pop %v1137
    %v1139 = vadd.f32 %v1138, 1.0
    %v1140 = vrcp.pop %v1139
    %v1141 = vmul.f32 %v1139, %v1140
    %v1142 = vsub.f32 1.0, %v1141
    %v1143 = vmul.f32 %v1140, %v1142
    %v1144 = vadd.f32 %v1140, %v1143
    %vm1145 = vweird.f32 %v1139
    %vm1146 = vweird.f32 %v1140
    %vm1147 = vmor %vm1145, %vm1146
    %v1148 = vsel %vm1147, %v1140, %v1144
    %v1149 = vand.u32 2147483647, %v1139
    %vm1150 = vcmp.eq.f32.partialorder %v1149, 8.507059e+37
    %v1151 = vand.u32 %v1139, 2147483648
    %v1152 = vor.u32 1.1754944e-38, %v1151
    %v1153 = vsel %vm1150, %v1152, %v1148
    %v1154 = vmul.f32 1.0, %v1153
    %v1155 = vmul.f32 %v1134, %v1113
    %v1156 = vadd.f32 %v1052, %v1155
    %v1157 = vtanh.pop %v1156
    %v1158 = vsub.f32 %v929, %v1157
    %v1159 = vmul.f32 %v1154, %v1158
    %v1160 = vadd.f32 %v1157, %v1159
    %s1161 = scalar_lea.vmem [#allocation14], 16
    %1162 = vst.msk [vmem:[%s1161] sm:$0xff] %vm138, %v1049
    %1164 = vrot.lane.b32.xlu0 %v1160, 32
    %v1165 = vpop.permute.xlu0 %1164
    %s1167 = scalar_lea.vmem [#allocation14], 40
    %1168 = vst.msk [vmem:[%s1167] sm:$0xff] %vm705, %v1165
    %v1169 = vld [vmem:[#allocation2 + $0x18] sm:$0xff]
    %v1170 = vld [vmem:[%s244 + $0x18] sm:$0xff]
    %v1171 = vld [vmem:[%s277 + $0x18] sm:$0xff]
    %v1173 = vsel %vm138, %v1049, 0
    %1175 = vmatpush.msra.mxu0 0.0
    %1176 = vmatpush.msra.mxu0 0.0
    %1177 = vmatpush.msra.mxu0 0.0
    %1178 = vmatpush.msra.mxu0 0.0
    %1179 = vmatpush.msra.mxu0 0.0
    %1180 = vmatpush.msra.mxu0 0.0
    %1181 = vmatpush.msra.mxu0 0.0
    %1182 = vmatpush.msra.mxu0 0.0
    %1183 = vmatpush.msra.mxu0 0.0
    %1184 = vmatpush.msra.mxu0 0.0
    %1185 = vmatpush.msra.mxu0 0.0
    %1186 = vmatpush.msra.mxu0 0.0
    %1187 = vmatpush.msra.mxu0 %v423
    %1188 = vmatpush.msra.mxu0 %v422
    %1189 = vmatpush.msra.mxu0 %v421
    %1190 = vmatpush.msra.mxu0 %v420
    %1191 = vmatmul.f32.gmra.mxu0 %v1173
    %v1192 = vpop.f32.mrf.mxu0
    %v1193 = vadd.f32 %v464, %v1192
    %1194 = vdwg.mxu0
    %1195 = vmatpush.msra.mxu0 0.0
    %1196 = vmatpush.msra.mxu0 0.0
    %1197 = vmatpush.msra.mxu0 0.0
    %1198 = vmatpush.msra.mxu0 0.0
    %1199 = vmatpush.msra.mxu0 0.0
    %1200 = vmatpush.msra.mxu0 0.0
    %1201 = vmatpush.msra.mxu0 0.0
    %1202 = vmatpush.msra.mxu0 0.0
    %1203 = vmatpush.msra.mxu0 0.0
    %1204 = vmatpush.msra.mxu0 0.0
    %1205 = vmatpush.msra.mxu0 0.0
    %1206 = vmatpush.msra.mxu0 0.0
    %1207 = vmatpush.msra.mxu0 %v428
    %1208 = vmatpush.msra.mxu0 %v427
    %1209 = vmatpush.msra.mxu0 %v426
    %1210 = vmatpush.msra.mxu0 %v425
    %1211 = vmatmul.f32.gmra.mxu0 %v1173
    %v1212 = vpop.f32.mrf.mxu0
    %v1213 = vadd.f32 %v490, %v1212
    %1214 = vdwg.mxu0
    %1215 = vmatpush.msra.mxu0 0.0
    %1216 = vmatpush.msra.mxu0 0.0
    %1217 = vmatpush.msra.mxu0 0.0
    %1218 = vmatpush.msra.mxu0 0.0
    %1219 = vmatpush.msra.mxu0 0.0
    %1220 = vmatpush.msra.mxu0 0.0
    %1221 = vmatpush.msra.mxu0 0.0
    %1222 = vmatpush.msra.mxu0 0.0
    %1223 = vmatpush.msra.mxu0 0.0
    %1224 = vmatpush.msra.mxu0 0.0
    %1225 = vmatpush.msra.mxu0 0.0
    %1226 = vmatpush.msra.mxu0 0.0
    %1227 = vmatpush.msra.mxu0 %v433
    %1228 = vmatpush.msra.mxu0 %v432
    %1229 = vmatpush.msra.mxu0 %v431
    %1230 = vmatpush.msra.mxu0 %v430
    %1231 = vmatmul.f32.gmra.mxu0 %v1173
    %v1232 = vpop.f32.mrf.mxu0
    %v1233 = vadd.f32 %v513, %v1232
    %1234 = vdwg.mxu0
    %v1235 = vadd.f32 %v1169, %v1193
    %v1236 = vxor.u32 %v1235, 2147483648
    %v1237 = vmul.f32 %v1236, 1.442695
    %v1238 = vpow.pop %v1237
    %v1239 = vadd.f32 %v1238, 1.0
    %v1240 = vrcp.pop %v1239
    %v1241 = vmul.f32 %v1239, %v1240
    %v1242 = vsub.f32 1.0, %v1241
    %v1243 = vmul.f32 %v1240, %v1242
    %v1244 = vadd.f32 %v1240, %v1243
    %vm1245 = vweird.f32 %v1239
    %vm1246 = vweird.f32 %v1240
    %vm1247 = vmor %vm1245, %vm1246
    %v1248 = vsel %vm1247, %v1240, %v1244
    %v1249 = vand.u32 2147483647, %v1239
    %vm1250 = vcmp.eq.f32.partialorder %v1249, 8.507059e+37
    %v1251 = vand.u32 %v1239, 2147483648
    %v1252 = vor.u32 1.1754944e-38, %v1251
    %v1253 = vsel %vm1250, %v1252, %v1248
    %v1254 = vmul.f32 1.0, %v1253
    %v1255 = vadd.f32 %v1170, %v1213
    %v1256 = vxor.u32 %v1255, 2147483648
    %v1257 = vmul.f32 %v1256, 1.442695
    %v1258 = vpow.pop %v1257
    %v1259 = vadd.f32 %v1258, 1.0
    %v1260 = vrcp.pop %v1259
    %v1261 = vmul.f32 %v1259, %v1260
    %v1262 = vsub.f32 1.0, %v1261
    %v1263 = vmul.f32 %v1260, %v1262
    %v1264 = vadd.f32 %v1260, %v1263
    %vm1265 = vweird.f32 %v1259
    %vm1266 = vweird.f32 %v1260
    %vm1267 = vmor %vm1265, %vm1266
    %v1268 = vsel %vm1267, %v1260, %v1264
    %v1269 = vand.u32 2147483647, %v1259
    %vm1270 = vcmp.eq.f32.partialorder %v1269, 8.507059e+37
    %v1271 = vand.u32 %v1259, 2147483648
    %v1272 = vor.u32 1.1754944e-38, %v1271
    %v1273 = vsel %vm1270, %v1272, %v1268
    %v1274 = vmul.f32 1.0, %v1273
    %v1275 = vmul.f32 %v1254, %v1233
    %v1276 = vadd.f32 %v1171, %v1275
    %v1277 = vtanh.pop %v1276
    %v1278 = vsub.f32 %v1049, %v1277
    %v1279 = vmul.f32 %v1274, %v1278
    %v1280 = vadd.f32 %v1277, %v1279
    %v1281 = vld [vmem:[%s337 + $0x20] sm:$0xff]
    %v1282 = vld [vmem:[%s378 + $0x20] sm:$0xff]
    %v1283 = vld [vmem:[%s411 + $0x20] sm:$0xff]
    %v1284 = vsel %vm138, %v1160, 0
    %1286 = vmatpush.msra.mxu0 0.0
    %1287 = vmatpush.msra.mxu0 0.0
    %1288 = vmatpush.msra.mxu0 0.0
    %1289 = vmatpush.msra.mxu0 0.0
    %1290 = vmatpush.msra.mxu0 0.0
    %1291 = vmatpush.msra.mxu0 0.0
    %1292 = vmatpush.msra.mxu0 0.0
    %1293 = vmatpush.msra.mxu0 0.0
    %1294 = vmatpush.msra.mxu0 0.0
    %1295 = vmatpush.msra.mxu0 0.0
    %1296 = vmatpush.msra.mxu0 0.0
    %1297 = vmatpush.msra.mxu0 0.0
    %1298 = vmatpush.msra.mxu0 %v438
    %1299 = vmatpush.msra.mxu0 %v437
    %1300 = vmatpush.msra.mxu0 %v436
    %1301 = vmatpush.msra.mxu0 %v435
    %1302 = vmatmul.f32.gmra.mxu0 %v1284
    %v1303 = vpop.f32.mrf.mxu0
    %v1304 = vadd.f32 %v585, %v1303
    %1305 = vdwg.mxu0
    %1306 = vmatpush.msra.mxu0 0.0
    %1307 = vmatpush.msra.mxu0 0.0
    %1308 = vmatpush.msra.mxu0 0.0
    %1309 = vmatpush.msra.mxu0 0.0
    %1310 = vmatpush.msra.mxu0 0.0
    %1311 = vmatpush.msra.mxu0 0.0
    %1312 = vmatpush.msra.mxu0 0.0
    %1313 = vmatpush.msra.mxu0 0.0
    %1314 = vmatpush.msra.mxu0 0.0
    %1315 = vmatpush.msra.mxu0 0.0
    %1316 = vmatpush.msra.mxu0 0.0
    %1317 = vmatpush.msra.mxu0 0.0
    %1318 = vmatpush.msra.mxu0 %v443
    %1319 = vmatpush.msra.mxu0 %v442
    %1320 = vmatpush.msra.mxu0 %v441
    %1321 = vmatpush.msra.mxu0 %v440
    %1322 = vmatmul.f32.gmra.mxu0 %v1284
    %v1323 = vpop.f32.mrf.mxu0
    %v1324 = vadd.f32 %v608, %v1323
    %1325 = vdwg.mxu0
    %1326 = vmatpush.msra.mxu0 0.0
    %1327 = vmatpush.msra.mxu0 0.0
    %1328 = vmatpush.msra.mxu0 0.0
    %1329 = vmatpush.msra.mxu0 0.0
    %1330 = vmatpush.msra.mxu0 0.0
    %1331 = vmatpush.msra.mxu0 0.0
    %1332 = vmatpush.msra.mxu0 0.0
    %1333 = vmatpush.msra.mxu0 0.0
    %1334 = vmatpush.msra.mxu0 0.0
    %1335 = vmatpush.msra.mxu0 0.0
    %1336 = vmatpush.msra.mxu0 0.0
    %1337 = vmatpush.msra.mxu0 0.0
    %1338 = vmatpush.msra.mxu0 %v448
    %1339 = vmatpush.msra.mxu0 %v447
    %1340 = vmatpush.msra.mxu0 %v446
    %1341 = vmatpush.msra.mxu0 %v445
    %1342 = vmatmul.f32.gmra.mxu0 %v1284
    %v1343 = vpop.f32.mrf.mxu0
    %v1344 = vadd.f32 %v631, %v1343
    %1345 = vdwg.mxu0
    %v1346 = vadd.f32 %v1281, %v1304
    %v1347 = vxor.u32 %v1346, 2147483648
    %v1348 = vmul.f32 %v1347, 1.442695
    %v1349 = vpow.pop %v1348
    %v1350 = vadd.f32 %v1349, 1.0
    %v1351 = vrcp.pop %v1350
    %v1352 = vmul.f32 %v1350, %v1351
    %v1353 = vsub.f32 1.0, %v1352
    %v1354 = vmul.f32 %v1351, %v1353
    %v1355 = vadd.f32 %v1351, %v1354
    %vm1356 = vweird.f32 %v1350
    %vm1357 = vweird.f32 %v1351
    %vm1358 = vmor %vm1356, %vm1357
    %v1359 = vsel %vm1358, %v1351, %v1355
    %v1360 = vand.u32 2147483647, %v1350
    %vm1361 = vcmp.eq.f32.partialorder %v1360, 8.507059e+37
    %v1362 = vand.u32 %v1350, 2147483648
    %v1363 = vor.u32 1.1754944e-38, %v1362
    %v1364 = vsel %vm1361, %v1363, %v1359
    %v1365 = vmul.f32 1.0, %v1364
    %v1366 = vadd.f32 %v1282, %v1324
    %v1367 = vxor.u32 %v1366, 2147483648
    %v1368 = vmul.f32 %v1367, 1.442695
    %v1369 = vpow.pop %v1368
    %v1370 = vadd.f32 %v1369, 1.0
    %v1371 = vrcp.pop %v1370
    %v1372 = vmul.f32 %v1370, %v1371
    %v1373 = vsub.f32 1.0, %v1372
    %v1374 = vmul.f32 %v1371, %v1373
    %v1375 = vadd.f32 %v1371, %v1374
    %vm1376 = vweird.f32 %v1370
    %vm1377 = vweird.f32 %v1371
    %vm1378 = vmor %vm1376, %vm1377
    %v1379 = vsel %vm1378, %v1371, %v1375
    %v1380 = vand.u32 2147483647, %v1370
    %vm1381 = vcmp.eq.f32.partialorder %v1380, 8.507059e+37
    %v1382 = vand.u32 %v1370, 2147483648
    %v1383 = vor.u32 1.1754944e-38, %v1382
    %v1384 = vsel %vm1381, %v1383, %v1379
    %v1385 = vmul.f32 1.0, %v1384
    %v1386 = vmul.f32 %v1365, %v1344
    %v1387 = vadd.f32 %v1283, %v1386
    %v1388 = vtanh.pop %v1387
    %v1389 = vsub.f32 %v1160, %v1388
    %v1390 = vmul.f32 %v1385, %v1389
    %v1391 = vadd.f32 %v1388, %v1390
    %s1392 = scalar_lea.vmem [#allocation14], 24
    %1393 = vst.msk [vmem:[%s1392] sm:$0xff] %vm138, %v1280
    %1395 = vrot.lane.b32.xlu0 %v1391, 32
    %v1396 = vpop.permute.xlu0 %1395
    %s1398 = scalar_lea.vmem [#allocation14], 32
    %1399 = vst.msk [vmem:[%s1398] sm:$0xff] %vm705, %v1396
    %v1400 = vld [vmem:[#allocation2 + $0x20] sm:$0xff]
    %v1401 = vld [vmem:[%s244 + $0x20] sm:$0xff]
    %v1402 = vld [vmem:[%s277 + $0x20] sm:$0xff]
    %v1404 = vsel %vm138, %v1280, 0
    %1406 = vmatpush.msra.mxu0 0.0
    %1407 = vmatpush.msra.mxu0 0.0
    %1408 = vmatpush.msra.mxu0 0.0
    %1409 = vmatpush.msra.mxu0 0.0
    %1410 = vmatpush.msra.mxu0 0.0
    %1411 = vmatpush.msra.mxu0 0.0
    %1412 = vmatpush.msra.mxu0 0.0
    %1413 = vmatpush.msra.mxu0 0.0
    %1414 = vmatpush.msra.mxu0 0.0
    %1415 = vmatpush.msra.mxu0 0.0
    %1416 = vmatpush.msra.mxu0 0.0
    %1417 = vmatpush.msra.mxu0 0.0
    %1418 = vmatpush.msra.mxu0 %v423
    %1419 = vmatpush.msra.mxu0 %v422
    %1420 = vmatpush.msra.mxu0 %v421
    %1421 = vmatpush.msra.mxu0 %v420
    %1422 = vmatmul.f32.gmra.mxu0 %v1404
    %v1423 = vpop.f32.mrf.mxu0
    %v1424 = vadd.f32 %v464, %v1423
    %1425 = vdwg.mxu0
    %1426 = vmatpush.msra.mxu0 0.0
    %1427 = vmatpush.msra.mxu0 0.0
    %1428 = vmatpush.msra.mxu0 0.0
    %1429 = vmatpush.msra.mxu0 0.0
    %1430 = vmatpush.msra.mxu0 0.0
    %1431 = vmatpush.msra.mxu0 0.0
    %1432 = vmatpush.msra.mxu0 0.0
    %1433 = vmatpush.msra.mxu0 0.0
    %1434 = vmatpush.msra.mxu0 0.0
    %1435 = vmatpush.msra.mxu0 0.0
    %1436 = vmatpush.msra.mxu0 0.0
    %1437 = vmatpush.msra.mxu0 0.0
    %1438 = vmatpush.msra.mxu0 %v428
    %1439 = vmatpush.msra.mxu0 %v427
    %1440 = vmatpush.msra.mxu0 %v426
    %1441 = vmatpush.msra.mxu0 %v425
    %1442 = vmatmul.f32.gmra.mxu0 %v1404
    %v1443 = vpop.f32.mrf.mxu0
    %v1444 = vadd.f32 %v490, %v1443
    %1445 = vdwg.mxu0
    %1446 = vmatpush.msra.mxu0 0.0
    %1447 = vmatpush.msra.mxu0 0.0
    %1448 = vmatpush.msra.mxu0 0.0
    %1449 = vmatpush.msra.mxu0 0.0
    %1450 = vmatpush.msra.mxu0 0.0
    %1451 = vmatpush.msra.mxu0 0.0
    %1452 = vmatpush.msra.mxu0 0.0
    %1453 = vmatpush.msra.mxu0 0.0
    %1454 = vmatpush.msra.mxu0 0.0
    %1455 = vmatpush.msra.mxu0 0.0
    %1456 = vmatpush.msra.mxu0 0.0
    %1457 = vmatpush.msra.mxu0 0.0
    %1458 = vmatpush.msra.mxu0 %v433
    %1459 = vmatpush.msra.mxu0 %v432
    %1460 = vmatpush.msra.mxu0 %v431
    %1461 = vmatpush.msra.mxu0 %v430
    %1462 = vmatmul.f32.gmra.mxu0 %v1404
    %v1463 = vpop.f32.mrf.mxu0
    %v1464 = vadd.f32 %v513, %v1463
    %1465 = vdwg.mxu0
    %v1466 = vadd.f32 %v1400, %v1424
    %v1467 = vxor.u32 %v1466, 2147483648
    %v1468 = vmul.f32 %v1467, 1.442695
    %v1469 = vpow.pop %v1468
    %v1470 = vadd.f32 %v1469, 1.0
    %v1471 = vrcp.pop %v1470
    %v1472 = vmul.f32 %v1470, %v1471
    %v1473 = vsub.f32 1.0, %v1472
    %v1474 = vmul.f32 %v1471, %v1473
    %v1475 = vadd.f32 %v1471, %v1474
    %vm1476 = vweird.f32 %v1470
    %vm1477 = vweird.f32 %v1471
    %vm1478 = vmor %vm1476, %vm1477
    %v1479 = vsel %vm1478, %v1471, %v1475
    %v1480 = vand.u32 2147483647, %v1470
    %vm1481 = vcmp.eq.f32.partialorder %v1480, 8.507059e+37
    %v1482 = vand.u32 %v1470, 2147483648
    %v1483 = vor.u32 1.1754944e-38, %v1482
    %v1484 = vsel %vm1481, %v1483, %v1479
    %v1485 = vmul.f32 1.0, %v1484
    %v1486 = vadd.f32 %v1401, %v1444
    %v1487 = vxor.u32 %v1486, 2147483648
    %v1488 = vmul.f32 %v1487, 1.442695
    %v1489 = vpow.pop %v1488
    %v1490 = vadd.f32 %v1489, 1.0
    %v1491 = vrcp.pop %v1490
    %v1492 = vmul.f32 %v1490, %v1491
    %v1493 = vsub.f32 1.0, %v1492
    %v1494 = vmul.f32 %v1491, %v1493
    %v1495 = vadd.f32 %v1491, %v1494
    %vm1496 = vweird.f32 %v1490
    %vm1497 = vweird.f32 %v1491
    %vm1498 = vmor %vm1496, %vm1497
    %v1499 = vsel %vm1498, %v1491, %v1495
    %v1500 = vand.u32 2147483647, %v1490
    %vm1501 = vcmp.eq.f32.partialorder %v1500, 8.507059e+37
    %v1502 = vand.u32 %v1490, 2147483648
    %v1503 = vor.u32 1.1754944e-38, %v1502
    %v1504 = vsel %vm1501, %v1503, %v1499
    %v1505 = vmul.f32 1.0, %v1504
    %v1506 = vmul.f32 %v1485, %v1464
    %v1507 = vadd.f32 %v1402, %v1506
    %v1508 = vtanh.pop %v1507
    %v1509 = vsub.f32 %v1280, %v1508
    %v1510 = vmul.f32 %v1505, %v1509
    %v1511 = vadd.f32 %v1508, %v1510
    %v1512 = vld [vmem:[%s337 + $0x18] sm:$0xff]
    %v1513 = vld [vmem:[%s378 + $0x18] sm:$0xff]
    %v1514 = vld [vmem:[%s411 + $0x18] sm:$0xff]
    %v1515 = vsel %vm138, %v1391, 0
    %1517 = vmatpush.msra.mxu0 0.0
    %1518 = vmatpush.msra.mxu0 0.0
    %1519 = vmatpush.msra.mxu0 0.0
    %1520 = vmatpush.msra.mxu0 0.0
    %1521 = vmatpush.msra.mxu0 0.0
    %1522 = vmatpush.msra.mxu0 0.0
    %1523 = vmatpush.msra.mxu0 0.0
    %1524 = vmatpush.msra.mxu0 0.0
    %1525 = vmatpush.msra.mxu0 0.0
    %1526 = vmatpush.msra.mxu0 0.0
    %1527 = vmatpush.msra.mxu0 0.0
    %1528 = vmatpush.msra.mxu0 0.0
    %1529 = vmatpush.msra.mxu0 %v438
    %1530 = vmatpush.msra.mxu0 %v437
    %1531 = vmatpush.msra.mxu0 %v436
    %1532 = vmatpush.msra.mxu0 %v435
    %1533 = vmatmul.f32.gmra.mxu0 %v1515
    %v1534 = vpop.f32.mrf.mxu0
    %v1535 = vadd.f32 %v585, %v1534
    %1536 = vdwg.mxu0
    %1537 = vmatpush.msra.mxu0 0.0
    %1538 = vmatpush.msra.mxu0 0.0
    %1539 = vmatpush.msra.mxu0 0.0
    %1540 = vmatpush.msra.mxu0 0.0
    %1541 = vmatpush.msra.mxu0 0.0
    %1542 = vmatpush.msra.mxu0 0.0
    %1543 = vmatpush.msra.mxu0 0.0
    %1544 = vmatpush.msra.mxu0 0.0
    %1545 = vmatpush.msra.mxu0 0.0
    %1546 = vmatpush.msra.mxu0 0.0
    %1547 = vmatpush.msra.mxu0 0.0
    %1548 = vmatpush.msra.mxu0 0.0
    %1549 = vmatpush.msra.mxu0 %v443
    %1550 = vmatpush.msra.mxu0 %v442
    %1551 = vmatpush.msra.mxu0 %v441
    %1552 = vmatpush.msra.mxu0 %v440
    %1553 = vmatmul.f32.gmra.mxu0 %v1515
    %v1554 = vpop.f32.mrf.mxu0
    %v1555 = vadd.f32 %v608, %v1554
    %1556 = vdwg.mxu0
    %1557 = vmatpush.msra.mxu0 0.0
    %1558 = vmatpush.msra.mxu0 0.0
    %1559 = vmatpush.msra.mxu0 0.0
    %1560 = vmatpush.msra.mxu0 0.0
    %1561 = vmatpush.msra.mxu0 0.0
    %1562 = vmatpush.msra.mxu0 0.0
    %1563 = vmatpush.msra.mxu0 0.0
    %1564 = vmatpush.msra.mxu0 0.0
    %1565 = vmatpush.msra.mxu0 0.0
    %1566 = vmatpush.msra.mxu0 0.0
    %1567 = vmatpush.msra.mxu0 0.0
    %1568 = vmatpush.msra.mxu0 0.0
    %1569 = vmatpush.msra.mxu0 %v448
    %1570 = vmatpush.msra.mxu0 %v447
    %1571 = vmatpush.msra.mxu0 %v446
    %1572 = vmatpush.msra.mxu0 %v445
    %1573 = vmatmul.f32.gmra.mxu0 %v1515
    %v1574 = vpop.f32.mrf.mxu0
    %v1575 = vadd.f32 %v631, %v1574
    %1576 = vdwg.mxu0
    %v1577 = vadd.f32 %v1512, %v1535
    %v1578 = vxor.u32 %v1577, 2147483648
    %v1579 = vmul.f32 %v1578, 1.442695
    %v1580 = vpow.pop %v1579
    %v1581 = vadd.f32 %v1580, 1.0
    %v1582 = vrcp.pop %v1581
    %v1583 = vmul.f32 %v1581, %v1582
    %v1584 = vsub.f32 1.0, %v1583
    %v1585 = vmul.f32 %v1582, %v1584
    %v1586 = vadd.f32 %v1582, %v1585
    %vm1587 = vweird.f32 %v1581
    %vm1588 = vweird.f32 %v1582
    %vm1589 = vmor %vm1587, %vm1588
    %v1590 = vsel %vm1589, %v1582, %v1586
    %v1591 = vand.u32 2147483647, %v1581
    %vm1592 = vcmp.eq.f32.partialorder %v1591, 8.507059e+37
    %v1593 = vand.u32 %v1581, 2147483648
    %v1594 = vor.u32 1.1754944e-38, %v1593
    %v1595 = vsel %vm1592, %v1594, %v1590
    %v1596 = vmul.f32 1.0, %v1595
    %v1597 = vadd.f32 %v1513, %v1555
    %v1598 = vxor.u32 %v1597, 2147483648
    %v1599 = vmul.f32 %v1598, 1.442695
    %v1600 = vpow.pop %v1599
    %v1601 = vadd.f32 %v1600, 1.0
    %v1602 = vrcp.pop %v1601
    %v1603 = vmul.f32 %v1601, %v1602
    %v1604 = vsub.f32 1.0, %v1603
    %v1605 = vmul.f32 %v1602, %v1604
    %v1606 = vadd.f32 %v1602, %v1605
    %vm1607 = vweird.f32 %v1601
    %vm1608 = vweird.f32 %v1602
    %vm1609 = vmor %vm1607, %vm1608
    %v1610 = vsel %vm1609, %v1602, %v1606
    %v1611 = vand.u32 2147483647, %v1601
    %vm1612 = vcmp.eq.f32.partialorder %v1611, 8.507059e+37
    %v1613 = vand.u32 %v1601, 2147483648
    %v1614 = vor.u32 1.1754944e-38, %v1613
    %v1615 = vsel %vm1612, %v1614, %v1610
    %v1616 = vmul.f32 1.0, %v1615
    %v1617 = vmul.f32 %v1596, %v1575
    %v1618 = vadd.f32 %v1514, %v1617
    %v1619 = vtanh.pop %v1618
    %v1620 = vsub.f32 %v1391, %v1619
    %v1621 = vmul.f32 %v1616, %v1620
    %v1622 = vadd.f32 %v1619, %v1621
    %1623 = vst.msk [vmem:[%s1398] sm:$0xff] %vm138, %v1511
    %1625 = vrot.lane.b32.xlu0 %v1622, 32
    %v1626 = vpop.permute.xlu0 %1625
    %1628 = vst.msk [vmem:[%s1392] sm:$0xff] %vm705, %v1626
    %v1629 = vld [vmem:[#allocation2 + $0x28] sm:$0xff]
    %v1630 = vld [vmem:[%s244 + $0x28] sm:$0xff]
    %v1631 = vld [vmem:[%s277 + $0x28] sm:$0xff]
    %v1633 = vsel %vm138, %v1511, 0
    %1635 = vmatpush.msra.mxu0 0.0
    %1636 = vmatpush.msra.mxu0 0.0
    %1637 = vmatpush.msra.mxu0 0.0
    %1638 = vmatpush.msra.mxu0 0.0
    %1639 = vmatpush.msra.mxu0 0.0
    %1640 = vmatpush.msra.mxu0 0.0
    %1641 = vmatpush.msra.mxu0 0.0
    %1642 = vmatpush.msra.mxu0 0.0
    %1643 = vmatpush.msra.mxu0 0.0
    %1644 = vmatpush.msra.mxu0 0.0
    %1645 = vmatpush.msra.mxu0 0.0
    %1646 = vmatpush.msra.mxu0 0.0
    %1647 = vmatpush.msra.mxu0 %v423
    %1648 = vmatpush.msra.mxu0 %v422
    %1649 = vmatpush.msra.mxu0 %v421
    %1650 = vmatpush.msra.mxu0 %v420
    %1651 = vmatmul.f32.gmra.mxu0 %v1633
    %v1652 = vpop.f32.mrf.mxu0
    %v1653 = vadd.f32 %v464, %v1652
    %1654 = vdwg.mxu0
    %1655 = vmatpush.msra.mxu0 0.0
    %1656 = vmatpush.msra.mxu0 0.0
    %1657 = vmatpush.msra.mxu0 0.0
    %1658 = vmatpush.msra.mxu0 0.0
    %1659 = vmatpush.msra.mxu0 0.0
    %1660 = vmatpush.msra.mxu0 0.0
    %1661 = vmatpush.msra.mxu0 0.0
    %1662 = vmatpush.msra.mxu0 0.0
    %1663 = vmatpush.msra.mxu0 0.0
    %1664 = vmatpush.msra.mxu0 0.0
    %1665 = vmatpush.msra.mxu0 0.0
    %1666 = vmatpush.msra.mxu0 0.0
    %1667 = vmatpush.msra.mxu0 %v428
    %1668 = vmatpush.msra.mxu0 %v427
    %1669 = vmatpush.msra.mxu0 %v426
    %1670 = vmatpush.msra.mxu0 %v425
    %1671 = vmatmul.f32.gmra.mxu0 %v1633
    %v1672 = vpop.f32.mrf.mxu0
    %v1673 = vadd.f32 %v490, %v1672
    %1674 = vdwg.mxu0
    %1675 = vmatpush.msra.mxu0 0.0
    %1676 = vmatpush.msra.mxu0 0.0
    %1677 = vmatpush.msra.mxu0 0.0
    %1678 = vmatpush.msra.mxu0 0.0
    %1679 = vmatpush.msra.mxu0 0.0
    %1680 = vmatpush.msra.mxu0 0.0
    %1681 = vmatpush.msra.mxu0 0.0
    %1682 = vmatpush.msra.mxu0 0.0
    %1683 = vmatpush.msra.mxu0 0.0
    %1684 = vmatpush.msra.mxu0 0.0
    %1685 = vmatpush.msra.mxu0 0.0
    %1686 = vmatpush.msra.mxu0 0.0
    %1687 = vmatpush.msra.mxu0 %v433
    %1688 = vmatpush.msra.mxu0 %v432
    %1689 = vmatpush.msra.mxu0 %v431
    %1690 = vmatpush.msra.mxu0 %v430
    %1691 = vmatmul.f32.gmra.mxu0 %v1633
    %v1692 = vpop.f32.mrf.mxu0
    %v1693 = vadd.f32 %v513, %v1692
    %1694 = vdwg.mxu0
    %v1695 = vadd.f32 %v1629, %v1653
    %v1696 = vxor.u32 %v1695, 2147483648
    %v1697 = vmul.f32 %v1696, 1.442695
    %v1698 = vpow.pop %v1697
    %v1699 = vadd.f32 %v1698, 1.0
    %v1700 = vrcp.pop %v1699
    %v1701 = vmul.f32 %v1699, %v1700
    %v1702 = vsub.f32 1.0, %v1701
    %v1703 = vmul.f32 %v1700, %v1702
    %v1704 = vadd.f32 %v1700, %v1703
    %vm1705 = vweird.f32 %v1699
    %vm1706 = vweird.f32 %v1700
    %vm1707 = vmor %vm1705, %vm1706
    %v1708 = vsel %vm1707, %v1700, %v1704
    %v1709 = vand.u32 2147483647, %v1699
    %vm1710 = vcmp.eq.f32.partialorder %v1709, 8.507059e+37
    %v1711 = vand.u32 %v1699, 2147483648
    %v1712 = vor.u32 1.1754944e-38, %v1711
    %v1713 = vsel %vm1710, %v1712, %v1708
    %v1714 = vmul.f32 1.0, %v1713
    %v1715 = vadd.f32 %v1630, %v1673
    %v1716 = vxor.u32 %v1715, 2147483648
    %v1717 = vmul.f32 %v1716, 1.442695
    %v1718 = vpow.pop %v1717
    %v1719 = vadd.f32 %v1718, 1.0
    %v1720 = vrcp.pop %v1719
    %v1721 = vmul.f32 %v1719, %v1720
    %v1722 = vsub.f32 1.0, %v1721
    %v1723 = vmul.f32 %v1720, %v1722
    %v1724 = vadd.f32 %v1720, %v1723
    %vm1725 = vweird.f32 %v1719
    %vm1726 = vweird.f32 %v1720
    %vm1727 = vmor %vm1725, %vm1726
    %v1728 = vsel %vm1727, %v1720, %v1724
    %v1729 = vand.u32 2147483647, %v1719
    %vm1730 = vcmp.eq.f32.partialorder %v1729, 8.507059e+37
    %v1731 = vand.u32 %v1719, 2147483648
    %v1732 = vor.u32 1.1754944e-38, %v1731
    %v1733 = vsel %vm1730, %v1732, %v1728
    %v1734 = vmul.f32 1.0, %v1733
    %v1735 = vmul.f32 %v1714, %v1693
    %v1736 = vadd.f32 %v1631, %v1735
    %v1737 = vtanh.pop %v1736
    %v1738 = vsub.f32 %v1511, %v1737
    %v1739 = vmul.f32 %v1734, %v1738
    %v1740 = vadd.f32 %v1737, %v1739
    %v1741 = vld [vmem:[%s337 + $0x10] sm:$0xff]
    %v1742 = vld [vmem:[%s378 + $0x10] sm:$0xff]
    %v1743 = vld [vmem:[%s411 + $0x10] sm:$0xff]
    %v1744 = vsel %vm138, %v1622, 0
    %1746 = vmatpush.msra.mxu0 0.0
    %1747 = vmatpush.msra.mxu0 0.0
    %1748 = vmatpush.msra.mxu0 0.0
    %1749 = vmatpush.msra.mxu0 0.0
    %1750 = vmatpush.msra.mxu0 0.0
    %1751 = vmatpush.msra.mxu0 0.0
    %1752 = vmatpush.msra.mxu0 0.0
    %1753 = vmatpush.msra.mxu0 0.0
    %1754 = vmatpush.msra.mxu0 0.0
    %1755 = vmatpush.msra.mxu0 0.0
    %1756 = vmatpush.msra.mxu0 0.0
    %1757 = vmatpush.msra.mxu0 0.0
    %1758 = vmatpush.msra.mxu0 %v438
    %1759 = vmatpush.msra.mxu0 %v437
    %1760 = vmatpush.msra.mxu0 %v436
    %1761 = vmatpush.msra.mxu0 %v435
    %1762 = vmatmul.f32.gmra.mxu0 %v1744
    %v1763 = vpop.f32.mrf.mxu0
    %v1764 = vadd.f32 %v585, %v1763
    %1765 = vdwg.mxu0
    %1766 = vmatpush.msra.mxu0 0.0
    %1767 = vmatpush.msra.mxu0 0.0
    %1768 = vmatpush.msra.mxu0 0.0
    %1769 = vmatpush.msra.mxu0 0.0
    %1770 = vmatpush.msra.mxu0 0.0
    %1771 = vmatpush.msra.mxu0 0.0
    %1772 = vmatpush.msra.mxu0 0.0
    %1773 = vmatpush.msra.mxu0 0.0
    %1774 = vmatpush.msra.mxu0 0.0
    %1775 = vmatpush.msra.mxu0 0.0
    %1776 = vmatpush.msra.mxu0 0.0
    %1777 = vmatpush.msra.mxu0 0.0
    %1778 = vmatpush.msra.mxu0 %v443
    %1779 = vmatpush.msra.mxu0 %v442
    %1780 = vmatpush.msra.mxu0 %v441
    %1781 = vmatpush.msra.mxu0 %v440
    %1782 = vmatmul.f32.gmra.mxu0 %v1744
    %v1783 = vpop.f32.mrf.mxu0
    %v1784 = vadd.f32 %v608, %v1783
    %1785 = vdwg.mxu0
    %1786 = vmatpush.msra.mxu0 0.0
    %1787 = vmatpush.msra.mxu0 0.0
    %1788 = vmatpush.msra.mxu0 0.0
    %1789 = vmatpush.msra.mxu0 0.0
    %1790 = vmatpush.msra.mxu0 0.0
    %1791 = vmatpush.msra.mxu0 0.0
    %1792 = vmatpush.msra.mxu0 0.0
    %1793 = vmatpush.msra.mxu0 0.0
    %1794 = vmatpush.msra.mxu0 0.0
    %1795 = vmatpush.msra.mxu0 0.0
    %1796 = vmatpush.msra.mxu0 0.0
    %1797 = vmatpush.msra.mxu0 0.0
    %1798 = vmatpush.msra.mxu0 %v448
    %1799 = vmatpush.msra.mxu0 %v447
    %1800 = vmatpush.msra.mxu0 %v446
    %1801 = vmatpush.msra.mxu0 %v445
    %1802 = vmatmul.f32.gmra.mxu0 %v1744
    %v1803 = vpop.f32.mrf.mxu0
    %v1804 = vadd.f32 %v631, %v1803
    %1805 = vdwg.mxu0
    %v1806 = vadd.f32 %v1741, %v1764
    %v1807 = vxor.u32 %v1806, 2147483648
    %v1808 = vmul.f32 %v1807, 1.442695
    %v1809 = vpow.pop %v1808
    %v1810 = vadd.f32 %v1809, 1.0
    %v1811 = vrcp.pop %v1810
    %v1812 = vmul.f32 %v1810, %v1811
    %v1813 = vsub.f32 1.0, %v1812
    %v1814 = vmul.f32 %v1811, %v1813
    %v1815 = vadd.f32 %v1811, %v1814
    %vm1816 = vweird.f32 %v1810
    %vm1817 = vweird.f32 %v1811
    %vm1818 = vmor %vm1816, %vm1817
    %v1819 = vsel %vm1818, %v1811, %v1815
    %v1820 = vand.u32 2147483647, %v1810
    %vm1821 = vcmp.eq.f32.partialorder %v1820, 8.507059e+37
    %v1822 = vand.u32 %v1810, 2147483648
    %v1823 = vor.u32 1.1754944e-38, %v1822
    %v1824 = vsel %vm1821, %v1823, %v1819
    %v1825 = vmul.f32 1.0, %v1824
    %v1826 = vadd.f32 %v1742, %v1784
    %v1827 = vxor.u32 %v1826, 2147483648
    %v1828 = vmul.f32 %v1827, 1.442695
    %v1829 = vpow.pop %v1828
    %v1830 = vadd.f32 %v1829, 1.0
    %v1831 = vrcp.pop %v1830
    %v1832 = vmul.f32 %v1830, %v1831
    %v1833 = vsub.f32 1.0, %v1832
    %v1834 = vmul.f32 %v1831, %v1833
    %v1835 = vadd.f32 %v1831, %v1834
    %vm1836 = vweird.f32 %v1830
    %vm1837 = vweird.f32 %v1831
    %vm1838 = vmor %vm1836, %vm1837
    %v1839 = vsel %vm1838, %v1831, %v1835
    %v1840 = vand.u32 2147483647, %v1830
    %vm1841 = vcmp.eq.f32.partialorder %v1840, 8.507059e+37
    %v1842 = vand.u32 %v1830, 2147483648
    %v1843 = vor.u32 1.1754944e-38, %v1842
    %v1844 = vsel %vm1841, %v1843, %v1839
    %v1845 = vmul.f32 1.0, %v1844
    %v1846 = vmul.f32 %v1825, %v1804
    %v1847 = vadd.f32 %v1743, %v1846
    %v1848 = vtanh.pop %v1847
    %v1849 = vsub.f32 %v1622, %v1848
    %v1850 = vmul.f32 %v1845, %v1849
    %v1851 = vadd.f32 %v1848, %v1850
    %1852 = vst.msk [vmem:[%s1167] sm:$0xff] %vm138, %v1740
    %1854 = vrot.lane.b32.xlu0 %v1851, 32
    %v1855 = vpop.permute.xlu0 %1854
    %1857 = vst.msk [vmem:[%s1161] sm:$0xff] %vm705, %v1855
    %v1858 = vld [vmem:[#allocation2 + $0x30] sm:$0xff]
    %v1859 = vld [vmem:[%s244 + $0x30] sm:$0xff]
    %v1860 = vld [vmem:[%s277 + $0x30] sm:$0xff]
    %v1862 = vsel %vm138, %v1740, 0
    %1864 = vmatpush.msra.mxu0 0.0
    %1865 = vmatpush.msra.mxu0 0.0
    %1866 = vmatpush.msra.mxu0 0.0
    %1867 = vmatpush.msra.mxu0 0.0
    %1868 = vmatpush.msra.mxu0 0.0
    %1869 = vmatpush.msra.mxu0 0.0
    %1870 = vmatpush.msra.mxu0 0.0
    %1871 = vmatpush.msra.mxu0 0.0
    %1872 = vmatpush.msra.mxu0 0.0
    %1873 = vmatpush.msra.mxu0 0.0
    %1874 = vmatpush.msra.mxu0 0.0
    %1875 = vmatpush.msra.mxu0 0.0
    %1876 = vmatpush.msra.mxu0 %v423
    %1877 = vmatpush.msra.mxu0 %v422
    %1878 = vmatpush.msra.mxu0 %v421
    %1879 = vmatpush.msra.mxu0 %v420
    %1880 = vmatmul.f32.gmra.mxu0 %v1862
    %v1881 = vpop.f32.mrf.mxu0
    %v1882 = vadd.f32 %v464, %v1881
    %1883 = vdwg.mxu0
    %1884 = vmatpush.msra.mxu0 0.0
    %1885 = vmatpush.msra.mxu0 0.0
    %1886 = vmatpush.msra.mxu0 0.0
    %1887 = vmatpush.msra.mxu0 0.0
    %1888 = vmatpush.msra.mxu0 0.0
    %1889 = vmatpush.msra.mxu0 0.0
    %1890 = vmatpush.msra.mxu0 0.0
    %1891 = vmatpush.msra.mxu0 0.0
    %1892 = vmatpush.msra.mxu0 0.0
    %1893 = vmatpush.msra.mxu0 0.0
    %1894 = vmatpush.msra.mxu0 0.0
    %1895 = vmatpush.msra.mxu0 0.0
    %1896 = vmatpush.msra.mxu0 %v428
    %1897 = vmatpush.msra.mxu0 %v427
    %1898 = vmatpush.msra.mxu0 %v426
    %1899 = vmatpush.msra.mxu0 %v425
    %1900 = vmatmul.f32.gmra.mxu0 %v1862
    %v1901 = vpop.f32.mrf.mxu0
    %v1902 = vadd.f32 %v490, %v1901
    %1903 = vdwg.mxu0
    %1904 = vmatpush.msra.mxu0 0.0
    %1905 = vmatpush.msra.mxu0 0.0
    %1906 = vmatpush.msra.mxu0 0.0
    %1907 = vmatpush.msra.mxu0 0.0
    %1908 = vmatpush.msra.mxu0 0.0
    %1909 = vmatpush.msra.mxu0 0.0
    %1910 = vmatpush.msra.mxu0 0.0
    %1911 = vmatpush.msra.mxu0 0.0
    %1912 = vmatpush.msra.mxu0 0.0
    %1913 = vmatpush.msra.mxu0 0.0
    %1914 = vmatpush.msra.mxu0 0.0
    %1915 = vmatpush.msra.mxu0 0.0
    %1916 = vmatpush.msra.mxu0 %v433
    %1917 = vmatpush.msra.mxu0 %v432
    %1918 = vmatpush.msra.mxu0 %v431
    %1919 = vmatpush.msra.mxu0 %v430
    %1920 = vmatmul.f32.gmra.mxu0 %v1862
    %v1921 = vpop.f32.mrf.mxu0
    %v1922 = vadd.f32 %v513, %v1921
    %1923 = vdwg.mxu0
    %v1924 = vadd.f32 %v1858, %v1882
    %v1925 = vxor.u32 %v1924, 2147483648
    %v1926 = vmul.f32 %v1925, 1.442695
    %v1927 = vpow.pop %v1926
    %v1928 = vadd.f32 %v1927, 1.0
    %v1929 = vrcp.pop %v1928
    %v1930 = vmul.f32 %v1928, %v1929
    %v1931 = vsub.f32 1.0, %v1930
    %v1932 = vmul.f32 %v1929, %v1931
    %v1933 = vadd.f32 %v1929, %v1932
    %vm1934 = vweird.f32 %v1928
    %vm1935 = vweird.f32 %v1929
    %vm1936 = vmor %vm1934, %vm1935
    %v1937 = vsel %vm1936, %v1929, %v1933
    %v1938 = vand.u32 2147483647, %v1928
    %vm1939 = vcmp.eq.f32.partialorder %v1938, 8.507059e+37
    %v1940 = vand.u32 %v1928, 2147483648
    %v1941 = vor.u32 1.1754944e-38, %v1940
    %v1942 = vsel %vm1939, %v1941, %v1937
    %v1943 = vmul.f32 1.0, %v1942
    %v1944 = vadd.f32 %v1859, %v1902
    %v1945 = vxor.u32 %v1944, 2147483648
    %v1946 = vmul.f32 %v1945, 1.442695
    %v1947 = vpow.pop %v1946
    %v1948 = vadd.f32 %v1947, 1.0
    %v1949 = vrcp.pop %v1948
    %v1950 = vmul.f32 %v1948, %v1949
    %v1951 = vsub.f32 1.0, %v1950
    %v1952 = vmul.f32 %v1949, %v1951
    %v1953 = vadd.f32 %v1949, %v1952
    %vm1954 = vweird.f32 %v1948
    %vm1955 = vweird.f32 %v1949
    %vm1956 = vmor %vm1954, %vm1955
    %v1957 = vsel %vm1956, %v1949, %v1953
    %v1958 = vand.u32 2147483647, %v1948
    %vm1959 = vcmp.eq.f32.partialorder %v1958, 8.507059e+37
    %v1960 = vand.u32 %v1948, 2147483648
    %v1961 = vor.u32 1.1754944e-38, %v1960
    %v1962 = vsel %vm1959, %v1961, %v1957
    %v1963 = vmul.f32 1.0, %v1962
    %v1964 = vmul.f32 %v1943, %v1922
    %v1965 = vadd.f32 %v1860, %v1964
    %v1966 = vtanh.pop %v1965
    %v1967 = vsub.f32 %v1740, %v1966
    %v1968 = vmul.f32 %v1963, %v1967
    %v1969 = vadd.f32 %v1966, %v1968
    %v1970 = vld [vmem:[%s337 + $0x8] sm:$0xff]
    %v1971 = vld [vmem:[%s378 + $0x8] sm:$0xff]
    %v1972 = vld [vmem:[%s411 + $0x8] sm:$0xff]
    %v1973 = vsel %vm138, %v1851, 0
    %1975 = vmatpush.msra.mxu0 0.0
    %1976 = vmatpush.msra.mxu0 0.0
    %1977 = vmatpush.msra.mxu0 0.0
    %1978 = vmatpush.msra.mxu0 0.0
    %1979 = vmatpush.msra.mxu0 0.0
    %1980 = vmatpush.msra.mxu0 0.0
    %1981 = vmatpush.msra.mxu0 0.0
    %1982 = vmatpush.msra.mxu0 0.0
    %1983 = vmatpush.msra.mxu0 0.0
    %1984 = vmatpush.msra.mxu0 0.0
    %1985 = vmatpush.msra.mxu0 0.0
    %1986 = vmatpush.msra.mxu0 0.0
    %1987 = vmatpush.msra.mxu0 %v438
    %1988 = vmatpush.msra.mxu0 %v437
    %1989 = vmatpush.msra.mxu0 %v436
    %1990 = vmatpush.msra.mxu0 %v435
    %1991 = vmatmul.f32.gmra.mxu0 %v1973
    %v1992 = vpop.f32.mrf.mxu0
    %v1993 = vadd.f32 %v585, %v1992
    %1994 = vdwg.mxu0
    %1995 = vmatpush.msra.mxu0 0.0
    %1996 = vmatpush.msra.mxu0 0.0
    %1997 = vmatpush.msra.mxu0 0.0
    %1998 = vmatpush.msra.mxu0 0.0
    %1999 = vmatpush.msra.mxu0 0.0
    %2000 = vmatpush.msra.mxu0 0.0
    %2001 = vmatpush.msra.mxu0 0.0
    %2002 = vmatpush.msra.mxu0 0.0
    %2003 = vmatpush.msra.mxu0 0.0
    %2004 = vmatpush.msra.mxu0 0.0
    %2005 = vmatpush.msra.mxu0 0.0
    %2006 = vmatpush.msra.mxu0 0.0
    %2007 = vmatpush.msra.mxu0 %v443
    %2008 = vmatpush.msra.mxu0 %v442
    %2009 = vmatpush.msra.mxu0 %v441
    %2010 = vmatpush.msra.mxu0 %v440
    %2011 = vmatmul.f32.gmra.mxu0 %v1973
    %v2012 = vpop.f32.mrf.mxu0
    %v2013 = vadd.f32 %v608, %v2012
    %2014 = vdwg.mxu0
    %2015 = vmatpush.msra.mxu0 0.0
    %2016 = vmatpush.msra.mxu0 0.0
    %2017 = vmatpush.msra.mxu0 0.0
    %2018 = vmatpush.msra.mxu0 0.0
    %2019 = vmatpush.msra.mxu0 0.0
    %2020 = vmatpush.msra.mxu0 0.0
    %2021 = vmatpush.msra.mxu0 0.0
    %2022 = vmatpush.msra.mxu0 0.0
    %2023 = vmatpush.msra.mxu0 0.0
    %2024 = vmatpush.msra.mxu0 0.0
    %2025 = vmatpush.msra.mxu0 0.0
    %2026 = vmatpush.msra.mxu0 0.0
    %2027 = vmatpush.msra.mxu0 %v448
    %2028 = vmatpush.msra.mxu0 %v447
    %2029 = vmatpush.msra.mxu0 %v446
    %2030 = vmatpush.msra.mxu0 %v445
    %2031 = vmatmul.f32.gmra.mxu0 %v1973
    %v2032 = vpop.f32.mrf.mxu0
    %v2033 = vadd.f32 %v631, %v2032
    %2034 = vdwg.mxu0
    %v2035 = vadd.f32 %v1970, %v1993
    %v2036 = vxor.u32 %v2035, 2147483648
    %v2037 = vmul.f32 %v2036, 1.442695
    %v2038 = vpow.pop %v2037
    %v2039 = vadd.f32 %v2038, 1.0
    %v2040 = vrcp.pop %v2039
    %v2041 = vmul.f32 %v2039, %v2040
    %v2042 = vsub.f32 1.0, %v2041
    %v2043 = vmul.f32 %v2040, %v2042
    %v2044 = vadd.f32 %v2040, %v2043
    %vm2045 = vweird.f32 %v2039
    %vm2046 = vweird.f32 %v2040
    %vm2047 = vmor %vm2045, %vm2046
    %v2048 = vsel %vm2047, %v2040, %v2044
    %v2049 = vand.u32 2147483647, %v2039
    %vm2050 = vcmp.eq.f32.partialorder %v2049, 8.507059e+37
    %v2051 = vand.u32 %v2039, 2147483648
    %v2052 = vor.u32 1.1754944e-38, %v2051
    %v2053 = vsel %vm2050, %v2052, %v2048
    %v2054 = vmul.f32 1.0, %v2053
    %v2055 = vadd.f32 %v1971, %v2013
    %v2056 = vxor.u32 %v2055, 2147483648
    %v2057 = vmul.f32 %v2056, 1.442695
    %v2058 = vpow.pop %v2057
    %v2059 = vadd.f32 %v2058, 1.0
    %v2060 = vrcp.pop %v2059
    %v2061 = vmul.f32 %v2059, %v2060
    %v2062 = vsub.f32 1.0, %v2061
    %v2063 = vmul.f32 %v2060, %v2062
    %v2064 = vadd.f32 %v2060, %v2063
    %vm2065 = vweird.f32 %v2059
    %vm2066 = vweird.f32 %v2060
    %vm2067 = vmor %vm2065, %vm2066
    %v2068 = vsel %vm2067, %v2060, %v2064
    %v2069 = vand.u32 2147483647, %v2059
    %vm2070 = vcmp.eq.f32.partialorder %v2069, 8.507059e+37
    %v2071 = vand.u32 %v2059, 2147483648
    %v2072 = vor.u32 1.1754944e-38, %v2071
    %v2073 = vsel %vm2070, %v2072, %v2068
    %v2074 = vmul.f32 1.0, %v2073
    %v2075 = vmul.f32 %v2054, %v2033
    %v2076 = vadd.f32 %v1972, %v2075
    %v2077 = vtanh.pop %v2076
    %v2078 = vsub.f32 %v1851, %v2077
    %v2079 = vmul.f32 %v2074, %v2078
    %v2080 = vadd.f32 %v2077, %v2079
    %2081 = vst.msk [vmem:[%s936] sm:$0xff] %vm138, %v1969
    %2083 = vrot.lane.b32.xlu0 %v2080, 32
    %v2084 = vpop.permute.xlu0 %2083
    %2086 = vst.msk [vmem:[%s930] sm:$0xff] %vm705, %v2084
    %v2087 = vld [vmem:[#allocation2 + $0x38] sm:$0xff]
    %v2088 = vld [vmem:[%s244 + $0x38] sm:$0xff]
    %v2089 = vld [vmem:[%s277 + $0x38] sm:$0xff]
    %v2091 = vsel %vm138, %v1969, 0
    %2093 = vmatpush.msra.mxu0 0.0
    %2094 = vmatpush.msra.mxu0 0.0
    %2095 = vmatpush.msra.mxu0 0.0
    %2096 = vmatpush.msra.mxu0 0.0
    %2097 = vmatpush.msra.mxu0 0.0
    %2098 = vmatpush.msra.mxu0 0.0
    %2099 = vmatpush.msra.mxu0 0.0
    %2100 = vmatpush.msra.mxu0 0.0
    %2101 = vmatpush.msra.mxu0 0.0
    %2102 = vmatpush.msra.mxu0 0.0
    %2103 = vmatpush.msra.mxu0 0.0
    %2104 = vmatpush.msra.mxu0 0.0
    %2105 = vmatpush.msra.mxu0 %v423
    %2106 = vmatpush.msra.mxu0 %v422
    %2107 = vmatpush.msra.mxu0 %v421
    %2108 = vmatpush.msra.mxu0 %v420
    %2109 = vmatmul.f32.gmra.mxu0 %v2091
    %v2110 = vpop.f32.mrf.mxu0
    %v2111 = vadd.f32 %v464, %v2110
    %2112 = vdwg.mxu0
    %2113 = vmatpush.msra.mxu0 0.0
    %2114 = vmatpush.msra.mxu0 0.0
    %2115 = vmatpush.msra.mxu0 0.0
    %2116 = vmatpush.msra.mxu0 0.0
    %2117 = vmatpush.msra.mxu0 0.0
    %2118 = vmatpush.msra.mxu0 0.0
    %2119 = vmatpush.msra.mxu0 0.0
    %2120 = vmatpush.msra.mxu0 0.0
    %2121 = vmatpush.msra.mxu0 0.0
    %2122 = vmatpush.msra.mxu0 0.0
    %2123 = vmatpush.msra.mxu0 0.0
    %2124 = vmatpush.msra.mxu0 0.0
    %2125 = vmatpush.msra.mxu0 %v428
    %2126 = vmatpush.msra.mxu0 %v427
    %2127 = vmatpush.msra.mxu0 %v426
    %2128 = vmatpush.msra.mxu0 %v425
    %2129 = vmatmul.f32.gmra.mxu0 %v2091
    %v2130 = vpop.f32.mrf.mxu0
    %v2131 = vadd.f32 %v490, %v2130
    %2132 = vdwg.mxu0
    %2133 = vmatpush.msra.mxu0 0.0
    %2134 = vmatpush.msra.mxu0 0.0
    %2135 = vmatpush.msra.mxu0 0.0
    %2136 = vmatpush.msra.mxu0 0.0
    %2137 = vmatpush.msra.mxu0 0.0
    %2138 = vmatpush.msra.mxu0 0.0
    %2139 = vmatpush.msra.mxu0 0.0
    %2140 = vmatpush.msra.mxu0 0.0
    %2141 = vmatpush.msra.mxu0 0.0
    %2142 = vmatpush.msra.mxu0 0.0
    %2143 = vmatpush.msra.mxu0 0.0
    %2144 = vmatpush.msra.mxu0 0.0
    %2145 = vmatpush.msra.mxu0 %v433
    %2146 = vmatpush.msra.mxu0 %v432
    %2147 = vmatpush.msra.mxu0 %v431
    %2148 = vmatpush.msra.mxu0 %v430
    %2149 = vmatmul.f32.gmra.mxu0 %v2091
    %v2150 = vpop.f32.mrf.mxu0
    %v2151 = vadd.f32 %v513, %v2150
    %2152 = vdwg.mxu0
    %v2153 = vadd.f32 %v2087, %v2111
    %v2154 = vxor.u32 %v2153, 2147483648
    %v2155 = vmul.f32 %v2154, 1.442695
    %v2156 = vpow.pop %v2155
    %v2157 = vadd.f32 %v2156, 1.0
    %v2158 = vrcp.pop %v2157
    %v2159 = vmul.f32 %v2157, %v2158
    %v2160 = vsub.f32 1.0, %v2159
    %v2161 = vmul.f32 %v2158, %v2160
    %v2162 = vadd.f32 %v2158, %v2161
    %vm2163 = vweird.f32 %v2157
    %vm2164 = vweird.f32 %v2158
    %vm2165 = vmor %vm2163, %vm2164
    %v2166 = vsel %vm2165, %v2158, %v2162
    %v2167 = vand.u32 2147483647, %v2157
    %vm2168 = vcmp.eq.f32.partialorder %v2167, 8.507059e+37
    %v2169 = vand.u32 %v2157, 2147483648
    %v2170 = vor.u32 1.1754944e-38, %v2169
    %v2171 = vsel %vm2168, %v2170, %v2166
    %v2172 = vmul.f32 1.0, %v2171
    %v2173 = vadd.f32 %v2088, %v2131
    %v2174 = vxor.u32 %v2173, 2147483648
    %v2175 = vmul.f32 %v2174, 1.442695
    %v2176 = vpow.pop %v2175
    %v2177 = vadd.f32 %v2176, 1.0
    %v2178 = vrcp.pop %v2177
    %v2179 = vmul.f32 %v2177, %v2178
    %v2180 = vsub.f32 1.0, %v2179
    %v2181 = vmul.f32 %v2178, %v2180
    %v2182 = vadd.f32 %v2178, %v2181
    %vm2183 = vweird.f32 %v2177
    %vm2184 = vweird.f32 %v2178
    %vm2185 = vmor %vm2183, %vm2184
    %v2186 = vsel %vm2185, %v2178, %v2182
    %v2187 = vand.u32 2147483647, %v2177
    %vm2188 = vcmp.eq.f32.partialorder %v2187, 8.507059e+37
    %v2189 = vand.u32 %v2177, 2147483648
    %v2190 = vor.u32 1.1754944e-38, %v2189
    %v2191 = vsel %vm2188, %v2190, %v2186
    %v2192 = vmul.f32 1.0, %v2191
    %v2193 = vmul.f32 %v2172, %v2151
    %v2194 = vadd.f32 %v2089, %v2193
    %v2195 = vtanh.pop %v2194
    %v2196 = vsub.f32 %v1969, %v2195
    %v2197 = vmul.f32 %v2192, %v2196
    %v2198 = vadd.f32 %v2195, %v2197
    %v2199 = vld [vmem:[%s337] sm:$0xff]
    %v2200 = vld [vmem:[%s378] sm:$0xff]
    %v2201 = vld [vmem:[%s411] sm:$0xff]
    %v2202 = vsel %vm138, %v2080, 0
    %2204 = vmatpush.msra.mxu0 0.0
    %2205 = vmatpush.msra.mxu0 0.0
    %2206 = vmatpush.msra.mxu0 0.0
    %2207 = vmatpush.msra.mxu0 0.0
    %2208 = vmatpush.msra.mxu0 0.0
    %2209 = vmatpush.msra.mxu0 0.0
    %2210 = vmatpush.msra.mxu0 0.0
    %2211 = vmatpush.msra.mxu0 0.0
    %2212 = vmatpush.msra.mxu0 0.0
    %2213 = vmatpush.msra.mxu0 0.0
    %2214 = vmatpush.msra.mxu0 0.0
    %2215 = vmatpush.msra.mxu0 0.0
    %2216 = vmatpush.msra.mxu0 %v438
    %2217 = vmatpush.msra.mxu0 %v437
    %2218 = vmatpush.msra.mxu0 %v436
    %2219 = vmatpush.msra.mxu0 %v435
    %2220 = vmatmul.f32.gmra.mxu0 %v2202
    %v2221 = vpop.f32.mrf.mxu0
    %v2222 = vadd.f32 %v585, %v2221
    %2223 = vdwg.mxu0
    %2224 = vmatpush.msra.mxu0 0.0
    %2225 = vmatpush.msra.mxu0 0.0
    %2226 = vmatpush.msra.mxu0 0.0
    %2227 = vmatpush.msra.mxu0 0.0
    %2228 = vmatpush.msra.mxu0 0.0
    %2229 = vmatpush.msra.mxu0 0.0
    %2230 = vmatpush.msra.mxu0 0.0
    %2231 = vmatpush.msra.mxu0 0.0
    %2232 = vmatpush.msra.mxu0 0.0
    %2233 = vmatpush.msra.mxu0 0.0
    %2234 = vmatpush.msra.mxu0 0.0
    %2235 = vmatpush.msra.mxu0 0.0
    %2236 = vmatpush.msra.mxu0 %v443
    %2237 = vmatpush.msra.mxu0 %v442
    %2238 = vmatpush.msra.mxu0 %v441
    %2239 = vmatpush.msra.mxu0 %v440
    %2240 = vmatmul.f32.gmra.mxu0 %v2202
    %v2241 = vpop.f32.mrf.mxu0
    %v2242 = vadd.f32 %v608, %v2241
    %2243 = vdwg.mxu0
    %2244 = vmatpush.msra.mxu0 0.0
    %2245 = vmatpush.msra.mxu0 0.0
    %2246 = vmatpush.msra.mxu0 0.0
    %2247 = vmatpush.msra.mxu0 0.0
    %2248 = vmatpush.msra.mxu0 0.0
    %2249 = vmatpush.msra.mxu0 0.0
    %2250 = vmatpush.msra.mxu0 0.0
    %2251 = vmatpush.msra.mxu0 0.0
    %2252 = vmatpush.msra.mxu0 0.0
    %2253 = vmatpush.msra.mxu0 0.0
    %2254 = vmatpush.msra.mxu0 0.0
    %2255 = vmatpush.msra.mxu0 0.0
    %2256 = vmatpush.msra.mxu0 %v448
    %2257 = vmatpush.msra.mxu0 %v447
    %2258 = vmatpush.msra.mxu0 %v446
    %2259 = vmatpush.msra.mxu0 %v445
    %2260 = vmatmul.f32.gmra.mxu0 %v2202
    %v2261 = vpop.f32.mrf.mxu0
    %v2262 = vadd.f32 %v631, %v2261
    %2263 = vdwg.mxu0
    %v2264 = vadd.f32 %v2199, %v2222
    %v2265 = vxor.u32 %v2264, 2147483648
    %v2266 = vmul.f32 %v2265, 1.442695
    %v2267 = vpow.pop %v2266
    %v2268 = vadd.f32 %v2267, 1.0
    %v2269 = vrcp.pop %v2268
    %v2270 = vmul.f32 %v2268, %v2269
    %v2271 = vsub.f32 1.0, %v2270
    %v2272 = vmul.f32 %v2269, %v2271
    %v2273 = vadd.f32 %v2269, %v2272
    %vm2274 = vweird.f32 %v2268
    %vm2275 = vweird.f32 %v2269
    %vm2276 = vmor %vm2274, %vm2275
    %v2277 = vsel %vm2276, %v2269, %v2273
    %v2278 = vand.u32 2147483647, %v2268
    %vm2279 = vcmp.eq.f32.partialorder %v2278, 8.507059e+37
    %v2280 = vand.u32 %v2268, 2147483648
    %v2281 = vor.u32 1.1754944e-38, %v2280
    %v2282 = vsel %vm2279, %v2281, %v2277
    %v2283 = vmul.f32 1.0, %v2282
    %v2284 = vadd.f32 %v2200, %v2242
    %v2285 = vxor.u32 %v2284, 2147483648
    %v2286 = vmul.f32 %v2285, 1.442695
    %v2287 = vpow.pop %v2286
    %v2288 = vadd.f32 %v2287, 1.0
    %v2289 = vrcp.pop %v2288
    %v2290 = vmul.f32 %v2288, %v2289
    %v2291 = vsub.f32 1.0, %v2290
    %v2292 = vmul.f32 %v2289, %v2291
    %v2293 = vadd.f32 %v2289, %v2292
    %vm2294 = vweird.f32 %v2288
    %vm2295 = vweird.f32 %v2289
    %vm2296 = vmor %vm2294, %vm2295
    %v2297 = vsel %vm2296, %v2289, %v2293
    %v2298 = vand.u32 2147483647, %v2288
    %vm2299 = vcmp.eq.f32.partialorder %v2298, 8.507059e+37
    %v2300 = vand.u32 %v2288, 2147483648
    %v2301 = vor.u32 1.1754944e-38, %v2300
    %v2302 = vsel %vm2299, %v2301, %v2297
    %v2303 = vmul.f32 1.0, %v2302
    %v2304 = vmul.f32 %v2283, %v2262
    %v2305 = vadd.f32 %v2201, %v2304
    %v2306 = vtanh.pop %v2305
    %v2307 = vsub.f32 %v2080, %v2306
    %v2308 = vmul.f32 %v2303, %v2307
    %v2309 = vadd.f32 %v2306, %v2308
    %2310 = vst.msk [vmem:[%s704] sm:$0xff] %vm138, %v2198
    %2312 = vrot.lane.b32.xlu0 %v2309, 32
    %v2313 = vpop.permute.xlu0 %2312
    %2315 = vst.msk [vmem:[#allocation14] sm:$0xff] %vm705, %v2313
    %v2316 = vld [vmem:[#allocation11] sm:$0xff]
    %v2317 = vld [vmem:[#allocation11 + $0x8] sm:$0xff]
    %v2318 = vld [vmem:[#allocation11 + $0x10] sm:$0xff]
    %v2319 = vld [vmem:[#allocation11 + $0x18] sm:$0xff]
    %s2320 = scalar_lea.vmem [#allocation11], 32
    %v2321 = vld [vmem:[%s2320] sm:$0xff]
    %v2322 = vld [vmem:[%s2320 + $0x8] sm:$0xff]
    %v2323 = vld [vmem:[%s2320 + $0x10] sm:$0xff]
    %v2324 = vld [vmem:[%s2320 + $0x18] sm:$0xff]
    %v2325 = vsel %vm138, %v2309, 0
    %2327 = vmatpush.msra.mxu0 0.0
    %2328 = vmatpush.msra.mxu0 0.0
    %2329 = vmatpush.msra.mxu0 0.0
    %2330 = vmatpush.msra.mxu0 0.0
    %2331 = vmatpush.msra.mxu0 0.0
    %2332 = vmatpush.msra.mxu0 0.0
    %2333 = vmatpush.msra.mxu0 0.0
    %2334 = vmatpush.msra.mxu0 0.0
    %2335 = vmatpush.msra.mxu0 0.0
    %2336 = vmatpush.msra.mxu0 0.0
    %2337 = vmatpush.msra.mxu0 0.0
    %2338 = vmatpush.msra.mxu0 0.0
    %2339 = vmatpush.msra.mxu0 %v2324
    %2340 = vmatpush.msra.mxu0 %v2323
    %2341 = vmatpush.msra.mxu0 %v2322
    %2342 = vmatpush.msra.mxu0 %v2321
    %2343 = vmatmul.f32.gmra.mxu0 %v2325
    %v2344 = vpop.f32.mrf.mxu0
    %v2345 = vadd.f32 0.0, %v2344
    %2346 = vdwg.mxu0
    %v2348 = vsel %vm138, %v2198, 0
    %2350 = vmatpush.msra.mxu0 0.0
    %2351 = vmatpush.msra.mxu0 0.0
    %2352 = vmatpush.msra.mxu0 0.0
    %2353 = vmatpush.msra.mxu0 0.0
    %2354 = vmatpush.msra.mxu0 0.0
    %2355 = vmatpush.msra.mxu0 0.0
    %2356 = vmatpush.msra.mxu0 0.0
    %2357 = vmatpush.msra.mxu0 0.0
    %2358 = vmatpush.msra.mxu0 0.0
    %2359 = vmatpush.msra.mxu0 0.0
    %2360 = vmatpush.msra.mxu0 0.0
    %2361 = vmatpush.msra.mxu0 0.0
    %2362 = vmatpush.msra.mxu0 %v2319
    %2363 = vmatpush.msra.mxu0 %v2318
    %2364 = vmatpush.msra.mxu0 %v2317
    %2365 = vmatpush.msra.mxu0 %v2316
    %2366 = vmatmul.f32.gmra.mxu0 %v2348
    %v2367 = vpop.f32.mrf.mxu0
    %v2368 = vadd.f32 %v2345, %v2367
    %2369 = vdwg.mxu0
    %v2370 = vld [vmem:[#allocation12] sm:$0x1]
    %v2372 = vperm.slane %v2370, 0
    %v2374 = vadd.f32 %v2368, %v2372
    %v2375 = vtanh.pop %v2374
    %2376 = vst.msk [vmem:[#allocation15] sm:$0xff] %vm138, %v2375
    // Predicated region
    $region54: #{encoder_forward.1} parent=1 // pred_check
      _
    $region55: #{encoder_forward.1} parent=1 // pred_check_branch
      %2378 = sbr.rel (0) target = $region57
    $region56: #{encoder_forward.1} parent=1 // pred_region
      %2380 = vsyncadd [#allocation5], 0
      %s2381 = sshll.u32 [#allocation14], 4
      %s2382 = int_to_ptr.vmem [resolvable:$true] %s2381
      %s2383 = sshll.u32 %s7, 4
      %s2384 = int_to_ptr.hbm [resolvable:$true] %s2383
      %2389 = dma.vmem_to_hbm [thread:$0]  %s2382, 1024, %s2384, [#allocation5], 128, 128, 8
    $region57: #{encoder_forward.1} parent=1 // pred_fallthru
      _
    // Predicated region
    $region58: #{encoder_forward.1} parent=1 // pred_check
      _
    $region59: #{encoder_forward.1} parent=1 // pred_check_branch
      %2391 = sbr.rel (0) target = $region61
    $region60: #{encoder_forward.1} parent=1 // pred_region
      %2393 = vsyncadd [#allocation16], 0
      %s2395 = sshll.u32 [#allocation15], 4
      %s2396 = int_to_ptr.vmem [resolvable:$true] %s2395
      %s2397 = sshll.u32 %s8, 4
      %s2398 = int_to_ptr.hbm [resolvable:$true] %s2397
      %2400 = dma.vmem_to_hbm [thread:$0]  %s2396, 128, %s2398, [#allocation16]
    $region61: #{encoder_forward.1} parent=1 // pred_fallthru
      _
    // Predicated region
    $region62: #{encoder_forward.1} parent=1 // pred_check
      _
    $region63: #{encoder_forward.1} parent=1 // pred_check_branch
      %2402 = sbr.rel (0) target = $region65
    $region64: #{encoder_forward.1} parent=1 // pred_region
      %2404 = dma.done [#allocation5], 1024
    $region65: #{encoder_forward.1} parent=1 // pred_fallthru
      _
    // Predicated region
    $region66: #{encoder_forward.1} parent=1 // pred_check
      _
    $region67: #{encoder_forward.1} parent=1 // pred_check_branch
      %2406 = sbr.rel (0) target = $region69
    $region68: #{encoder_forward.1} parent=1 // pred_region
      %2408 = dma.done [#allocation16], 128
    $region69: #{encoder_forward.1} parent=1 // pred_fallthru
      _
    %2409 = vsyncpa [#allocation4], 1
    %2410 = vsyncpa [#allocation7], 1
    %2411 = vsyncpa [#allocation10], 1
    %2412 = vsyncpa [#allocation13], 1
    %2413 = vsyncpa [#allocation5], 1
    %2414 = vsyncpa [#allocation16], 1

</llo_original>
